<compile_context>
chip_gen: v7x
topology: tpu7x:2x2x1
jax: 0.10.0
libtpu: 0.0.40
codegen_flags: <defaults>
</compile_context>

<pallas_src>
import jax
import jax.numpy as jnp
from jax.experimental import pallas as pl
from jax.experimental.pallas import tpu as pltpu

K_IN = 784            # logical input features (28*28)
K_PAD = 896           # 7 * 128, zero-padded contraction dim for layer 1
H1, H2, H3 = 1024, 512, 256
OUT_LANES = 128       # lane-replicated output width (unmasked full-vreg stores)
TM_MAX = 512          # batch rows per grid step (review: 256-512; 512 fits easily)


def _leaky_relu(x, slope=0.2):
    return jnp.where(x > 0, x, slope * x)


def discriminator_kernel(x_ref,
                         w1_ref, b1_ref,
                         w2_ref, b2_ref,
                         w3_ref, b3_ref,
                         w4_ref, b4_ref,
                         o_ref):
    # Layer 1: 896(pad) -> 1024. bf16 MXU matmul, f32 accumulate, f32 epilogue.
    h = jnp.dot(x_ref[...], w1_ref[...], preferred_element_type=jnp.float32)
    h = _leaky_relu(h + b1_ref[...])
    # Dropout(0.3): identity in eval mode.

    # Layer 2: 1024 -> 512.
    h = jnp.dot(h.astype(jnp.bfloat16), w2_ref[...],
                preferred_element_type=jnp.float32)
    h = _leaky_relu(h + b2_ref[...])

    # Layer 3: 512 -> 256.
    h = jnp.dot(h.astype(jnp.bfloat16), w3_ref[...],
                preferred_element_type=jnp.float32)
    h = _leaky_relu(h + b3_ref[...])

    # Layer 4: 256 -> 1 as VPU multiply + cross-lane reduce (skip a degenerate
    # N=1 MXU pass). w4_ref is the (1, 256) weight row kept in f32.
    logit = jnp.sum(h * w4_ref[...], axis=-1, keepdims=True) + b4_ref[...]  # (TM, 1)

    # Sigmoid: EUP exp + exact reciprocal (tiny tensor; keeps output in [0,1]).
    sig = 1.0 / (1.0 + jnp.exp(-logit))

    # Lane-replicated store: (TM, 128) unmasked full-vreg stores; wrapper takes col 0.
    o_ref[...] = jnp.broadcast_to(sig, o_ref.shape).astype(o_ref.dtype)


def _pick_tm(batch):
    """Largest useful batch tile: TM_MAX for big batches, else the smallest
    multiple-of-8 (power of two) tile covering the batch to avoid padding waste."""
    if batch >= TM_MAX:
        return TM_MAX
    return max(8, int(pl.next_power_of_2(batch)))


@jax.jit
def discriminator_forward(x_nchw, kernel_params):
    """x_nchw: (B, 1, 28, 28) float32. Returns (B, 1) float32 probabilities."""
    B = x_nchw.shape[0]
    w1, b1, w2, b2, w3, b3, w4, b4 = kernel_params

    tm = _pick_tm(B)
    n_tiles = pl.cdiv(B, tm)
    b_pad = n_tiles * tm

    # Flatten like torch's x.view(B, 784), cast to bf16, zero-pad K to 896 and
    # the batch to a multiple of tm. Under jit + allow_input_fusion this pad/cast
    # fuses into the kernel's input path instead of a separate HBM pass.
    x2d = x_nchw.reshape(B, K_IN).astype(jnp.bfloat16)
    x_p = jnp.pad(x2d, ((0, b_pad - B), (0, K_PAD - K_IN)))

    def stream_spec(shape):      # streamed / pipelined over the batch grid
        return pl.BlockSpec(shape, lambda i: (i, 0))

    def resident_spec(shape):    # same block every step -> single DMA, VMEM-resident
        return pl.BlockSpec(shape, lambda i: (0, 0))

    out = pl.pallas_call(
        discriminator_kernel,
        out_shape=jax.ShapeDtypeStruct((b_pad, OUT_LANES), jnp.float32),
        grid=(n_tiles,),
        in_specs=[
            stream_spec((tm, K_PAD)),
            resident_spec((K_PAD, H1)), resident_spec((1, H1)),
            resident_spec((H1, H2)), resident_spec((1, H2)),
            resident_spec((H2, H3)), resident_spec((1, H3)),
            resident_spec((1, H3)), resident_spec((1, 1)),
        ],
        out_specs=stream_spec((tm, OUT_LANES)),
        compiler_params=pltpu.CompilerParams(
            dimension_semantics=("parallel",),          # v7x: shard batch tiles across 2 TCs
            vmem_limit_bytes=32 << 20,                  # ~14 MiB working set at TM=512
            allow_input_fusion=[True] + [False] * 8,    # fuse x pad/cast into input DMA
        ),
    )(x_p, w1, b1, w2, b2, w3, b3, w4, b4)

    # Undo batch padding and lane replication -> (B, 1), matches torch out.view(B, -1).
    return out[:B, 0:1]


def init_params(key):
    """Deterministic synthetic init (PyTorch-style U(-1/sqrt(fin), 1/sqrt(fin))).

    Weights are stored as (in_features, out_features) so y = x @ W + b matches
    PyTorch's x @ W_pt.T + b exactly.
    """
    sizes = [(K_IN, H1), (H1, H2), (H2, H3), (H3, 1)]
    params = []
    for i, (fin, fout) in enumerate(sizes):
        kw, kb = jax.random.split(jax.random.fold_in(key, i))
        bound = 1.0 / jnp.sqrt(fin)
        w = jax.random.uniform(kw, (fin, fout), jnp.float32, -bound, bound)
        b = jax.random.uniform(kb, (1, fout), jnp.float32, -bound, bound)
        params.append((w, b))
    return params


def prepare_params(params):
    """Convert logical f32 params into kernel layout:
       * w1 zero-padded to (896, 1024) and cast to bf16,
       * w2 / w3 cast to bf16,
       * w4 kept f32 as a (1, 256) row (consumed on the VPU),
       * all biases kept f32 (epilogue stays f32).
    """
    (w1, b1), (w2, b2), (w3, b3), (w4, b4) = params
    w1p = jnp.pad(w1, ((0, K_PAD - K_IN), (0, 0))).astype(jnp.bfloat16)
    return (w1p, b1,
            w2.astype(jnp.bfloat16), b2,
            w3.astype(jnp.bfloat16), b3,
            w4.T, b4)   # w4: (256,1) -> (1,256) f32; b4: (1,1) f32


def reference_forward(x_nchw, params):
    """Pure-JAX reference with the same numerics as the kernel
    (bf16 matmul inputs, f32 accumulation/epilogue, eval-mode dropout)."""
    (w1, b1), (w2, b2), (w3, b3), (w4, b4) = params
    h = x_nchw.reshape(x_nchw.shape[0], K_IN)
    for w, b in ((w1, b1), (w2, b2), (w3, b3)):
        h = jnp.dot(h.astype(jnp.bfloat16), w.astype(jnp.bfloat16),
                    preferred_element_type=jnp.float32)
        h = _leaky_relu(h + b)
    logit = jnp.sum(h * w4[:, 0][None, :], axis=-1, keepdims=True) + b4
    return jax.nn.sigmoid(logit)


if __name__ == "__main__":
    key = jax.random.PRNGKey(0)
    k_x, k_p = jax.random.split(key)

    params = init_params(k_p)
    kernel_params = prepare_params(params)

    # Small-batch check (B=2, single 8-row tile).
    B = 2
    x = jax.random.normal(k_x, (B, 1, 28, 28), dtype=jnp.float32)  # NCHW, like MNIST
    out = jax.block_until_ready(discriminator_forward(x, kernel_params))
    ref = reference_forward(x, params)
    assert out.shape == (B, 1)
    assert bool(jnp.all(jnp.isfinite(out)))
    assert jnp.allclose(out, ref, atol=2e-3, rtol=2e-3), "mismatch vs JAX reference (B=2)"

    # Multi-tile check (exercises TM=512, n_tiles>1, and the batch-padding slice).
    B2 = 1040
    x2 = jax.random.normal(jax.random.fold_in(k_x, 1), (B2, 1, 28, 28), dtype=jnp.float32)
    out2 = jax.block_until_ready(discriminator_forward(x2, kernel_params))
    ref2 = reference_forward(x2, params)
    assert out2.shape == (B2, 1)
    assert bool(jnp.all(jnp.isfinite(out2)))
    assert jnp.allclose(out2, ref2, atol=2e-3, rtol=2e-3), "mismatch vs JAX reference (B=1040)"

    print("KERNEL_OK")
</pallas_src>

<mosaic_0001>
module attributes {stable_mosaic.version = 11 : i64} {
  func.func @discriminator_kernel(%arg0: i32, %arg1: memref<8x896xbf16, #tpu.memory_space<vmem>>, %arg2: memref<896x1024xbf16, #tpu.memory_space<vmem>>, %arg3: memref<1x1024xf32, #tpu.memory_space<vmem>>, %arg4: memref<1024x512xbf16, #tpu.memory_space<vmem>>, %arg5: memref<1x512xf32, #tpu.memory_space<vmem>>, %arg6: memref<512x256xbf16, #tpu.memory_space<vmem>>, %arg7: memref<1x256xf32, #tpu.memory_space<vmem>>, %arg8: memref<1x256xf32, #tpu.memory_space<vmem>>, %arg9: memref<1x1xf32, #tpu.memory_space<vmem>>, %arg10: memref<8x128xf32, #tpu.memory_space<vmem>>) attributes {dimension_semantics = [#tpu.dimension_semantics<parallel>], iteration_bounds = array<i64: 1>, scalar_prefetch = 0 : i64, scratch_operands = 0 : i64, tpu.core_type = #tpu.core_type<tc>, window_params = [{transform_indices = @transform_0, window_bounds = array<i64: 8, 896>}, {pipeline_mode = #tpu.pipeline_mode<synchronous>, transform_indices = @transform_1, window_bounds = array<i64: 896, 1024>}, {pipeline_mode = #tpu.pipeline_mode<synchronous>, transform_indices = @transform_2, window_bounds = array<i64: 1, 1024>}, {pipeline_mode = #tpu.pipeline_mode<synchronous>, transform_indices = @transform_3, window_bounds = array<i64: 1024, 512>}, {pipeline_mode = #tpu.pipeline_mode<synchronous>, transform_indices = @transform_4, window_bounds = array<i64: 1, 512>}, {pipeline_mode = #tpu.pipeline_mode<synchronous>, transform_indices = @transform_5, window_bounds = array<i64: 512, 256>}, {pipeline_mode = #tpu.pipeline_mode<synchronous>, transform_indices = @transform_6, window_bounds = array<i64: 1, 256>}, {pipeline_mode = #tpu.pipeline_mode<synchronous>, transform_indices = @transform_7, window_bounds = array<i64: 1, 256>}, {pipeline_mode = #tpu.pipeline_mode<synchronous>, transform_indices = @transform_8, window_bounds = array<i64: 1, 1>}, {transform_indices = @transform_9, window_bounds = array<i64: 8, 128>}]} {
    %c0 = arith.constant 0 : index
    %c0_0 = arith.constant 0 : index
    %0 = vector.load %arg1[%c0, %c0_0] : memref<8x896xbf16, #tpu.memory_space<vmem>>, vector<8x896xbf16>
    %c0_1 = arith.constant 0 : index
    %c0_2 = arith.constant 0 : index
    %1 = vector.load %arg2[%c0_1, %c0_2] : memref<896x1024xbf16, #tpu.memory_space<vmem>>, vector<896x1024xbf16>
    %cst = arith.constant dense<0.000000e+00> : vector<8x1024xf32>
    %2 = tpu.matmul %0, %1, %cst {dimension_numbers = #tpu.dot_dimension_numbers<[1], [0], [0], [1], [0, 0, 1, 1], [], []>} : vector<8x896xbf16>, vector<896x1024xbf16>, vector<8x1024xf32> -> vector<8x1024xf32>
    %c0_3 = arith.constant 0 : index
    %c0_4 = arith.constant 0 : index
    %3 = vector.load %arg3[%c0_3, %c0_4] : memref<1x1024xf32, #tpu.memory_space<vmem>>, vector<1x1024xf32>
    %4 = vector.broadcast %3 : vector<1x1024xf32> to vector<8x1024xf32>
    %5 = arith.addf %2, %4 : vector<8x1024xf32>
    %cst_5 = arith.constant 0.000000e+00 : f32
    %6 = vector.broadcast %cst_5 : f32 to vector<8x1024xf32>
    %7 = arith.cmpf ogt, %5, %6 : vector<8x1024xf32>
    %cst_6 = arith.constant 2.000000e-01 : f32
    %8 = vector.broadcast %cst_6 : f32 to vector<8x1024xf32>
    %9 = arith.mulf %8, %5 : vector<8x1024xf32>
    %10 = arith.select %7, %5, %9 : vector<8x1024xi1>, vector<8x1024xf32>
    %11 = arith.truncf %10 : vector<8x1024xf32> to vector<8x1024xbf16>
    %c0_7 = arith.constant 0 : index
    %c0_8 = arith.constant 0 : index
    %12 = vector.load %arg4[%c0_7, %c0_8] : memref<1024x512xbf16, #tpu.memory_space<vmem>>, vector<1024x512xbf16>
    %cst_9 = arith.constant dense<0.000000e+00> : vector<8x512xf32>
    %13 = tpu.matmul %11, %12, %cst_9 {dimension_numbers = #tpu.dot_dimension_numbers<[1], [0], [0], [1], [0, 0, 1, 1], [], []>} : vector<8x1024xbf16>, vector<1024x512xbf16>, vector<8x512xf32> -> vector<8x512xf32>
    %c0_10 = arith.constant 0 : index
    %c0_11 = arith.constant 0 : index
    %14 = vector.load %arg5[%c0_10, %c0_11] : memref<1x512xf32, #tpu.memory_space<vmem>>, vector<1x512xf32>
    %15 = vector.broadcast %14 : vector<1x512xf32> to vector<8x512xf32>
    %16 = arith.addf %13, %15 : vector<8x512xf32>
    %cst_12 = arith.constant 0.000000e+00 : f32
    %17 = vector.broadcast %cst_12 : f32 to vector<8x512xf32>
    %18 = arith.cmpf ogt, %16, %17 : vector<8x512xf32>
    %cst_13 = arith.constant 2.000000e-01 : f32
    %19 = vector.broadcast %cst_13 : f32 to vector<8x512xf32>
    %20 = arith.mulf %19, %16 : vector<8x512xf32>
    %21 = arith.select %18, %16, %20 : vector<8x512xi1>, vector<8x512xf32>
    %22 = arith.truncf %21 : vector<8x512xf32> to vector<8x512xbf16>
    %c0_14 = arith.constant 0 : index
    %c0_15 = arith.constant 0 : index
    %23 = vector.load %arg6[%c0_14, %c0_15] : memref<512x256xbf16, #tpu.memory_space<vmem>>, vector<512x256xbf16>
    %cst_16 = arith.constant dense<0.000000e+00> : vector<8x256xf32>
    %24 = tpu.matmul %22, %23, %cst_16 {dimension_numbers = #tpu.dot_dimension_numbers<[1], [0], [0], [1], [0, 0, 1, 1], [], []>} : vector<8x512xbf16>, vector<512x256xbf16>, vector<8x256xf32> -> vector<8x256xf32>
    %c0_17 = arith.constant 0 : index
    %c0_18 = arith.constant 0 : index
    %25 = vector.load %arg7[%c0_17, %c0_18] : memref<1x256xf32, #tpu.memory_space<vmem>>, vector<1x256xf32>
    %26 = vector.broadcast %25 : vector<1x256xf32> to vector<8x256xf32>
    %27 = arith.addf %24, %26 : vector<8x256xf32>
    %cst_19 = arith.constant 0.000000e+00 : f32
    %28 = vector.broadcast %cst_19 : f32 to vector<8x256xf32>
    %29 = arith.cmpf ogt, %27, %28 : vector<8x256xf32>
    %cst_20 = arith.constant 2.000000e-01 : f32
    %30 = vector.broadcast %cst_20 : f32 to vector<8x256xf32>
    %31 = arith.mulf %30, %27 : vector<8x256xf32>
    %32 = arith.select %29, %27, %31 : vector<8x256xi1>, vector<8x256xf32>
    %c0_21 = arith.constant 0 : index
    %c0_22 = arith.constant 0 : index
    %33 = vector.load %arg8[%c0_21, %c0_22] : memref<1x256xf32, #tpu.memory_space<vmem>>, vector<1x256xf32>
    %34 = vector.broadcast %33 : vector<1x256xf32> to vector<8x256xf32>
    %35 = arith.mulf %32, %34 : vector<8x256xf32>
    %cst_23 = arith.constant dense<0.000000e+00> : vector<8xf32>
    %36 = vector.multi_reduction <add>, %35, %cst_23 [1] : vector<8x256xf32> to vector<8xf32>
    %37 = vector.shape_cast %36 : vector<8xf32> to vector<8x1xf32>
    %c0_24 = arith.constant 0 : index
    %c0_25 = arith.constant 0 : index
    %38 = vector.load %arg9[%c0_24, %c0_25] : memref<1x1xf32, #tpu.memory_space<vmem>>, vector<1x1xf32>
    %39 = vector.broadcast %38 : vector<1x1xf32> to vector<8x1xf32>
    %40 = arith.addf %37, %39 : vector<8x1xf32>
    %cst_26 = arith.constant 0.000000e+00 : f32
    %41 = vector.broadcast %cst_26 : f32 to vector<8x1xf32>
    %42 = arith.subf %41, %40 : vector<8x1xf32>
    %43 = math.exp %42 : vector<8x1xf32>
    %cst_27 = arith.constant 1.000000e+00 : f32
    %44 = vector.broadcast %cst_27 : f32 to vector<8x1xf32>
    %45 = arith.addf %44, %43 : vector<8x1xf32>
    %cst_28 = arith.constant 1.000000e+00 : f32
    %46 = vector.broadcast %cst_28 : f32 to vector<8x1xf32>
    %47 = arith.divf %46, %45 : vector<8x1xf32>
    %48 = vector.shape_cast %47 : vector<8x1xf32> to vector<8x1xf32>
    %49 = vector.broadcast %48 : vector<8x1xf32> to vector<8x128xf32>
    %c0_29 = arith.constant 0 : index
    %c0_30 = arith.constant 0 : index
    %50 = vector.load %arg10[%c0_29, %c0_30] : memref<8x128xf32, #tpu.memory_space<vmem>>, vector<8x128xf32>
    tpu.vector_store %arg10[%c0_29, %c0_30], %49 {strides = array<i32>} : memref<8x128xf32, #tpu.memory_space<vmem>>, vector<8x128xf32>,
    return
  }
  func.func @transform_0(%arg0: i32) -> (i32, i32) {
    %c0_i32 = arith.constant 0 : i32
    %c0_i32_0 = arith.constant 0 : i32
    return %arg0, %c0_i32 : i32, i32
  }
  func.func @transform_1(%arg0: i32) -> (i32, i32) {
    %c0_i32 = arith.constant 0 : i32
    %c0_i32_0 = arith.constant 0 : i32
    %c0_i32_1 = arith.constant 0 : i32
    return %c0_i32, %c0_i32_0 : i32, i32
  }
  func.func @transform_2(%arg0: i32) -> (i32, i32) {
    %c0_i32 = arith.constant 0 : i32
    %c0_i32_0 = arith.constant 0 : i32
    %c0_i32_1 = arith.constant 0 : i32
    return %c0_i32, %c0_i32_0 : i32, i32
  }
  func.func @transform_3(%arg0: i32) -> (i32, i32) {
    %c0_i32 = arith.constant 0 : i32
    %c0_i32_0 = arith.constant 0 : i32
    %c0_i32_1 = arith.constant 0 : i32
    return %c0_i32, %c0_i32_0 : i32, i32
  }
  func.func @transform_4(%arg0: i32) -> (i32, i32) {
    %c0_i32 = arith.constant 0 : i32
    %c0_i32_0 = arith.constant 0 : i32
    %c0_i32_1 = arith.constant 0 : i32
    return %c0_i32, %c0_i32_0 : i32, i32
  }
  func.func @transform_5(%arg0: i32) -> (i32, i32) {
    %c0_i32 = arith.constant 0 : i32
    %c0_i32_0 = arith.constant 0 : i32
    %c0_i32_1 = arith.constant 0 : i32
    return %c0_i32, %c0_i32_0 : i32, i32
  }
  func.func @transform_6(%arg0: i32) -> (i32, i32) {
    %c0_i32 = arith.constant 0 : i32
    %c0_i32_0 = arith.constant 0 : i32
    %c0_i32_1 = arith.constant 0 : i32
    return %c0_i32, %c0_i32_0 : i32, i32
  }
  func.func @transform_7(%arg0: i32) -> (i32, i32) {
    %c0_i32 = arith.constant 0 : i32
    %c0_i32_0 = arith.constant 0 : i32
    %c0_i32_1 = arith.constant 0 : i32
    return %c0_i32, %c0_i32_0 : i32, i32
  }
  func.func @transform_8(%arg0: i32) -> (i32, i32) {
    %c0_i32 = arith.constant 0 : i32
    %c0_i32_0 = arith.constant 0 : i32
    %c0_i32_1 = arith.constant 0 : i32
    return %c0_i32, %c0_i32_0 : i32, i32
  }
  func.func @transform_9(%arg0: i32) -> (i32, i32) {
    %c0_i32 = arith.constant 0 : i32
    %c0_i32_0 = arith.constant 0 : i32
    return %arg0, %c0_i32 : i32, i32
  }
}

</mosaic_0001>

<llo_original>
// kernel: discriminator_forward.2
$region0: #{discriminator_forward.2}
  #allocation0 [shape = 'u32[]', space=smem, size = 0x4, offset = 0x4, fixed_abs, tag = 'smem constant byte address 0x4 - core index']
  #allocation1 [shape = 'u32[144,128]{1,0:T(1,128)}', space=vmem, size = 0x12000, scoped, tag = 'internal scratch']
  #allocation2 [shape = 'u32[2048]{0}', space=vmem, size = 0x2000, scoped, tag = 'scoped memory for discriminator_forward.2']
  #allocation3 [shape = 'u32[2048]{0}', space=vmem, size = 0x2000, scoped, tag = 'scoped memory for discriminator_forward.2']
  #allocation4 [shape = 'u32[2048]{0}', space=vmem, size = 0x2000, scoped, tag = 'scoped memory for discriminator_forward.2']
  #allocation5 [shape = 'u32[2048]{0}', space=vmem, size = 0x2000, scoped, tag = 'scoped memory for discriminator_forward.2']
  #allocation6 [shape = 'u32[2048]{0}', space=vmem, size = 0x2000, scoped, tag = 'scoped memory for discriminator_forward.2']
  #allocation7 [shape = 'f32[1,1]{1,0:T(1,128)S(1)}', space=vmem, size = 0x200, scoped, tag = 'scoped memory for discriminator_forward.2']
  %s0 = inlined_call_operand.hbm [shape: bf16[896,1024], index: 0, kind: input, shape index: {}]
  %s1 = inlined_call_operand.hbm [shape: f32[1,1024], index: 1, kind: input, shape index: {}]
  %s2 = inlined_call_operand.hbm [shape: bf16[1024,512], index: 2, kind: input, shape index: {}]
  %s3 = inlined_call_operand.hbm [shape: f32[1,512], index: 3, kind: input, shape index: {}]
  %s4 = inlined_call_operand.hbm [shape: bf16[512,256], index: 4, kind: input, shape index: {}]
  %s5 = inlined_call_operand.hbm [shape: f32[1,256], index: 5, kind: input, shape index: {}]
  %s6 = inlined_call_operand.hbm [shape: f32[1,256], index: 6, kind: input, shape index: {}]
  %s7 = inlined_call_operand.<no memory space> [shape: f32[1,1], index: 7, kind: input, shape index: {}]
  %s8 = inlined_call_operand.vmem [shape: bf16[2,784], index: 8, kind: input, shape index: {}]
  %s9 = inlined_call_operand.<no memory space> [shape: bf16[], index: 9, kind: input, shape index: {}]
  %s10 = inlined_call_operand.vmem [shape: f32[8,128], index: 10, kind: output, shape index: {}]
  %s11 = sld [smem:[#allocation0]]
  $region74: #{discriminator_forward.2} parent=0
    _
  %s13 = ssub.s32 1, %s11
  %s14 = scalar_select 0, %s13, %s11
  %v15 = vstv %s9
  %v16 = vunpack.i.l.bf16 %v15
  %v18 = vunpack.i.h.bf16 %v15
  %v20 = vstv %s7
  %21 = vst [vmem:[#allocation7] sm:$0x1] %v20
  $region1: #{discriminator_forward.2} parent=0
    #allocation8 [shape = 'u8[1835008]{0}', space=vmem, size = 0x1c0000, scoped, tag = 'input window, operand 1, single buffered']
    #allocation9 [shape = 's32[1]{0}', space=sflag, size = 0x4, scoped, tag = 'scoped memory for discriminator_forward.2']
    #allocation10 [shape = 'u8[4096]{0}', space=vmem, size = 0x1000, scoped, tag = 'input window, operand 2, single buffered']
    #allocation11 [shape = 's32[1]{0}', space=sflag, size = 0x4, scoped, tag = 'scoped memory for discriminator_forward.2']
    #allocation12 [shape = 'u8[1048576]{0}', space=vmem, size = 0x100000, scoped, tag = 'input window, operand 3, single buffered']
    #allocation13 [shape = 'u8[2048]{0}', space=vmem, size = 0x800, scoped, tag = 'input window, operand 4, single buffered']
    #allocation14 [shape = 's32[1]{0}', space=sflag, size = 0x4, scoped, tag = 'scoped memory for discriminator_forward.2']
    #allocation15 [shape = 'u8[262144]{0}', space=vmem, size = 0x40000, scoped, tag = 'input window, operand 5, single buffered']
    #allocation16 [shape = 'u8[1024]{0}', space=vmem, size = 0x400, scoped, tag = 'input window, operand 6, single buffered']
    #allocation17 [shape = 's32[1]{0}', space=sflag, size = 0x4, scoped, tag = 'scoped memory for discriminator_forward.2']
    #allocation18 [shape = 'u8[1024]{0}', space=vmem, size = 0x400, scoped, tag = 'input window, operand 7, single buffered']
    #allocation19 [shape = 'u8[14336]{0}', space=vmem, size = 0x3800, dematerialized = true, scoped, tag = 'FusionAdapter Buffer %fusion.1 = bf16[8,896]{1,0:T(8,128)(2,1)} fusion(%param_8.1, %param_9), kind=kLoop, calls=%fused_computation.2.clone, metadata={op_name="jit(discriminator_forward)/jit(_pad)/pad" stack_frame_id=8}']
    %22 = vsyncpa [#allocation9], 0
    %23 = vsyncpa [#allocation11], 0
    %24 = vsyncpa [#allocation14], 0
    %25 = vsyncpa [#allocation17], 0
    // Predicated region
    $region2: #{discriminator_forward.2} parent=1 // pred_check
      _
    $region3: #{discriminator_forward.2} parent=1 // pred_check_branch
      %27 = sbr.rel (0) target = $region5
    $region4: #{discriminator_forward.2} parent=1 // pred_region
      _
    $region5: #{discriminator_forward.2} parent=1 // pred_fallthru
      _
    // Predicated region
    $region6: #{discriminator_forward.2} parent=1 // pred_check
      _
    $region7: #{discriminator_forward.2} parent=1 // pred_check_branch
      %29 = sbr.rel (0) target = $region9
    $region8: #{discriminator_forward.2} parent=1 // pred_region
      %s31 = ssub.s32 57344, 57344
      %32 = vsyncadd [#allocation9], %s31
      %s33 = sshll.u32 [#allocation8], 4
      %s34 = int_to_ptr.vmem [resolvable:$true] %s33
      %39 = dma.hbm_to_vmem [thread:$0]  %s0, 57344, %s34, [#allocation9], 512, 512, 32
    $region9: #{discriminator_forward.2} parent=1 // pred_fallthru
      _
    // Predicated region
    $region10: #{discriminator_forward.2} parent=1 // pred_check
      _
    $region11: #{discriminator_forward.2} parent=1 // pred_check_branch
      %41 = sbr.rel (0) target = $region13
    $region12: #{discriminator_forward.2} parent=1 // pred_region
      %s43 = ssub.s32 128, 128
      %44 = vsyncadd [#allocation11], %s43
      %s46 = sshll.u32 [#allocation10], 4
      %s47 = int_to_ptr.vmem [resolvable:$true] %s46
      %49 = dma.hbm_to_vmem [thread:$0]  %s1, 128, %s47, [#allocation11]
    $region13: #{discriminator_forward.2} parent=1 // pred_fallthru
      _
    // Predicated region
    $region14: #{discriminator_forward.2} parent=1 // pred_check
      _
    $region15: #{discriminator_forward.2} parent=1 // pred_check_branch
      %51 = sbr.rel (0) target = $region17
    $region16: #{discriminator_forward.2} parent=1 // pred_region
      %s53 = ssub.s32 32768, 32768
      %54 = vsyncadd [#allocation11], %s53
      %s55 = sshll.u32 [#allocation12], 4
      %s56 = int_to_ptr.vmem [resolvable:$true] %s55
      %61 = dma.hbm_to_vmem [thread:$0]  %s2, 32768, %s56, [#allocation11], 256, 256, 16
    $region17: #{discriminator_forward.2} parent=1 // pred_fallthru
      _
    // Predicated region
    $region18: #{discriminator_forward.2} parent=1 // pred_check
      _
    $region19: #{discriminator_forward.2} parent=1 // pred_check_branch
      %63 = sbr.rel (0) target = $region21
    $region20: #{discriminator_forward.2} parent=1 // pred_region
      %s65 = ssub.s32 64, 64
      %66 = vsyncadd [#allocation14], %s65
      %s68 = sshll.u32 [#allocation13], 4
      %s69 = int_to_ptr.vmem [resolvable:$true] %s68
      %71 = dma.hbm_to_vmem [thread:$0]  %s3, 64, %s69, [#allocation14]
    $region21: #{discriminator_forward.2} parent=1 // pred_fallthru
      _
    // Predicated region
    $region22: #{discriminator_forward.2} parent=1 // pred_check
      _
    $region23: #{discriminator_forward.2} parent=1 // pred_check_branch
      %73 = sbr.rel (0) target = $region25
    $region24: #{discriminator_forward.2} parent=1 // pred_region
      %s75 = ssub.s32 8192, 8192
      %76 = vsyncadd [#allocation14], %s75
      %s77 = sshll.u32 [#allocation15], 4
      %s78 = int_to_ptr.vmem [resolvable:$true] %s77
      %83 = dma.hbm_to_vmem [thread:$0]  %s4, 8192, %s78, [#allocation14], 128, 128, 8
    $region25: #{discriminator_forward.2} parent=1 // pred_fallthru
      _
    // Predicated region
    $region26: #{discriminator_forward.2} parent=1 // pred_check
      _
    $region27: #{discriminator_forward.2} parent=1 // pred_check_branch
      %85 = sbr.rel (0) target = $region29
    $region28: #{discriminator_forward.2} parent=1 // pred_region
      %s87 = ssub.s32 32, 32
      %88 = vsyncadd [#allocation17], %s87
      %s90 = sshll.u32 [#allocation16], 4
      %s91 = int_to_ptr.vmem [resolvable:$true] %s90
      %93 = dma.hbm_to_vmem [thread:$0]  %s5, 32, %s91, [#allocation17]
    $region29: #{discriminator_forward.2} parent=1 // pred_fallthru
      _
    // Predicated region
    $region30: #{discriminator_forward.2} parent=1 // pred_check
      _
    $region31: #{discriminator_forward.2} parent=1 // pred_check_branch
      %95 = sbr.rel (0) target = $region33
    $region32: #{discriminator_forward.2} parent=1 // pred_region
      %s97 = ssub.s32 32, 32
      %98 = vsyncadd [#allocation17], %s97
      %s100 = sshll.u32 [#allocation18], 4
      %s101 = int_to_ptr.vmem [resolvable:$true] %s100
      %103 = dma.hbm_to_vmem [thread:$0]  %s6, 32, %s101, [#allocation17]
    $region33: #{discriminator_forward.2} parent=1 // pred_fallthru
      _
    // Predicated region
    $region34: #{discriminator_forward.2} parent=1 // pred_check
      _
    $region35: #{discriminator_forward.2} parent=1 // pred_check_branch
      %105 = sbr.rel (0) target = $region37
    $region36: #{discriminator_forward.2} parent=1 // pred_region
      _
    $region37: #{discriminator_forward.2} parent=1 // pred_fallthru
      _
    // Predicated region
    $region38: #{discriminator_forward.2} parent=1 // pred_check
      _
    $region39: #{discriminator_forward.2} parent=1 // pred_check_branch
      %107 = sbr.rel (0) target = $region41
    $region40: #{discriminator_forward.2} parent=1 // pred_region
      %108 = dma.done [#allocation9], 57344
    $region41: #{discriminator_forward.2} parent=1 // pred_fallthru
      _
    // Predicated region
    $region42: #{discriminator_forward.2} parent=1 // pred_check
      _
    $region43: #{discriminator_forward.2} parent=1 // pred_check_branch
      %110 = sbr.rel (0) target = $region45
    $region44: #{discriminator_forward.2} parent=1 // pred_region
      %111 = dma.done [#allocation11], 128
    $region45: #{discriminator_forward.2} parent=1 // pred_fallthru
      _
    // Predicated region
    $region46: #{discriminator_forward.2} parent=1 // pred_check
      _
    $region47: #{discriminator_forward.2} parent=1 // pred_check_branch
      %113 = sbr.rel (0) target = $region49
    $region48: #{discriminator_forward.2} parent=1 // pred_region
      %114 = dma.done [#allocation11], 32768
    $region49: #{discriminator_forward.2} parent=1 // pred_fallthru
      _
    // Predicated region
    $region50: #{discriminator_forward.2} parent=1 // pred_check
      _
    $region51: #{discriminator_forward.2} parent=1 // pred_check_branch
      %116 = sbr.rel (0) target = $region53
    $region52: #{discriminator_forward.2} parent=1 // pred_region
      %117 = dma.done [#allocation14], 64
    $region53: #{discriminator_forward.2} parent=1 // pred_fallthru
      _
    // Predicated region
    $region54: #{discriminator_forward.2} parent=1 // pred_check
      _
    $region55: #{discriminator_forward.2} parent=1 // pred_check_branch
      %119 = sbr.rel (0) target = $region57
    $region56: #{discriminator_forward.2} parent=1 // pred_region
      %120 = dma.done [#allocation14], 8192
    $region57: #{discriminator_forward.2} parent=1 // pred_fallthru
      _
    // Predicated region
    $region58: #{discriminator_forward.2} parent=1 // pred_check
      _
    $region59: #{discriminator_forward.2} parent=1 // pred_check_branch
      %122 = sbr.rel (0) target = $region61
    $region60: #{discriminator_forward.2} parent=1 // pred_region
      %123 = dma.done [#allocation17], 32
    $region61: #{discriminator_forward.2} parent=1 // pred_fallthru
      _
    // Predicated region
    $region62: #{discriminator_forward.2} parent=1 // pred_check
      _
    $region63: #{discriminator_forward.2} parent=1 // pred_check_branch
      %125 = sbr.rel (0) target = $region65
    $region64: #{discriminator_forward.2} parent=1 // pred_region
      %126 = dma.done [#allocation17], 32
    $region65: #{discriminator_forward.2} parent=1 // pred_fallthru
      _
    %s128 = sor.u32 3, 1
    %s129 = sand.u32 %s128, 1
    %v130 = vld [vmem:[%s8] sm:%s129]
    %v131 = vunpack.c.l.bf16 %v130
    %v132 = vunpack.c.h.bf16 %v130
    %v133 = vlaneseq
    %v134 = vshrl.u32 %v133, 7
    %vm136 = vcmp.lt.s32.totalorder %v134, 2
    %v137 = vsel %vm136, %v131, %v16
    %v138 = vlaneseq
    %v139 = vand.u32 %v138, 127
    %vm141 = vcmp.lt.s32.totalorder %v139, 784
    %v142 = vsel %vm141, %v137, %v16
    %v143 = vpack.c.bf16 0.0, %v142
    %145 = vst [vmem:[#allocation19] sm:$0xf] %v143
    %s146 = scalar_lea.vmem %s8, 1
    %s148 = sor.u32 3, 1
    %s149 = sand.u32 %s148, 1
    %v150 = vld [vmem:[%s146] sm:%s149]
    %v151 = vunpack.c.l.bf16 %v150
    %v152 = vunpack.c.h.bf16 %v150
    %v153 = vlaneseq
    %v154 = vshrl.u32 %v153, 7
    %vm156 = vcmp.lt.s32.totalorder %v154, 2
    %v157 = vsel %vm156, %v151, %v16
    %v158 = vlaneseq
    %v159 = vand.u32 %v158, 127
    %v160 = vadd.s32 %v159, 128
    %vm161 = vcmp.lt.s32.totalorder %v160, 784
    %v162 = vsel %vm161, %v157, %v16
    %s163 = scalar_lea.vmem [#allocation19], 4
    %v164 = vpack.c.bf16 0.0, %v162
    %166 = vst [vmem:[%s163] sm:$0xf] %v164
    %s167 = scalar_lea.vmem %s8, 2
    %s169 = sor.u32 3, 1
    %s170 = sand.u32 %s169, 1
    %v171 = vld [vmem:[%s167] sm:%s170]
    %v172 = vunpack.c.l.bf16 %v171
    %v173 = vunpack.c.h.bf16 %v171
    %v174 = vlaneseq
    %v175 = vshrl.u32 %v174, 7
    %vm177 = vcmp.lt.s32.totalorder %v175, 2
    %v178 = vsel %vm177, %v172, %v16
    %v179 = vlaneseq
    %v180 = vand.u32 %v179, 127
    %v181 = vadd.s32 %v180, 256
    %vm182 = vcmp.lt.s32.totalorder %v181, 784
    %v183 = vsel %vm182, %v178, %v16
    %s184 = scalar_lea.vmem [#allocation19], 8
    %v185 = vpack.c.bf16 0.0, %v183
    %187 = vst [vmem:[%s184] sm:$0xf] %v185
    %s188 = scalar_lea.vmem %s8, 3
    %s190 = sor.u32 3, 1
    %s191 = sand.u32 %s190, 1
    %v192 = vld [vmem:[%s188] sm:%s191]
    %v193 = vunpack.c.l.bf16 %v192
    %v194 = vunpack.c.h.bf16 %v192
    %v195 = vlaneseq
    %v196 = vshrl.u32 %v195, 7
    %vm198 = vcmp.lt.s32.totalorder %v196, 2
    %v199 = vsel %vm198, %v193, %v16
    %v200 = vlaneseq
    %v201 = vand.u32 %v200, 127
    %v202 = vadd.s32 %v201, 384
    %vm203 = vcmp.lt.s32.totalorder %v202, 784
    %v204 = vsel %vm203, %v199, %v16
    %s205 = scalar_lea.vmem [#allocation19], 12
    %v206 = vpack.c.bf16 0.0, %v204
    %208 = vst [vmem:[%s205] sm:$0xf] %v206
    %s209 = scalar_lea.vmem %s8, 4
    %s211 = sor.u32 3, 1
    %s212 = sand.u32 %s211, 1
    %v213 = vld [vmem:[%s209] sm:%s212]
    %v214 = vunpack.c.l.bf16 %v213
    %v215 = vunpack.c.h.bf16 %v213
    %v216 = vlaneseq
    %v217 = vshrl.u32 %v216, 7
    %vm219 = vcmp.lt.s32.totalorder %v217, 2
    %v220 = vsel %vm219, %v214, %v16
    %v221 = vlaneseq
    %v222 = vand.u32 %v221, 127
    %v223 = vadd.s32 %v222, 512
    %vm224 = vcmp.lt.s32.totalorder %v223, 784
    %v225 = vsel %vm224, %v220, %v16
    %s226 = scalar_lea.vmem [#allocation19], 16
    %v227 = vpack.c.bf16 0.0, %v225
    %229 = vst [vmem:[%s226] sm:$0xf] %v227
    %s230 = scalar_lea.vmem %s8, 5
    %s232 = sor.u32 3, 1
    %s233 = sand.u32 %s232, 1
    %v234 = vld [vmem:[%s230] sm:%s233]
    %v235 = vunpack.c.l.bf16 %v234
    %v236 = vunpack.c.h.bf16 %v234
    %v237 = vlaneseq
    %v238 = vshrl.u32 %v237, 7
    %vm240 = vcmp.lt.s32.totalorder %v238, 2
    %v241 = vsel %vm240, %v235, %v16
    %v242 = vlaneseq
    %v243 = vand.u32 %v242, 127
    %v244 = vadd.s32 %v243, 640
    %vm245 = vcmp.lt.s32.totalorder %v244, 784
    %v246 = vsel %vm245, %v241, %v16
    %s247 = scalar_lea.vmem [#allocation19], 20
    %v248 = vpack.c.bf16 0.0, %v246
    %250 = vst [vmem:[%s247] sm:$0xf] %v248
    %s251 = scalar_lea.vmem %s8, 6
    %s253 = sor.u32 3, 1
    %s254 = sand.u32 %s253, 1
    %v255 = vld [vmem:[%s251] sm:%s254]
    %v256 = vunpack.c.l.bf16 %v255
    %v257 = vunpack.c.h.bf16 %v255
    %v258 = vlaneseq
    %v259 = vshrl.u32 %v258, 7
    %vm261 = vcmp.lt.s32.totalorder %v259, 2
    %v262 = vsel %vm261, %v256, %v16
    %v263 = vlaneseq
    %v264 = vand.u32 %v263, 127
    %v265 = vadd.s32 %v264, 768
    %vm266 = vcmp.lt.s32.totalorder %v265, 784
    %v267 = vsel %vm266, %v262, %v16
    %s268 = scalar_lea.vmem [#allocation19], 24
    %v269 = vpack.c.bf16 0.0, %v267
    %271 = vst [vmem:[%s268] sm:$0xf] %v269
    %v273 = vld [vmem:[#allocation19] sm:$0xff]
    %v274 = vld [vmem:[#allocation19 + $0x8] sm:$0xff]
    %v275 = vld [vmem:[#allocation19 + $0x10] sm:$0xff]
    %v276 = vld [vmem:[#allocation19 + $0x18] sm:$0xf]
    %v277 = vld [vmem:[#allocation8] sm:$0xff]
    %v278 = vld [vmem:[#allocation8 + $0x8] sm:$0xff]
    %v279 = vld [vmem:[#allocation8 + $0x10] sm:$0xff]
    %v280 = vld [vmem:[#allocation8 + $0x18] sm:$0xff]
    %v281 = vld [vmem:[#allocation8 + $0x20] sm:$0xff]
    %v282 = vld [vmem:[#allocation8 + $0x28] sm:$0xff]
    %v283 = vld [vmem:[#allocation8 + $0x30] sm:$0xff]
    %v284 = vld [vmem:[#allocation8 + $0x38] sm:$0xff]
    %v285 = vld [vmem:[#allocation8 + $0x40] sm:$0xff]
    %v286 = vld [vmem:[#allocation8 + $0x48] sm:$0xff]
    %v287 = vld [vmem:[#allocation8 + $0x50] sm:$0xff]
    %v288 = vld [vmem:[#allocation8 + $0x58] sm:$0xff]
    %v289 = vld [vmem:[#allocation8 + $0x60] sm:$0xff]
    %v290 = vld [vmem:[#allocation8 + $0x68] sm:$0xff]
    %v291 = vld [vmem:[#allocation8 + $0x70] sm:$0xff]
    %v292 = vld [vmem:[#allocation8 + $0x78] sm:$0xff]
    %v293 = vld [vmem:[#allocation8 + $0x80] sm:$0xff]
    %v294 = vld [vmem:[#allocation8 + $0x88] sm:$0xff]
    %v295 = vld [vmem:[#allocation8 + $0x90] sm:$0xff]
    %v296 = vld [vmem:[#allocation8 + $0x98] sm:$0xff]
    %v297 = vld [vmem:[#allocation8 + $0xa0] sm:$0xff]
    %v298 = vld [vmem:[#allocation8 + $0xa8] sm:$0xff]
    %v299 = vld [vmem:[#allocation8 + $0xb0] sm:$0xff]
    %v300 = vld [vmem:[#allocation8 + $0xb8] sm:$0xff]
    %v301 = vld [vmem:[#allocation8 + $0xc0] sm:$0xff]
    %v302 = vld [vmem:[#allocation8 + $0xc8] sm:$0xff]
    %v303 = vld [vmem:[#allocation8 + $0xd0] sm:$0xff]
    %v304 = vld [vmem:[#allocation8 + $0xd8] sm:$0xff]
    %v305 = vld [vmem:[#allocation8 + $0xe0] sm:$0xff]
    %v306 = vld [vmem:[#allocation8 + $0xe8] sm:$0xff]
    %v307 = vld [vmem:[#allocation8 + $0xf0] sm:$0xff]
    %v308 = vld [vmem:[#allocation8 + $0xf8] sm:$0xff]
    %v309 = vld [vmem:[#allocation8 + $0x100] sm:$0xff]
    %v310 = vld [vmem:[#allocation8 + $0x108] sm:$0xff]
    %v311 = vld [vmem:[#allocation8 + $0x110] sm:$0xff]
    %v312 = vld [vmem:[#allocation8 + $0x118] sm:$0xff]
    %v313 = vld [vmem:[#allocation8 + $0x120] sm:$0xff]
    %v314 = vld [vmem:[#allocation8 + $0x128] sm:$0xff]
    %v315 = vld [vmem:[#allocation8 + $0x130] sm:$0xff]
    %v316 = vld [vmem:[#allocation8 + $0x138] sm:$0xff]
    %v317 = vld [vmem:[#allocation8 + $0x140] sm:$0xff]
    %v318 = vld [vmem:[#allocation8 + $0x148] sm:$0xff]
    %v319 = vld [vmem:[#allocation8 + $0x150] sm:$0xff]
    %v320 = vld [vmem:[#allocation8 + $0x158] sm:$0xff]
    %v321 = vld [vmem:[#allocation8 + $0x160] sm:$0xff]
    %v322 = vld [vmem:[#allocation8 + $0x168] sm:$0xff]
    %v323 = vld [vmem:[#allocation8 + $0x170] sm:$0xff]
    %v324 = vld [vmem:[#allocation8 + $0x178] sm:$0xff]
    %v325 = vld [vmem:[#allocation8 + $0x180] sm:$0xff]
    %v326 = vld [vmem:[#allocation8 + $0x188] sm:$0xff]
    %v327 = vld [vmem:[#allocation8 + $0x190] sm:$0xff]
    %v328 = vld [vmem:[#allocation8 + $0x198] sm:$0xff]
    %v329 = vld [vmem:[#allocation8 + $0x1a0] sm:$0xff]
    %v330 = vld [vmem:[#allocation8 + $0x1a8] sm:$0xff]
    %v331 = vld [vmem:[#allocation8 + $0x1b0] sm:$0xff]
    %v332 = vld [vmem:[#allocation8 + $0x1b8] sm:$0xff]
    %v333 = vld [vmem:[#allocation8 + $0x1c0] sm:$0xff]
    %v334 = vld [vmem:[#allocation8 + $0x1c8] sm:$0xff]
    %v335 = vld [vmem:[#allocation8 + $0x1d0] sm:$0xff]
    %v336 = vld [vmem:[#allocation8 + $0x1d8] sm:$0xff]
    %v337 = vld [vmem:[#allocation8 + $0x1e0] sm:$0xff]
    %v338 = vld [vmem:[#allocation8 + $0x1e8] sm:$0xff]
    %v339 = vld [vmem:[#allocation8 + $0x1f0] sm:$0xff]
    %v340 = vld [vmem:[#allocation8 + $0x1f8] sm:$0xff]
    %v341 = vld [vmem:[#allocation8 + $0x200] sm:$0xff]
    %v342 = vld [vmem:[#allocation8 + $0x208] sm:$0xff]
    %v343 = vld [vmem:[#allocation8 + $0x210] sm:$0xff]
    %v344 = vld [vmem:[#allocation8 + $0x218] sm:$0xff]
    %v345 = vld [vmem:[#allocation8 + $0x220] sm:$0xff]
    %v346 = vld [vmem:[#allocation8 + $0x228] sm:$0xff]
    %v347 = vld [vmem:[#allocation8 + $0x230] sm:$0xff]
    %v348 = vld [vmem:[#allocation8 + $0x238] sm:$0xff]
    %v349 = vld [vmem:[#allocation8 + $0x240] sm:$0xff]
    %v350 = vld [vmem:[#allocation8 + $0x248] sm:$0xff]
    %v351 = vld [vmem:[#allocation8 + $0x250] sm:$0xff]
    %v352 = vld [vmem:[#allocation8 + $0x258] sm:$0xff]
    %v353 = vld [vmem:[#allocation8 + $0x260] sm:$0xff]
    %v354 = vld [vmem:[#allocation8 + $0x268] sm:$0xff]
    %v355 = vld [vmem:[#allocation8 + $0x270] sm:$0xff]
    %v356 = vld [vmem:[#allocation8 + $0x278] sm:$0xff]
    %v357 = vld [vmem:[#allocation8 + $0x280] sm:$0xff]
    %v358 = vld [vmem:[#allocation8 + $0x288] sm:$0xff]
    %v359 = vld [vmem:[#allocation8 + $0x290] sm:$0xff]
    %v360 = vld [vmem:[#allocation8 + $0x298] sm:$0xff]
    %v361 = vld [vmem:[#allocation8 + $0x2a0] sm:$0xff]
    %v362 = vld [vmem:[#allocation8 + $0x2a8] sm:$0xff]
    %v363 = vld [vmem:[#allocation8 + $0x2b0] sm:$0xff]
    %v364 = vld [vmem:[#allocation8 + $0x2b8] sm:$0xff]
    %v365 = vld [vmem:[#allocation8 + $0x2c0] sm:$0xff]
    %v366 = vld [vmem:[#allocation8 + $0x2c8] sm:$0xff]
    %v367 = vld [vmem:[#allocation8 + $0x2d0] sm:$0xff]
    %v368 = vld [vmem:[#allocation8 + $0x2d8] sm:$0xff]
    %v369 = vld [vmem:[#allocation8 + $0x2e0] sm:$0xff]
    %v370 = vld [vmem:[#allocation8 + $0x2e8] sm:$0xff]
    %v371 = vld [vmem:[#allocation8 + $0x2f0] sm:$0xff]
    %v372 = vld [vmem:[#allocation8 + $0x2f8] sm:$0xff]
    %v373 = vld [vmem:[#allocation8 + $0x300] sm:$0xff]
    %v374 = vld [vmem:[#allocation8 + $0x308] sm:$0xff]
    %v375 = vld [vmem:[#allocation8 + $0x310] sm:$0xff]
    %v376 = vld [vmem:[#allocation8 + $0x318] sm:$0xff]
    %v377 = vld [vmem:[#allocation8 + $0x320] sm:$0xff]
    %v378 = vld [vmem:[#allocation8 + $0x328] sm:$0xff]
    %v379 = vld [vmem:[#allocation8 + $0x330] sm:$0xff]
    %v380 = vld [vmem:[#allocation8 + $0x338] sm:$0xff]
    %v381 = vld [vmem:[#allocation8 + $0x340] sm:$0xff]
    %v382 = vld [vmem:[#allocation8 + $0x348] sm:$0xff]
    %v383 = vld [vmem:[#allocation8 + $0x350] sm:$0xff]
    %v384 = vld [vmem:[#allocation8 + $0x358] sm:$0xff]
    %v385 = vld [vmem:[#allocation8 + $0x360] sm:$0xff]
    %v386 = vld [vmem:[#allocation8 + $0x368] sm:$0xff]
    %v387 = vld [vmem:[#allocation8 + $0x370] sm:$0xff]
    %v388 = vld [vmem:[#allocation8 + $0x378] sm:$0xff]
    %v389 = vld [vmem:[#allocation8 + $0x380] sm:$0xff]
    %v390 = vld [vmem:[#allocation8 + $0x388] sm:$0xff]
    %v391 = vld [vmem:[#allocation8 + $0x390] sm:$0xff]
    %v392 = vld [vmem:[#allocation8 + $0x398] sm:$0xff]
    %v393 = vld [vmem:[#allocation8 + $0x3a0] sm:$0xff]
    %v394 = vld [vmem:[#allocation8 + $0x3a8] sm:$0xff]
    %v395 = vld [vmem:[#allocation8 + $0x3b0] sm:$0xff]
    %v396 = vld [vmem:[#allocation8 + $0x3b8] sm:$0xff]
    %v397 = vld [vmem:[#allocation8 + $0x3c0] sm:$0xff]
    %v398 = vld [vmem:[#allocation8 + $0x3c8] sm:$0xff]
    %v399 = vld [vmem:[#allocation8 + $0x3d0] sm:$0xff]
    %v400 = vld [vmem:[#allocation8 + $0x3d8] sm:$0xff]
    %v401 = vld [vmem:[#allocation8 + $0x3e0] sm:$0xff]
    %v402 = vld [vmem:[#allocation8 + $0x3e8] sm:$0xff]
    %v403 = vld [vmem:[#allocation8 + $0x3f0] sm:$0xff]
    %v404 = vld [vmem:[#allocation8 + $0x3f8] sm:$0xff]
    %v405 = vld [vmem:[#allocation8 + $0x400] sm:$0xff]
    %v406 = vld [vmem:[#allocation8 + $0x408] sm:$0xff]
    %v407 = vld [vmem:[#allocation8 + $0x410] sm:$0xff]
    %v408 = vld [vmem:[#allocation8 + $0x418] sm:$0xff]
    %v409 = vld [vmem:[#allocation8 + $0x420] sm:$0xff]
    %v410 = vld [vmem:[#allocation8 + $0x428] sm:$0xff]
    %v411 = vld [vmem:[#allocation8 + $0x430] sm:$0xff]
    %v412 = vld [vmem:[#allocation8 + $0x438] sm:$0xff]
    %v413 = vld [vmem:[#allocation8 + $0x440] sm:$0xff]
    %v414 = vld [vmem:[#allocation8 + $0x448] sm:$0xff]
    %v415 = vld [vmem:[#allocation8 + $0x450] sm:$0xff]
    %v416 = vld [vmem:[#allocation8 + $0x458] sm:$0xff]
    %v417 = vld [vmem:[#allocation8 + $0x460] sm:$0xff]
    %v418 = vld [vmem:[#allocation8 + $0x468] sm:$0xff]
    %v419 = vld [vmem:[#allocation8 + $0x470] sm:$0xff]
    %v420 = vld [vmem:[#allocation8 + $0x478] sm:$0xff]
    %v421 = vld [vmem:[#allocation8 + $0x480] sm:$0xff]
    %v422 = vld [vmem:[#allocation8 + $0x488] sm:$0xff]
    %v423 = vld [vmem:[#allocation8 + $0x490] sm:$0xff]
    %v424 = vld [vmem:[#allocation8 + $0x498] sm:$0xff]
    %v425 = vld [vmem:[#allocation8 + $0x4a0] sm:$0xff]
    %v426 = vld [vmem:[#allocation8 + $0x4a8] sm:$0xff]
    %v427 = vld [vmem:[#allocation8 + $0x4b0] sm:$0xff]
    %v428 = vld [vmem:[#allocation8 + $0x4b8] sm:$0xff]
    %v429 = vld [vmem:[#allocation8 + $0x4c0] sm:$0xff]
    %v430 = vld [vmem:[#allocation8 + $0x4c8] sm:$0xff]
    %v431 = vld [vmem:[#allocation8 + $0x4d0] sm:$0xff]
    %v432 = vld [vmem:[#allocation8 + $0x4d8] sm:$0xff]
    %v433 = vld [vmem:[#allocation8 + $0x4e0] sm:$0xff]
    %v434 = vld [vmem:[#allocation8 + $0x4e8] sm:$0xff]
    %v435 = vld [vmem:[#allocation8 + $0x4f0] sm:$0xff]
    %v436 = vld [vmem:[#allocation8 + $0x4f8] sm:$0xff]
    %v437 = vld [vmem:[#allocation8 + $0x500] sm:$0xff]
    %v438 = vld [vmem:[#allocation8 + $0x508] sm:$0xff]
    %v439 = vld [vmem:[#allocation8 + $0x510] sm:$0xff]
    %v440 = vld [vmem:[#allocation8 + $0x518] sm:$0xff]
    %v441 = vld [vmem:[#allocation8 + $0x520] sm:$0xff]
    %v442 = vld [vmem:[#allocation8 + $0x528] sm:$0xff]
    %v443 = vld [vmem:[#allocation8 + $0x530] sm:$0xff]
    %v444 = vld [vmem:[#allocation8 + $0x538] sm:$0xff]
    %v445 = vld [vmem:[#allocation8 + $0x540] sm:$0xff]
    %v446 = vld [vmem:[#allocation8 + $0x548] sm:$0xff]
    %v447 = vld [vmem:[#allocation8 + $0x550] sm:$0xff]
    %v448 = vld [vmem:[#allocation8 + $0x558] sm:$0xff]
    %v449 = vld [vmem:[#allocation8 + $0x560] sm:$0xff]
    %v450 = vld [vmem:[#allocation8 + $0x568] sm:$0xff]
    %v451 = vld [vmem:[#allocation8 + $0x570] sm:$0xff]
    %v452 = vld [vmem:[#allocation8 + $0x578] sm:$0xff]
    %v453 = vld [vmem:[#allocation8 + $0x580] sm:$0xff]
    %v454 = vld [vmem:[#allocation8 + $0x588] sm:$0xff]
    %v455 = vld [vmem:[#allocation8 + $0x590] sm:$0xff]
    %v456 = vld [vmem:[#allocation8 + $0x598] sm:$0xff]
    %v457 = vld [vmem:[#allocation8 + $0x5a0] sm:$0xff]
    %v458 = vld [vmem:[#allocation8 + $0x5a8] sm:$0xff]
    %v459 = vld [vmem:[#allocation8 + $0x5b0] sm:$0xff]
    %v460 = vld [vmem:[#allocation8 + $0x5b8] sm:$0xff]
    %v461 = vld [vmem:[#allocation8 + $0x5c0] sm:$0xff]
    %v462 = vld [vmem:[#allocation8 + $0x5c8] sm:$0xff]
    %v463 = vld [vmem:[#allocation8 + $0x5d0] sm:$0xff]
    %v464 = vld [vmem:[#allocation8 + $0x5d8] sm:$0xff]
    %v465 = vld [vmem:[#allocation8 + $0x5e0] sm:$0xff]
    %v466 = vld [vmem:[#allocation8 + $0x5e8] sm:$0xff]
    %v467 = vld [vmem:[#allocation8 + $0x5f0] sm:$0xff]
    %v468 = vld [vmem:[#allocation8 + $0x5f8] sm:$0xff]
    %v469 = vld [vmem:[#allocation8 + $0x600] sm:$0xff]
    %v470 = vld [vmem:[#allocation8 + $0x608] sm:$0xff]
    %v471 = vld [vmem:[#allocation8 + $0x610] sm:$0xff]
    %v472 = vld [vmem:[#allocation8 + $0x618] sm:$0xff]
    %v473 = vld [vmem:[#allocation8 + $0x620] sm:$0xff]
    %v474 = vld [vmem:[#allocation8 + $0x628] sm:$0xff]
    %v475 = vld [vmem:[#allocation8 + $0x630] sm:$0xff]
    %v476 = vld [vmem:[#allocation8 + $0x638] sm:$0xff]
    %v477 = vld [vmem:[#allocation8 + $0x640] sm:$0xff]
    %v478 = vld [vmem:[#allocation8 + $0x648] sm:$0xff]
    %v479 = vld [vmem:[#allocation8 + $0x650] sm:$0xff]
    %v480 = vld [vmem:[#allocation8 + $0x658] sm:$0xff]
    %v481 = vld [vmem:[#allocation8 + $0x660] sm:$0xff]
    %v482 = vld [vmem:[#allocation8 + $0x668] sm:$0xff]
    %v483 = vld [vmem:[#allocation8 + $0x670] sm:$0xff]
    %v484 = vld [vmem:[#allocation8 + $0x678] sm:$0xff]
    %v485 = vld [vmem:[#allocation8 + $0x680] sm:$0xff]
    %v486 = vld [vmem:[#allocation8 + $0x688] sm:$0xff]
    %v487 = vld [vmem:[#allocation8 + $0x690] sm:$0xff]
    %v488 = vld [vmem:[#allocation8 + $0x698] sm:$0xff]
    %v489 = vld [vmem:[#allocation8 + $0x6a0] sm:$0xff]
    %v490 = vld [vmem:[#allocation8 + $0x6a8] sm:$0xff]
    %v491 = vld [vmem:[#allocation8 + $0x6b0] sm:$0xff]
    %v492 = vld [vmem:[#allocation8 + $0x6b8] sm:$0xff]
    %v493 = vld [vmem:[#allocation8 + $0x6c0] sm:$0xff]
    %v494 = vld [vmem:[#allocation8 + $0x6c8] sm:$0xff]
    %v495 = vld [vmem:[#allocation8 + $0x6d0] sm:$0xff]
    %v496 = vld [vmem:[#allocation8 + $0x6d8] sm:$0xff]
    %v497 = vld [vmem:[#allocation8 + $0x6e0] sm:$0xff]
    %v498 = vld [vmem:[#allocation8 + $0x6e8] sm:$0xff]
    %v499 = vld [vmem:[#allocation8 + $0x6f0] sm:$0xff]
    %v500 = vld [vmem:[#allocation8 + $0x6f8] sm:$0xff]
    %v501 = vld [vmem:[#allocation8 + $0x700] sm:$0xff]
    %v502 = vld [vmem:[#allocation8 + $0x708] sm:$0xff]
    %v503 = vld [vmem:[#allocation8 + $0x710] sm:$0xff]
    %v504 = vld [vmem:[#allocation8 + $0x718] sm:$0xff]
    %v505 = vld [vmem:[#allocation8 + $0x720] sm:$0xff]
    %v506 = vld [vmem:[#allocation8 + $0x728] sm:$0xff]
    %v507 = vld [vmem:[#allocation8 + $0x730] sm:$0xff]
    %v508 = vld [vmem:[#allocation8 + $0x738] sm:$0xff]
    %v509 = vld [vmem:[#allocation8 + $0x740] sm:$0xff]
    %v510 = vld [vmem:[#allocation8 + $0x748] sm:$0xff]
    %v511 = vld [vmem:[#allocation8 + $0x750] sm:$0xff]
    %v512 = vld [vmem:[#allocation8 + $0x758] sm:$0xff]
    %v513 = vld [vmem:[#allocation8 + $0x760] sm:$0xff]
    %v514 = vld [vmem:[#allocation8 + $0x768] sm:$0xff]
    %v515 = vld [vmem:[#allocation8 + $0x770] sm:$0xff]
    %v516 = vld [vmem:[#allocation8 + $0x778] sm:$0xff]
    %v517 = vld [vmem:[#allocation8 + $0x780] sm:$0xff]
    %v518 = vld [vmem:[#allocation8 + $0x788] sm:$0xff]
    %v519 = vld [vmem:[#allocation8 + $0x790] sm:$0xff]
    %v520 = vld [vmem:[#allocation8 + $0x798] sm:$0xff]
    %v521 = vld [vmem:[#allocation8 + $0x7a0] sm:$0xff]
    %v522 = vld [vmem:[#allocation8 + $0x7a8] sm:$0xff]
    %v523 = vld [vmem:[#allocation8 + $0x7b0] sm:$0xff]
    %v524 = vld [vmem:[#allocation8 + $0x7b8] sm:$0xff]
    %v525 = vld [vmem:[#allocation8 + $0x7c0] sm:$0xff]
    %v526 = vld [vmem:[#allocation8 + $0x7c8] sm:$0xff]
    %v527 = vld [vmem:[#allocation8 + $0x7d0] sm:$0xff]
    %v528 = vld [vmem:[#allocation8 + $0x7d8] sm:$0xff]
    %v529 = vld [vmem:[#allocation8 + $0x7e0] sm:$0xff]
    %v530 = vld [vmem:[#allocation8 + $0x7e8] sm:$0xff]
    %v531 = vld [vmem:[#allocation8 + $0x7f0] sm:$0xff]
    %v532 = vld [vmem:[#allocation8 + $0x7f8] sm:$0xff]
    %v533 = vld [vmem:[#allocation8 + $0x800] sm:$0xff]
    %v534 = vld [vmem:[#allocation8 + $0x808] sm:$0xff]
    %v535 = vld [vmem:[#allocation8 + $0x810] sm:$0xff]
    %v536 = vld [vmem:[#allocation8 + $0x818] sm:$0xff]
    %v537 = vld [vmem:[#allocation8 + $0x820] sm:$0xff]
    %v538 = vld [vmem:[#allocation8 + $0x828] sm:$0xff]
    %v539 = vld [vmem:[#allocation8 + $0x830] sm:$0xff]
    %v540 = vld [vmem:[#allocation8 + $0x838] sm:$0xff]
    %v541 = vld [vmem:[#allocation8 + $0x840] sm:$0xff]
    %v542 = vld [vmem:[#allocation8 + $0x848] sm:$0xff]
    %v543 = vld [vmem:[#allocation8 + $0x850] sm:$0xff]
    %v544 = vld [vmem:[#allocation8 + $0x858] sm:$0xff]
    %v545 = vld [vmem:[#allocation8 + $0x860] sm:$0xff]
    %v546 = vld [vmem:[#allocation8 + $0x868] sm:$0xff]
    %v547 = vld [vmem:[#allocation8 + $0x870] sm:$0xff]
    %v548 = vld [vmem:[#allocation8 + $0x878] sm:$0xff]
    %v549 = vld [vmem:[#allocation8 + $0x880] sm:$0xff]
    %v550 = vld [vmem:[#allocation8 + $0x888] sm:$0xff]
    %v551 = vld [vmem:[#allocation8 + $0x890] sm:$0xff]
    %v552 = vld [vmem:[#allocation8 + $0x898] sm:$0xff]
    %v553 = vld [vmem:[#allocation8 + $0x8a0] sm:$0xff]
    %v554 = vld [vmem:[#allocation8 + $0x8a8] sm:$0xff]
    %v555 = vld [vmem:[#allocation8 + $0x8b0] sm:$0xff]
    %v556 = vld [vmem:[#allocation8 + $0x8b8] sm:$0xff]
    %v557 = vld [vmem:[#allocation8 + $0x8c0] sm:$0xff]
    %v558 = vld [vmem:[#allocation8 + $0x8c8] sm:$0xff]
    %v559 = vld [vmem:[#allocation8 + $0x8d0] sm:$0xff]
    %v560 = vld [vmem:[#allocation8 + $0x8d8] sm:$0xff]
    %v561 = vld [vmem:[#allocation8 + $0x8e0] sm:$0xff]
    %v562 = vld [vmem:[#allocation8 + $0x8e8] sm:$0xff]
    %v563 = vld [vmem:[#allocation8 + $0x8f0] sm:$0xff]
    %v564 = vld [vmem:[#allocation8 + $0x8f8] sm:$0xff]
    %v565 = vld [vmem:[#allocation8 + $0x900] sm:$0xff]
    %v566 = vld [vmem:[#allocation8 + $0x908] sm:$0xff]
    %v567 = vld [vmem:[#allocation8 + $0x910] sm:$0xff]
    %v568 = vld [vmem:[#allocation8 + $0x918] sm:$0xff]
    %v569 = vld [vmem:[#allocation8 + $0x920] sm:$0xff]
    %v570 = vld [vmem:[#allocation8 + $0x928] sm:$0xff]
    %v571 = vld [vmem:[#allocation8 + $0x930] sm:$0xff]
    %v572 = vld [vmem:[#allocation8 + $0x938] sm:$0xff]
    %v573 = vld [vmem:[#allocation8 + $0x940] sm:$0xff]
    %v574 = vld [vmem:[#allocation8 + $0x948] sm:$0xff]
    %v575 = vld [vmem:[#allocation8 + $0x950] sm:$0xff]
    %v576 = vld [vmem:[#allocation8 + $0x958] sm:$0xff]
    %v577 = vld [vmem:[#allocation8 + $0x960] sm:$0xff]
    %v578 = vld [vmem:[#allocation8 + $0x968] sm:$0xff]
    %v579 = vld [vmem:[#allocation8 + $0x970] sm:$0xff]
    %v580 = vld [vmem:[#allocation8 + $0x978] sm:$0xff]
    %v581 = vld [vmem:[#allocation8 + $0x980] sm:$0xff]
    %v582 = vld [vmem:[#allocation8 + $0x988] sm:$0xff]
    %v583 = vld [vmem:[#allocation8 + $0x990] sm:$0xff]
    %v584 = vld [vmem:[#allocation8 + $0x998] sm:$0xff]
    %v585 = vld [vmem:[#allocation8 + $0x9a0] sm:$0xff]
    %v586 = vld [vmem:[#allocation8 + $0x9a8] sm:$0xff]
    %v587 = vld [vmem:[#allocation8 + $0x9b0] sm:$0xff]
    %v588 = vld [vmem:[#allocation8 + $0x9b8] sm:$0xff]
    %v589 = vld [vmem:[#allocation8 + $0x9c0] sm:$0xff]
    %v590 = vld [vmem:[#allocation8 + $0x9c8] sm:$0xff]
    %v591 = vld [vmem:[#allocation8 + $0x9d0] sm:$0xff]
    %v592 = vld [vmem:[#allocation8 + $0x9d8] sm:$0xff]
    %v593 = vld [vmem:[#allocation8 + $0x9e0] sm:$0xff]
    %v594 = vld [vmem:[#allocation8 + $0x9e8] sm:$0xff]
    %v595 = vld [vmem:[#allocation8 + $0x9f0] sm:$0xff]
    %v596 = vld [vmem:[#allocation8 + $0x9f8] sm:$0xff]
    %v597 = vld [vmem:[#allocation8 + $0xa00] sm:$0xff]
    %v598 = vld [vmem:[#allocation8 + $0xa08] sm:$0xff]
    %v599 = vld [vmem:[#allocation8 + $0xa10] sm:$0xff]
    %v600 = vld [vmem:[#allocation8 + $0xa18] sm:$0xff]
    %v601 = vld [vmem:[#allocation8 + $0xa20] sm:$0xff]
    %v602 = vld [vmem:[#allocation8 + $0xa28] sm:$0xff]
    %v603 = vld [vmem:[#allocation8 + $0xa30] sm:$0xff]
    %v604 = vld [vmem:[#allocation8 + $0xa38] sm:$0xff]
    %v605 = vld [vmem:[#allocation8 + $0xa40] sm:$0xff]
    %v606 = vld [vmem:[#allocation8 + $0xa48] sm:$0xff]
    %v607 = vld [vmem:[#allocation8 + $0xa50] sm:$0xff]
    %v608 = vld [vmem:[#allocation8 + $0xa58] sm:$0xff]
    %v609 = vld [vmem:[#allocation8 + $0xa60] sm:$0xff]
    %v610 = vld [vmem:[#allocation8 + $0xa68] sm:$0xff]
    %v611 = vld [vmem:[#allocation8 + $0xa70] sm:$0xff]
    %v612 = vld [vmem:[#allocation8 + $0xa78] sm:$0xff]
    %v613 = vld [vmem:[#allocation8 + $0xa80] sm:$0xff]
    %v614 = vld [vmem:[#allocation8 + $0xa88] sm:$0xff]
    %v615 = vld [vmem:[#allocation8 + $0xa90] sm:$0xff]
    %v616 = vld [vmem:[#allocation8 + $0xa98] sm:$0xff]
    %v617 = vld [vmem:[#allocation8 + $0xaa0] sm:$0xff]
    %v618 = vld [vmem:[#allocation8 + $0xaa8] sm:$0xff]
    %v619 = vld [vmem:[#allocation8 + $0xab0] sm:$0xff]
    %v620 = vld [vmem:[#allocation8 + $0xab8] sm:$0xff]
    %v621 = vld [vmem:[#allocation8 + $0xac0] sm:$0xff]
    %v622 = vld [vmem:[#allocation8 + $0xac8] sm:$0xff]
    %v623 = vld [vmem:[#allocation8 + $0xad0] sm:$0xff]
    %v624 = vld [vmem:[#allocation8 + $0xad8] sm:$0xff]
    %v625 = vld [vmem:[#allocation8 + $0xae0] sm:$0xff]
    %v626 = vld [vmem:[#allocation8 + $0xae8] sm:$0xff]
    %v627 = vld [vmem:[#allocation8 + $0xaf0] sm:$0xff]
    %v628 = vld [vmem:[#allocation8 + $0xaf8] sm:$0xff]
    %v629 = vld [vmem:[#allocation8 + $0xb00] sm:$0xff]
    %v630 = vld [vmem:[#allocation8 + $0xb08] sm:$0xff]
    %v631 = vld [vmem:[#allocation8 + $0xb10] sm:$0xff]
    %v632 = vld [vmem:[#allocation8 + $0xb18] sm:$0xff]
    %v633 = vld [vmem:[#allocation8 + $0xb20] sm:$0xff]
    %v634 = vld [vmem:[#allocation8 + $0xb28] sm:$0xff]
    %v635 = vld [vmem:[#allocation8 + $0xb30] sm:$0xff]
    %v636 = vld [vmem:[#allocation8 + $0xb38] sm:$0xff]
    %v637 = vld [vmem:[#allocation8 + $0xb40] sm:$0xff]
    %v638 = vld [vmem:[#allocation8 + $0xb48] sm:$0xff]
    %v639 = vld [vmem:[#allocation8 + $0xb50] sm:$0xff]
    %v640 = vld [vmem:[#allocation8 + $0xb58] sm:$0xff]
    %v641 = vld [vmem:[#allocation8 + $0xb60] sm:$0xff]
    %v642 = vld [vmem:[#allocation8 + $0xb68] sm:$0xff]
    %v643 = vld [vmem:[#allocation8 + $0xb70] sm:$0xff]
    %v644 = vld [vmem:[#allocation8 + $0xb78] sm:$0xff]
    %v645 = vld [vmem:[#allocation8 + $0xb80] sm:$0xff]
    %v646 = vld [vmem:[#allocation8 + $0xb88] sm:$0xff]
    %v647 = vld [vmem:[#allocation8 + $0xb90] sm:$0xff]
    %v648 = vld [vmem:[#allocation8 + $0xb98] sm:$0xff]
    %v649 = vld [vmem:[#allocation8 + $0xba0] sm:$0xff]
    %v650 = vld [vmem:[#allocation8 + $0xba8] sm:$0xff]
    %v651 = vld [vmem:[#allocation8 + $0xbb0] sm:$0xff]
    %v652 = vld [vmem:[#allocation8 + $0xbb8] sm:$0xff]
    %v653 = vld [vmem:[#allocation8 + $0xbc0] sm:$0xff]
    %v654 = vld [vmem:[#allocation8 + $0xbc8] sm:$0xff]
    %v655 = vld [vmem:[#allocation8 + $0xbd0] sm:$0xff]
    %v656 = vld [vmem:[#allocation8 + $0xbd8] sm:$0xff]
    %v657 = vld [vmem:[#allocation8 + $0xbe0] sm:$0xff]
    %v658 = vld [vmem:[#allocation8 + $0xbe8] sm:$0xff]
    %v659 = vld [vmem:[#allocation8 + $0xbf0] sm:$0xff]
    %v660 = vld [vmem:[#allocation8 + $0xbf8] sm:$0xff]
    %v661 = vld [vmem:[#allocation8 + $0xc00] sm:$0xff]
    %v662 = vld [vmem:[#allocation8 + $0xc08] sm:$0xff]
    %v663 = vld [vmem:[#allocation8 + $0xc10] sm:$0xff]
    %v664 = vld [vmem:[#allocation8 + $0xc18] sm:$0xff]
    %v665 = vld [vmem:[#allocation8 + $0xc20] sm:$0xff]
    %v666 = vld [vmem:[#allocation8 + $0xc28] sm:$0xff]
    %v667 = vld [vmem:[#allocation8 + $0xc30] sm:$0xff]
    %v668 = vld [vmem:[#allocation8 + $0xc38] sm:$0xff]
    %v669 = vld [vmem:[#allocation8 + $0xc40] sm:$0xff]
    %v670 = vld [vmem:[#allocation8 + $0xc48] sm:$0xff]
    %v671 = vld [vmem:[#allocation8 + $0xc50] sm:$0xff]
    %v672 = vld [vmem:[#allocation8 + $0xc58] sm:$0xff]
    %v673 = vld [vmem:[#allocation8 + $0xc60] sm:$0xff]
    %v674 = vld [vmem:[#allocation8 + $0xc68] sm:$0xff]
    %v675 = vld [vmem:[#allocation8 + $0xc70] sm:$0xff]
    %v676 = vld [vmem:[#allocation8 + $0xc78] sm:$0xff]
    %v677 = vld [vmem:[#allocation8 + $0xc80] sm:$0xff]
    %v678 = vld [vmem:[#allocation8 + $0xc88] sm:$0xff]
    %v679 = vld [vmem:[#allocation8 + $0xc90] sm:$0xff]
    %v680 = vld [vmem:[#allocation8 + $0xc98] sm:$0xff]
    %v681 = vld [vmem:[#allocation8 + $0xca0] sm:$0xff]
    %v682 = vld [vmem:[#allocation8 + $0xca8] sm:$0xff]
    %v683 = vld [vmem:[#allocation8 + $0xcb0] sm:$0xff]
    %v684 = vld [vmem:[#allocation8 + $0xcb8] sm:$0xff]
    %v685 = vld [vmem:[#allocation8 + $0xcc0] sm:$0xff]
    %v686 = vld [vmem:[#allocation8 + $0xcc8] sm:$0xff]
    %v687 = vld [vmem:[#allocation8 + $0xcd0] sm:$0xff]
    %v688 = vld [vmem:[#allocation8 + $0xcd8] sm:$0xff]
    %v689 = vld [vmem:[#allocation8 + $0xce0] sm:$0xff]
    %v690 = vld [vmem:[#allocation8 + $0xce8] sm:$0xff]
    %v691 = vld [vmem:[#allocation8 + $0xcf0] sm:$0xff]
    %v692 = vld [vmem:[#allocation8 + $0xcf8] sm:$0xff]
    %v693 = vld [vmem:[#allocation8 + $0xd00] sm:$0xff]
    %v694 = vld [vmem:[#allocation8 + $0xd08] sm:$0xff]
    %v695 = vld [vmem:[#allocation8 + $0xd10] sm:$0xff]
    %v696 = vld [vmem:[#allocation8 + $0xd18] sm:$0xff]
    %v697 = vld [vmem:[#allocation8 + $0xd20] sm:$0xff]
    %v698 = vld [vmem:[#allocation8 + $0xd28] sm:$0xff]
    %v699 = vld [vmem:[#allocation8 + $0xd30] sm:$0xff]
    %v700 = vld [vmem:[#allocation8 + $0xd38] sm:$0xff]
    %v701 = vld [vmem:[#allocation8 + $0xd40] sm:$0xff]
    %v702 = vld [vmem:[#allocation8 + $0xd48] sm:$0xff]
    %v703 = vld [vmem:[#allocation8 + $0xd50] sm:$0xff]
    %v704 = vld [vmem:[#allocation8 + $0xd58] sm:$0xff]
    %v705 = vld [vmem:[#allocation8 + $0xd60] sm:$0xff]
    %v706 = vld [vmem:[#allocation8 + $0xd68] sm:$0xff]
    %v707 = vld [vmem:[#allocation8 + $0xd70] sm:$0xff]
    %v708 = vld [vmem:[#allocation8 + $0xd78] sm:$0xff]
    %v709 = vld [vmem:[#allocation8 + $0xd80] sm:$0xff]
    %v710 = vld [vmem:[#allocation8 + $0xd88] sm:$0xff]
    %v711 = vld [vmem:[#allocation8 + $0xd90] sm:$0xff]
    %v712 = vld [vmem:[#allocation8 + $0xd98] sm:$0xff]
    %v713 = vld [vmem:[#allocation8 + $0xda0] sm:$0xff]
    %v714 = vld [vmem:[#allocation8 + $0xda8] sm:$0xff]
    %v715 = vld [vmem:[#allocation8 + $0xdb0] sm:$0xff]
    %v716 = vld [vmem:[#allocation8 + $0xdb8] sm:$0xff]
    %v717 = vld [vmem:[#allocation8 + $0xdc0] sm:$0xff]
    %v718 = vld [vmem:[#allocation8 + $0xdc8] sm:$0xff]
    %v719 = vld [vmem:[#allocation8 + $0xdd0] sm:$0xff]
    %v720 = vld [vmem:[#allocation8 + $0xdd8] sm:$0xff]
    %v721 = vld [vmem:[#allocation8 + $0xde0] sm:$0xff]
    %v722 = vld [vmem:[#allocation8 + $0xde8] sm:$0xff]
    %v723 = vld [vmem:[#allocation8 + $0xdf0] sm:$0xff]
    %v724 = vld [vmem:[#allocation8 + $0xdf8] sm:$0xff]
    %v725 = vld [vmem:[#allocation10] sm:$0xff]
    %v727 = vlaneseq
    %v728 = vshrl.u32 %v727, 7
    %v729 = vsub.s32 0, %v728
    %v730 = vrot.slane %v725, %v729
    %v731 = vlaneseq
    %v732 = vshrl.u32 %v731, 7
    %v733 = vsub.s32 1, %v732
    %v734 = vrot.slane %v725, %v733
    %v735 = vlaneseq
    %v736 = vshrl.u32 %v735, 7
    %v737 = vsub.s32 2, %v736
    %v738 = vrot.slane %v725, %v737
    %v739 = vlaneseq
    %v740 = vshrl.u32 %v739, 7
    %v741 = vsub.s32 3, %v740
    %v742 = vrot.slane %v725, %v741
    %v743 = vlaneseq
    %v744 = vshrl.u32 %v743, 7
    %v745 = vsub.s32 4, %v744
    %v746 = vrot.slane %v725, %v745
    %v747 = vlaneseq
    %v748 = vshrl.u32 %v747, 7
    %v749 = vsub.s32 5, %v748
    %v750 = vrot.slane %v725, %v749
    %v751 = vlaneseq
    %v752 = vshrl.u32 %v751, 7
    %v753 = vsub.s32 6, %v752
    %v754 = vrot.slane %v725, %v753
    %v755 = vlaneseq
    %v756 = vshrl.u32 %v755, 7
    %v757 = vsub.s32 7, %v756
    %v758 = vrot.slane %v725, %v757
    %v771 = vunpack.c.l.b16 %v273
    %v772 = vunpack.c.h.b16 %v273
    %v773 = vunpack.c.l.b16 %v274
    %v774 = vunpack.c.h.b16 %v274
    %v775 = vunpack.c.l.b16 %v275
    %v776 = vunpack.c.h.b16 %v275
    %v777 = vunpack.c.l.b16 %v276
    %v778 = vpack.c.b16 %v771, %v771
    %v779 = vpack.c.b16 %v772, %v772
    %v780 = vpack.c.b16 %v773, %v773
    %v781 = vpack.c.b16 %v774, %v774
    %v782 = vpack.c.b16 %v775, %v775
    %v783 = vpack.c.b16 %v776, %v776
    %v784 = vpack.c.b16 %v777, %v777
    %v1240 = vunpack.c.l.b16 %v277
    %v1241 = vunpack.c.h.b16 %v277
    %v1242 = vunpack.c.l.b16 %v278
    %v1243 = vunpack.c.h.b16 %v278
    %v1244 = vunpack.c.l.b16 %v279
    %v1245 = vunpack.c.h.b16 %v279
    %v1246 = vunpack.c.l.b16 %v280
    %v1247 = vunpack.c.h.b16 %v280
    %v1248 = vunpack.c.l.b16 %v281
    %v1249 = vunpack.c.h.b16 %v281
    %v1250 = vunpack.c.l.b16 %v282
    %v1251 = vunpack.c.h.b16 %v282
    %v1252 = vunpack.c.l.b16 %v283
    %v1253 = vunpack.c.h.b16 %v283
    %v1254 = vunpack.c.l.b16 %v284
    %v1255 = vunpack.c.h.b16 %v284
    %v1256 = vunpack.c.l.b16 %v285
    %v1257 = vunpack.c.h.b16 %v285
    %v1258 = vunpack.c.l.b16 %v286
    %v1259 = vunpack.c.h.b16 %v286
    %v1260 = vunpack.c.l.b16 %v287
    %v1261 = vunpack.c.h.b16 %v287
    %v1262 = vunpack.c.l.b16 %v288
    %v1263 = vunpack.c.h.b16 %v288
    %v1264 = vunpack.c.l.b16 %v289
    %v1265 = vunpack.c.h.b16 %v289
    %v1266 = vunpack.c.l.b16 %v290
    %v1267 = vunpack.c.h.b16 %v290
    %v1268 = vunpack.c.l.b16 %v291
    %v1269 = vunpack.c.h.b16 %v291
    %v1270 = vunpack.c.l.b16 %v292
    %v1271 = vunpack.c.h.b16 %v292
    %v1272 = vunpack.c.l.b16 %v293
    %v1273 = vunpack.c.h.b16 %v293
    %v1274 = vunpack.c.l.b16 %v294
    %v1275 = vunpack.c.h.b16 %v294
    %v1276 = vunpack.c.l.b16 %v295
    %v1277 = vunpack.c.h.b16 %v295
    %v1278 = vunpack.c.l.b16 %v296
    %v1279 = vunpack.c.h.b16 %v296
    %v1280 = vunpack.c.l.b16 %v297
    %v1281 = vunpack.c.h.b16 %v297
    %v1282 = vunpack.c.l.b16 %v298
    %v1283 = vunpack.c.h.b16 %v298
    %v1284 = vunpack.c.l.b16 %v299
    %v1285 = vunpack.c.h.b16 %v299
    %v1286 = vunpack.c.l.b16 %v300
    %v1287 = vunpack.c.h.b16 %v300
    %v1288 = vunpack.c.l.b16 %v301
    %v1289 = vunpack.c.h.b16 %v301
    %v1290 = vunpack.c.l.b16 %v302
    %v1291 = vunpack.c.h.b16 %v302
    %v1292 = vunpack.c.l.b16 %v303
    %v1293 = vunpack.c.h.b16 %v303
    %v1294 = vunpack.c.l.b16 %v304
    %v1295 = vunpack.c.h.b16 %v304
    %v1296 = vunpack.c.l.b16 %v305
    %v1297 = vunpack.c.h.b16 %v305
    %v1298 = vunpack.c.l.b16 %v306
    %v1299 = vunpack.c.h.b16 %v306
    %v1300 = vunpack.c.l.b16 %v307
    %v1301 = vunpack.c.h.b16 %v307
    %v1302 = vunpack.c.l.b16 %v308
    %v1303 = vunpack.c.h.b16 %v308
    %v1304 = vunpack.c.l.b16 %v309
    %v1305 = vunpack.c.h.b16 %v309
    %v1306 = vunpack.c.l.b16 %v310
    %v1307 = vunpack.c.h.b16 %v310
    %v1308 = vunpack.c.l.b16 %v311
    %v1309 = vunpack.c.h.b16 %v311
    %v1310 = vunpack.c.l.b16 %v312
    %v1311 = vunpack.c.h.b16 %v312
    %v1312 = vunpack.c.l.b16 %v313
    %v1313 = vunpack.c.h.b16 %v313
    %v1314 = vunpack.c.l.b16 %v314
    %v1315 = vunpack.c.h.b16 %v314
    %v1316 = vunpack.c.l.b16 %v315
    %v1317 = vunpack.c.h.b16 %v315
    %v1318 = vunpack.c.l.b16 %v316
    %v1319 = vunpack.c.h.b16 %v316
    %v1320 = vunpack.c.l.b16 %v317
    %v1321 = vunpack.c.h.b16 %v317
    %v1322 = vunpack.c.l.b16 %v318
    %v1323 = vunpack.c.h.b16 %v318
    %v1324 = vunpack.c.l.b16 %v319
    %v1325 = vunpack.c.h.b16 %v319
    %v1326 = vunpack.c.l.b16 %v320
    %v1327 = vunpack.c.h.b16 %v320
    %v1328 = vunpack.c.l.b16 %v321
    %v1329 = vunpack.c.h.b16 %v321
    %v1330 = vunpack.c.l.b16 %v322
    %v1331 = vunpack.c.h.b16 %v322
    %v1332 = vunpack.c.l.b16 %v323
    %v1333 = vunpack.c.h.b16 %v323
    %v1334 = vunpack.c.l.b16 %v324
    %v1335 = vunpack.c.h.b16 %v324
    %v1336 = vunpack.c.l.b16 %v325
    %v1337 = vunpack.c.h.b16 %v325
    %v1338 = vunpack.c.l.b16 %v326
    %v1339 = vunpack.c.h.b16 %v326
    %v1340 = vunpack.c.l.b16 %v327
    %v1341 = vunpack.c.h.b16 %v327
    %v1342 = vunpack.c.l.b16 %v328
    %v1343 = vunpack.c.h.b16 %v328
    %v1344 = vunpack.c.l.b16 %v329
    %v1345 = vunpack.c.h.b16 %v329
    %v1346 = vunpack.c.l.b16 %v330
    %v1347 = vunpack.c.h.b16 %v330
    %v1348 = vunpack.c.l.b16 %v331
    %v1349 = vunpack.c.h.b16 %v331
    %v1350 = vunpack.c.l.b16 %v332
    %v1351 = vunpack.c.h.b16 %v332
    %v1352 = vunpack.c.l.b16 %v333
    %v1353 = vunpack.c.h.b16 %v333
    %v1354 = vunpack.c.l.b16 %v334
    %v1355 = vunpack.c.h.b16 %v334
    %v1356 = vunpack.c.l.b16 %v335
    %v1357 = vunpack.c.h.b16 %v335
    %v1358 = vunpack.c.l.b16 %v336
    %v1359 = vunpack.c.h.b16 %v336
    %v1360 = vunpack.c.l.b16 %v337
    %v1361 = vunpack.c.h.b16 %v337
    %v1362 = vunpack.c.l.b16 %v338
    %v1363 = vunpack.c.h.b16 %v338
    %v1364 = vunpack.c.l.b16 %v339
    %v1365 = vunpack.c.h.b16 %v339
    %v1366 = vunpack.c.l.b16 %v340
    %v1367 = vunpack.c.h.b16 %v340
    %v1368 = vunpack.c.l.b16 %v341
    %v1369 = vunpack.c.h.b16 %v341
    %v1370 = vunpack.c.l.b16 %v342
    %v1371 = vunpack.c.h.b16 %v342
    %v1372 = vunpack.c.l.b16 %v343
    %v1373 = vunpack.c.h.b16 %v343
    %v1374 = vunpack.c.l.b16 %v344
    %v1375 = vunpack.c.h.b16 %v344
    %v1376 = vunpack.c.l.b16 %v345
    %v1377 = vunpack.c.h.b16 %v345
    %v1378 = vunpack.c.l.b16 %v346
    %v1379 = vunpack.c.h.b16 %v346
    %v1380 = vunpack.c.l.b16 %v347
    %v1381 = vunpack.c.h.b16 %v347
    %v1382 = vunpack.c.l.b16 %v348
    %v1383 = vunpack.c.h.b16 %v348
    %v1384 = vunpack.c.l.b16 %v349
    %v1385 = vunpack.c.h.b16 %v349
    %v1386 = vunpack.c.l.b16 %v350
    %v1387 = vunpack.c.h.b16 %v350
    %v1388 = vunpack.c.l.b16 %v351
    %v1389 = vunpack.c.h.b16 %v351
    %v1390 = vunpack.c.l.b16 %v352
    %v1391 = vunpack.c.h.b16 %v352
    %v1392 = vunpack.c.l.b16 %v353
    %v1393 = vunpack.c.h.b16 %v353
    %v1394 = vunpack.c.l.b16 %v354
    %v1395 = vunpack.c.h.b16 %v354
    %v1396 = vunpack.c.l.b16 %v355
    %v1397 = vunpack.c.h.b16 %v355
    %v1398 = vunpack.c.l.b16 %v356
    %v1399 = vunpack.c.h.b16 %v356
    %v1400 = vunpack.c.l.b16 %v357
    %v1401 = vunpack.c.h.b16 %v357
    %v1402 = vunpack.c.l.b16 %v358
    %v1403 = vunpack.c.h.b16 %v358
    %v1404 = vunpack.c.l.b16 %v359
    %v1405 = vunpack.c.h.b16 %v359
    %v1406 = vunpack.c.l.b16 %v360
    %v1407 = vunpack.c.h.b16 %v360
    %v1408 = vunpack.c.l.b16 %v361
    %v1409 = vunpack.c.h.b16 %v361
    %v1410 = vunpack.c.l.b16 %v362
    %v1411 = vunpack.c.h.b16 %v362
    %v1412 = vunpack.c.l.b16 %v363
    %v1413 = vunpack.c.h.b16 %v363
    %v1414 = vunpack.c.l.b16 %v364
    %v1415 = vunpack.c.h.b16 %v364
    %v1416 = vunpack.c.l.b16 %v365
    %v1417 = vunpack.c.h.b16 %v365
    %v1418 = vunpack.c.l.b16 %v366
    %v1419 = vunpack.c.h.b16 %v366
    %v1420 = vunpack.c.l.b16 %v367
    %v1421 = vunpack.c.h.b16 %v367
    %v1422 = vunpack.c.l.b16 %v368
    %v1423 = vunpack.c.h.b16 %v368
    %v1424 = vunpack.c.l.b16 %v369
    %v1425 = vunpack.c.h.b16 %v369
    %v1426 = vunpack.c.l.b16 %v370
    %v1427 = vunpack.c.h.b16 %v370
    %v1428 = vunpack.c.l.b16 %v371
    %v1429 = vunpack.c.h.b16 %v371
    %v1430 = vunpack.c.l.b16 %v372
    %v1431 = vunpack.c.h.b16 %v372
    %v1432 = vunpack.c.l.b16 %v373
    %v1433 = vunpack.c.h.b16 %v373
    %v1434 = vunpack.c.l.b16 %v374
    %v1435 = vunpack.c.h.b16 %v374
    %v1436 = vunpack.c.l.b16 %v375
    %v1437 = vunpack.c.h.b16 %v375
    %v1438 = vunpack.c.l.b16 %v376
    %v1439 = vunpack.c.h.b16 %v376
    %v1440 = vunpack.c.l.b16 %v377
    %v1441 = vunpack.c.h.b16 %v377
    %v1442 = vunpack.c.l.b16 %v378
    %v1443 = vunpack.c.h.b16 %v378
    %v1444 = vunpack.c.l.b16 %v379
    %v1445 = vunpack.c.h.b16 %v379
    %v1446 = vunpack.c.l.b16 %v380
    %v1447 = vunpack.c.h.b16 %v380
    %v1448 = vunpack.c.l.b16 %v381
    %v1449 = vunpack.c.h.b16 %v381
    %v1450 = vunpack.c.l.b16 %v382
    %v1451 = vunpack.c.h.b16 %v382
    %v1452 = vunpack.c.l.b16 %v383
    %v1453 = vunpack.c.h.b16 %v383
    %v1454 = vunpack.c.l.b16 %v384
    %v1455 = vunpack.c.h.b16 %v384
    %v1456 = vunpack.c.l.b16 %v385
    %v1457 = vunpack.c.h.b16 %v385
    %v1458 = vunpack.c.l.b16 %v386
    %v1459 = vunpack.c.h.b16 %v386
    %v1460 = vunpack.c.l.b16 %v387
    %v1461 = vunpack.c.h.b16 %v387
    %v1462 = vunpack.c.l.b16 %v388
    %v1463 = vunpack.c.h.b16 %v388
    %v1464 = vunpack.c.l.b16 %v389
    %v1465 = vunpack.c.h.b16 %v389
    %v1466 = vunpack.c.l.b16 %v390
    %v1467 = vunpack.c.h.b16 %v390
    %v1468 = vunpack.c.l.b16 %v391
    %v1469 = vunpack.c.h.b16 %v391
    %v1470 = vunpack.c.l.b16 %v392
    %v1471 = vunpack.c.h.b16 %v392
    %v1472 = vunpack.c.l.b16 %v393
    %v1473 = vunpack.c.h.b16 %v393
    %v1474 = vunpack.c.l.b16 %v394
    %v1475 = vunpack.c.h.b16 %v394
    %v1476 = vunpack.c.l.b16 %v395
    %v1477 = vunpack.c.h.b16 %v395
    %v1478 = vunpack.c.l.b16 %v396
    %v1479 = vunpack.c.h.b16 %v396
    %v1480 = vunpack.c.l.b16 %v397
    %v1481 = vunpack.c.h.b16 %v397
    %v1482 = vunpack.c.l.b16 %v398
    %v1483 = vunpack.c.h.b16 %v398
    %v1484 = vunpack.c.l.b16 %v399
    %v1485 = vunpack.c.h.b16 %v399
    %v1486 = vunpack.c.l.b16 %v400
    %v1487 = vunpack.c.h.b16 %v400
    %v1488 = vunpack.c.l.b16 %v401
    %v1489 = vunpack.c.h.b16 %v401
    %v1490 = vunpack.c.l.b16 %v402
    %v1491 = vunpack.c.h.b16 %v402
    %v1492 = vunpack.c.l.b16 %v403
    %v1493 = vunpack.c.h.b16 %v403
    %v1494 = vunpack.c.l.b16 %v404
    %v1495 = vunpack.c.h.b16 %v404
    %v1496 = vunpack.c.l.b16 %v405
    %v1497 = vunpack.c.h.b16 %v405
    %v1498 = vunpack.c.l.b16 %v406
    %v1499 = vunpack.c.h.b16 %v406
    %v1500 = vunpack.c.l.b16 %v407
    %v1501 = vunpack.c.h.b16 %v407
    %v1502 = vunpack.c.l.b16 %v408
    %v1503 = vunpack.c.h.b16 %v408
    %v1504 = vunpack.c.l.b16 %v409
    %v1505 = vunpack.c.h.b16 %v409
    %v1506 = vunpack.c.l.b16 %v410
    %v1507 = vunpack.c.h.b16 %v410
    %v1508 = vunpack.c.l.b16 %v411
    %v1509 = vunpack.c.h.b16 %v411
    %v1510 = vunpack.c.l.b16 %v412
    %v1511 = vunpack.c.h.b16 %v412
    %v1512 = vunpack.c.l.b16 %v413
    %v1513 = vunpack.c.h.b16 %v413
    %v1514 = vunpack.c.l.b16 %v414
    %v1515 = vunpack.c.h.b16 %v414
    %v1516 = vunpack.c.l.b16 %v415
    %v1517 = vunpack.c.h.b16 %v415
    %v1518 = vunpack.c.l.b16 %v416
    %v1519 = vunpack.c.h.b16 %v416
    %v1520 = vunpack.c.l.b16 %v417
    %v1521 = vunpack.c.h.b16 %v417
    %v1522 = vunpack.c.l.b16 %v418
    %v1523 = vunpack.c.h.b16 %v418
    %v1524 = vunpack.c.l.b16 %v419
    %v1525 = vunpack.c.h.b16 %v419
    %v1526 = vunpack.c.l.b16 %v420
    %v1527 = vunpack.c.h.b16 %v420
    %v1528 = vunpack.c.l.b16 %v421
    %v1529 = vunpack.c.h.b16 %v421
    %v1530 = vunpack.c.l.b16 %v422
    %v1531 = vunpack.c.h.b16 %v422
    %v1532 = vunpack.c.l.b16 %v423
    %v1533 = vunpack.c.h.b16 %v423
    %v1534 = vunpack.c.l.b16 %v424
    %v1535 = vunpack.c.h.b16 %v424
    %v1536 = vunpack.c.l.b16 %v425
    %v1537 = vunpack.c.h.b16 %v425
    %v1538 = vunpack.c.l.b16 %v426
    %v1539 = vunpack.c.h.b16 %v426
    %v1540 = vunpack.c.l.b16 %v427
    %v1541 = vunpack.c.h.b16 %v427
    %v1542 = vunpack.c.l.b16 %v428
    %v1543 = vunpack.c.h.b16 %v428
    %v1544 = vunpack.c.l.b16 %v429
    %v1545 = vunpack.c.h.b16 %v429
    %v1546 = vunpack.c.l.b16 %v430
    %v1547 = vunpack.c.h.b16 %v430
    %v1548 = vunpack.c.l.b16 %v431
    %v1549 = vunpack.c.h.b16 %v431
    %v1550 = vunpack.c.l.b16 %v432
    %v1551 = vunpack.c.h.b16 %v432
    %v1552 = vunpack.c.l.b16 %v433
    %v1553 = vunpack.c.h.b16 %v433
    %v1554 = vunpack.c.l.b16 %v434
    %v1555 = vunpack.c.h.b16 %v434
    %v1556 = vunpack.c.l.b16 %v435
    %v1557 = vunpack.c.h.b16 %v435
    %v1558 = vunpack.c.l.b16 %v436
    %v1559 = vunpack.c.h.b16 %v436
    %v1560 = vunpack.c.l.b16 %v437
    %v1561 = vunpack.c.h.b16 %v437
    %v1562 = vunpack.c.l.b16 %v438
    %v1563 = vunpack.c.h.b16 %v438
    %v1564 = vunpack.c.l.b16 %v439
    %v1565 = vunpack.c.h.b16 %v439
    %v1566 = vunpack.c.l.b16 %v440
    %v1567 = vunpack.c.h.b16 %v440
    %v1568 = vunpack.c.l.b16 %v441
    %v1569 = vunpack.c.h.b16 %v441
    %v1570 = vunpack.c.l.b16 %v442
    %v1571 = vunpack.c.h.b16 %v442
    %v1572 = vunpack.c.l.b16 %v443
    %v1573 = vunpack.c.h.b16 %v443
    %v1574 = vunpack.c.l.b16 %v444
    %v1575 = vunpack.c.h.b16 %v444
    %v1576 = vunpack.c.l.b16 %v445
    %v1577 = vunpack.c.h.b16 %v445
    %v1578 = vunpack.c.l.b16 %v446
    %v1579 = vunpack.c.h.b16 %v446
    %v1580 = vunpack.c.l.b16 %v447
    %v1581 = vunpack.c.h.b16 %v447
    %v1582 = vunpack.c.l.b16 %v448
    %v1583 = vunpack.c.h.b16 %v448
    %v1584 = vunpack.c.l.b16 %v449
    %v1585 = vunpack.c.h.b16 %v449
    %v1586 = vunpack.c.l.b16 %v450
    %v1587 = vunpack.c.h.b16 %v450
    %v1588 = vunpack.c.l.b16 %v451
    %v1589 = vunpack.c.h.b16 %v451
    %v1590 = vunpack.c.l.b16 %v452
    %v1591 = vunpack.c.h.b16 %v452
    %v1592 = vunpack.c.l.b16 %v453
    %v1593 = vunpack.c.h.b16 %v453
    %v1594 = vunpack.c.l.b16 %v454
    %v1595 = vunpack.c.h.b16 %v454
    %v1596 = vunpack.c.l.b16 %v455
    %v1597 = vunpack.c.h.b16 %v455
    %v1598 = vunpack.c.l.b16 %v456
    %v1599 = vunpack.c.h.b16 %v456
    %v1600 = vunpack.c.l.b16 %v457
    %v1601 = vunpack.c.h.b16 %v457
    %v1602 = vunpack.c.l.b16 %v458
    %v1603 = vunpack.c.h.b16 %v458
    %v1604 = vunpack.c.l.b16 %v459
    %v1605 = vunpack.c.h.b16 %v459
    %v1606 = vunpack.c.l.b16 %v460
    %v1607 = vunpack.c.h.b16 %v460
    %v1608 = vunpack.c.l.b16 %v461
    %v1609 = vunpack.c.h.b16 %v461
    %v1610 = vunpack.c.l.b16 %v462
    %v1611 = vunpack.c.h.b16 %v462
    %v1612 = vunpack.c.l.b16 %v463
    %v1613 = vunpack.c.h.b16 %v463
    %v1614 = vunpack.c.l.b16 %v464
    %v1615 = vunpack.c.h.b16 %v464
    %v1616 = vunpack.c.l.b16 %v465
    %v1617 = vunpack.c.h.b16 %v465
    %v1618 = vunpack.c.l.b16 %v466
    %v1619 = vunpack.c.h.b16 %v466
    %v1620 = vunpack.c.l.b16 %v467
    %v1621 = vunpack.c.h.b16 %v467
    %v1622 = vunpack.c.l.b16 %v468
    %v1623 = vunpack.c.h.b16 %v468
    %v1624 = vunpack.c.l.b16 %v469
    %v1625 = vunpack.c.h.b16 %v469
    %v1626 = vunpack.c.l.b16 %v470
    %v1627 = vunpack.c.h.b16 %v470
    %v1628 = vunpack.c.l.b16 %v471
    %v1629 = vunpack.c.h.b16 %v471
    %v1630 = vunpack.c.l.b16 %v472
    %v1631 = vunpack.c.h.b16 %v472
    %v1632 = vunpack.c.l.b16 %v473
    %v1633 = vunpack.c.h.b16 %v473
    %v1634 = vunpack.c.l.b16 %v474
    %v1635 = vunpack.c.h.b16 %v474
    %v1636 = vunpack.c.l.b16 %v475
    %v1637 = vunpack.c.h.b16 %v475
    %v1638 = vunpack.c.l.b16 %v476
    %v1639 = vunpack.c.h.b16 %v476
    %v1640 = vunpack.c.l.b16 %v477
    %v1641 = vunpack.c.h.b16 %v477
    %v1642 = vunpack.c.l.b16 %v478
    %v1643 = vunpack.c.h.b16 %v478
    %v1644 = vunpack.c.l.b16 %v479
    %v1645 = vunpack.c.h.b16 %v479
    %v1646 = vunpack.c.l.b16 %v480
    %v1647 = vunpack.c.h.b16 %v480
    %v1648 = vunpack.c.l.b16 %v481
    %v1649 = vunpack.c.h.b16 %v481
    %v1650 = vunpack.c.l.b16 %v482
    %v1651 = vunpack.c.h.b16 %v482
    %v1652 = vunpack.c.l.b16 %v483
    %v1653 = vunpack.c.h.b16 %v483
    %v1654 = vunpack.c.l.b16 %v484
    %v1655 = vunpack.c.h.b16 %v484
    %v1656 = vunpack.c.l.b16 %v485
    %v1657 = vunpack.c.h.b16 %v485
    %v1658 = vunpack.c.l.b16 %v486
    %v1659 = vunpack.c.h.b16 %v486
    %v1660 = vunpack.c.l.b16 %v487
    %v1661 = vunpack.c.h.b16 %v487
    %v1662 = vunpack.c.l.b16 %v488
    %v1663 = vunpack.c.h.b16 %v488
    %v1664 = vunpack.c.l.b16 %v489
    %v1665 = vunpack.c.h.b16 %v489
    %v1666 = vunpack.c.l.b16 %v490
    %v1667 = vunpack.c.h.b16 %v490
    %v1668 = vunpack.c.l.b16 %v491
    %v1669 = vunpack.c.h.b16 %v491
    %v1670 = vunpack.c.l.b16 %v492
    %v1671 = vunpack.c.h.b16 %v492
    %v1672 = vunpack.c.l.b16 %v493
    %v1673 = vunpack.c.h.b16 %v493
    %v1674 = vunpack.c.l.b16 %v494
    %v1675 = vunpack.c.h.b16 %v494
    %v1676 = vunpack.c.l.b16 %v495
    %v1677 = vunpack.c.h.b16 %v495
    %v1678 = vunpack.c.l.b16 %v496
    %v1679 = vunpack.c.h.b16 %v496
    %v1680 = vunpack.c.l.b16 %v497
    %v1681 = vunpack.c.h.b16 %v497
    %v1682 = vunpack.c.l.b16 %v498
    %v1683 = vunpack.c.h.b16 %v498
    %v1684 = vunpack.c.l.b16 %v499
    %v1685 = vunpack.c.h.b16 %v499
    %v1686 = vunpack.c.l.b16 %v500
    %v1687 = vunpack.c.h.b16 %v500
    %v1688 = vunpack.c.l.b16 %v501
    %v1689 = vunpack.c.h.b16 %v501
    %v1690 = vunpack.c.l.b16 %v502
    %v1691 = vunpack.c.h.b16 %v502
    %v1692 = vunpack.c.l.b16 %v503
    %v1693 = vunpack.c.h.b16 %v503
    %v1694 = vunpack.c.l.b16 %v504
    %v1695 = vunpack.c.h.b16 %v504
    %v1696 = vunpack.c.l.b16 %v505
    %v1697 = vunpack.c.h.b16 %v505
    %v1698 = vunpack.c.l.b16 %v506
    %v1699 = vunpack.c.h.b16 %v506
    %v1700 = vunpack.c.l.b16 %v507
    %v1701 = vunpack.c.h.b16 %v507
    %v1702 = vunpack.c.l.b16 %v508
    %v1703 = vunpack.c.h.b16 %v508
    %v1704 = vunpack.c.l.b16 %v509
    %v1705 = vunpack.c.h.b16 %v509
    %v1706 = vunpack.c.l.b16 %v510
    %v1707 = vunpack.c.h.b16 %v510
    %v1708 = vunpack.c.l.b16 %v511
    %v1709 = vunpack.c.h.b16 %v511
    %v1710 = vunpack.c.l.b16 %v512
    %v1711 = vunpack.c.h.b16 %v512
    %v1712 = vunpack.c.l.b16 %v513
    %v1713 = vunpack.c.h.b16 %v513
    %v1714 = vunpack.c.l.b16 %v514
    %v1715 = vunpack.c.h.b16 %v514
    %v1716 = vunpack.c.l.b16 %v515
    %v1717 = vunpack.c.h.b16 %v515
    %v1718 = vunpack.c.l.b16 %v516
    %v1719 = vunpack.c.h.b16 %v516
    %v1720 = vunpack.c.l.b16 %v517
    %v1721 = vunpack.c.h.b16 %v517
    %v1722 = vunpack.c.l.b16 %v518
    %v1723 = vunpack.c.h.b16 %v518
    %v1724 = vunpack.c.l.b16 %v519
    %v1725 = vunpack.c.h.b16 %v519
    %v1726 = vunpack.c.l.b16 %v520
    %v1727 = vunpack.c.h.b16 %v520
    %v1728 = vunpack.c.l.b16 %v521
    %v1729 = vunpack.c.h.b16 %v521
    %v1730 = vunpack.c.l.b16 %v522
    %v1731 = vunpack.c.h.b16 %v522
    %v1732 = vunpack.c.l.b16 %v523
    %v1733 = vunpack.c.h.b16 %v523
    %v1734 = vunpack.c.l.b16 %v524
    %v1735 = vunpack.c.h.b16 %v524
    %v1736 = vunpack.c.l.b16 %v525
    %v1737 = vunpack.c.h.b16 %v525
    %v1738 = vunpack.c.l.b16 %v526
    %v1739 = vunpack.c.h.b16 %v526
    %v1740 = vunpack.c.l.b16 %v527
    %v1741 = vunpack.c.h.b16 %v527
    %v1742 = vunpack.c.l.b16 %v528
    %v1743 = vunpack.c.h.b16 %v528
    %v1744 = vunpack.c.l.b16 %v529
    %v1745 = vunpack.c.h.b16 %v529
    %v1746 = vunpack.c.l.b16 %v530
    %v1747 = vunpack.c.h.b16 %v530
    %v1748 = vunpack.c.l.b16 %v531
    %v1749 = vunpack.c.h.b16 %v531
    %v1750 = vunpack.c.l.b16 %v532
    %v1751 = vunpack.c.h.b16 %v532
    %v1752 = vunpack.c.l.b16 %v533
    %v1753 = vunpack.c.h.b16 %v533
    %v1754 = vunpack.c.l.b16 %v534
    %v1755 = vunpack.c.h.b16 %v534
    %v1756 = vunpack.c.l.b16 %v535
    %v1757 = vunpack.c.h.b16 %v535
    %v1758 = vunpack.c.l.b16 %v536
    %v1759 = vunpack.c.h.b16 %v536
    %v1760 = vunpack.c.l.b16 %v537
    %v1761 = vunpack.c.h.b16 %v537
    %v1762 = vunpack.c.l.b16 %v538
    %v1763 = vunpack.c.h.b16 %v538
    %v1764 = vunpack.c.l.b16 %v539
    %v1765 = vunpack.c.h.b16 %v539
    %v1766 = vunpack.c.l.b16 %v540
    %v1767 = vunpack.c.h.b16 %v540
    %v1768 = vunpack.c.l.b16 %v541
    %v1769 = vunpack.c.h.b16 %v541
    %v1770 = vunpack.c.l.b16 %v542
    %v1771 = vunpack.c.h.b16 %v542
    %v1772 = vunpack.c.l.b16 %v543
    %v1773 = vunpack.c.h.b16 %v543
    %v1774 = vunpack.c.l.b16 %v544
    %v1775 = vunpack.c.h.b16 %v544
    %v1776 = vunpack.c.l.b16 %v545
    %v1777 = vunpack.c.h.b16 %v545
    %v1778 = vunpack.c.l.b16 %v546
    %v1779 = vunpack.c.h.b16 %v546
    %v1780 = vunpack.c.l.b16 %v547
    %v1781 = vunpack.c.h.b16 %v547
    %v1782 = vunpack.c.l.b16 %v548
    %v1783 = vunpack.c.h.b16 %v548
    %v1784 = vunpack.c.l.b16 %v549
    %v1785 = vunpack.c.h.b16 %v549
    %v1786 = vunpack.c.l.b16 %v550
    %v1787 = vunpack.c.h.b16 %v550
    %v1788 = vunpack.c.l.b16 %v551
    %v1789 = vunpack.c.h.b16 %v551
    %v1790 = vunpack.c.l.b16 %v552
    %v1791 = vunpack.c.h.b16 %v552
    %v1792 = vunpack.c.l.b16 %v553
    %v1793 = vunpack.c.h.b16 %v553
    %v1794 = vunpack.c.l.b16 %v554
    %v1795 = vunpack.c.h.b16 %v554
    %v1796 = vunpack.c.l.b16 %v555
    %v1797 = vunpack.c.h.b16 %v555
    %v1798 = vunpack.c.l.b16 %v556
    %v1799 = vunpack.c.h.b16 %v556
    %v1800 = vunpack.c.l.b16 %v557
    %v1801 = vunpack.c.h.b16 %v557
    %v1802 = vunpack.c.l.b16 %v558
    %v1803 = vunpack.c.h.b16 %v558
    %v1804 = vunpack.c.l.b16 %v559
    %v1805 = vunpack.c.h.b16 %v559
    %v1806 = vunpack.c.l.b16 %v560
    %v1807 = vunpack.c.h.b16 %v560
    %v1808 = vunpack.c.l.b16 %v561
    %v1809 = vunpack.c.h.b16 %v561
    %v1810 = vunpack.c.l.b16 %v562
    %v1811 = vunpack.c.h.b16 %v562
    %v1812 = vunpack.c.l.b16 %v563
    %v1813 = vunpack.c.h.b16 %v563
    %v1814 = vunpack.c.l.b16 %v564
    %v1815 = vunpack.c.h.b16 %v564
    %v1816 = vunpack.c.l.b16 %v565
    %v1817 = vunpack.c.h.b16 %v565
    %v1818 = vunpack.c.l.b16 %v566
    %v1819 = vunpack.c.h.b16 %v566
    %v1820 = vunpack.c.l.b16 %v567
    %v1821 = vunpack.c.h.b16 %v567
    %v1822 = vunpack.c.l.b16 %v568
    %v1823 = vunpack.c.h.b16 %v568
    %v1824 = vunpack.c.l.b16 %v569
    %v1825 = vunpack.c.h.b16 %v569
    %v1826 = vunpack.c.l.b16 %v570
    %v1827 = vunpack.c.h.b16 %v570
    %v1828 = vunpack.c.l.b16 %v571
    %v1829 = vunpack.c.h.b16 %v571
    %v1830 = vunpack.c.l.b16 %v572
    %v1831 = vunpack.c.h.b16 %v572
    %v1832 = vunpack.c.l.b16 %v573
    %v1833 = vunpack.c.h.b16 %v573
    %v1834 = vunpack.c.l.b16 %v574
    %v1835 = vunpack.c.h.b16 %v574
    %v1836 = vunpack.c.l.b16 %v575
    %v1837 = vunpack.c.h.b16 %v575
    %v1838 = vunpack.c.l.b16 %v576
    %v1839 = vunpack.c.h.b16 %v576
    %v1840 = vunpack.c.l.b16 %v577
    %v1841 = vunpack.c.h.b16 %v577
    %v1842 = vunpack.c.l.b16 %v578
    %v1843 = vunpack.c.h.b16 %v578
    %v1844 = vunpack.c.l.b16 %v579
    %v1845 = vunpack.c.h.b16 %v579
    %v1846 = vunpack.c.l.b16 %v580
    %v1847 = vunpack.c.h.b16 %v580
    %v1848 = vunpack.c.l.b16 %v581
    %v1849 = vunpack.c.h.b16 %v581
    %v1850 = vunpack.c.l.b16 %v582
    %v1851 = vunpack.c.h.b16 %v582
    %v1852 = vunpack.c.l.b16 %v583
    %v1853 = vunpack.c.h.b16 %v583
    %v1854 = vunpack.c.l.b16 %v584
    %v1855 = vunpack.c.h.b16 %v584
    %v1856 = vunpack.c.l.b16 %v585
    %v1857 = vunpack.c.h.b16 %v585
    %v1858 = vunpack.c.l.b16 %v586
    %v1859 = vunpack.c.h.b16 %v586
    %v1860 = vunpack.c.l.b16 %v587
    %v1861 = vunpack.c.h.b16 %v587
    %v1862 = vunpack.c.l.b16 %v588
    %v1863 = vunpack.c.h.b16 %v588
    %v1864 = vunpack.c.l.b16 %v589
    %v1865 = vunpack.c.h.b16 %v589
    %v1866 = vunpack.c.l.b16 %v590
    %v1867 = vunpack.c.h.b16 %v590
    %v1868 = vunpack.c.l.b16 %v591
    %v1869 = vunpack.c.h.b16 %v591
    %v1870 = vunpack.c.l.b16 %v592
    %v1871 = vunpack.c.h.b16 %v592
    %v1872 = vunpack.c.l.b16 %v593
    %v1873 = vunpack.c.h.b16 %v593
    %v1874 = vunpack.c.l.b16 %v594
    %v1875 = vunpack.c.h.b16 %v594
    %v1876 = vunpack.c.l.b16 %v595
    %v1877 = vunpack.c.h.b16 %v595
    %v1878 = vunpack.c.l.b16 %v596
    %v1879 = vunpack.c.h.b16 %v596
    %v1880 = vunpack.c.l.b16 %v597
    %v1881 = vunpack.c.h.b16 %v597
    %v1882 = vunpack.c.l.b16 %v598
    %v1883 = vunpack.c.h.b16 %v598
    %v1884 = vunpack.c.l.b16 %v599
    %v1885 = vunpack.c.h.b16 %v599
    %v1886 = vunpack.c.l.b16 %v600
    %v1887 = vunpack.c.h.b16 %v600
    %v1888 = vunpack.c.l.b16 %v601
    %v1889 = vunpack.c.h.b16 %v601
    %v1890 = vunpack.c.l.b16 %v602
    %v1891 = vunpack.c.h.b16 %v602
    %v1892 = vunpack.c.l.b16 %v603
    %v1893 = vunpack.c.h.b16 %v603
    %v1894 = vunpack.c.l.b16 %v604
    %v1895 = vunpack.c.h.b16 %v604
    %v1896 = vunpack.c.l.b16 %v605
    %v1897 = vunpack.c.h.b16 %v605
    %v1898 = vunpack.c.l.b16 %v606
    %v1899 = vunpack.c.h.b16 %v606
    %v1900 = vunpack.c.l.b16 %v607
    %v1901 = vunpack.c.h.b16 %v607
    %v1902 = vunpack.c.l.b16 %v608
    %v1903 = vunpack.c.h.b16 %v608
    %v1904 = vunpack.c.l.b16 %v609
    %v1905 = vunpack.c.h.b16 %v609
    %v1906 = vunpack.c.l.b16 %v610
    %v1907 = vunpack.c.h.b16 %v610
    %v1908 = vunpack.c.l.b16 %v611
    %v1909 = vunpack.c.h.b16 %v611
    %v1910 = vunpack.c.l.b16 %v612
    %v1911 = vunpack.c.h.b16 %v612
    %v1912 = vunpack.c.l.b16 %v613
    %v1913 = vunpack.c.h.b16 %v613
    %v1914 = vunpack.c.l.b16 %v614
    %v1915 = vunpack.c.h.b16 %v614
    %v1916 = vunpack.c.l.b16 %v615
    %v1917 = vunpack.c.h.b16 %v615
    %v1918 = vunpack.c.l.b16 %v616
    %v1919 = vunpack.c.h.b16 %v616
    %v1920 = vunpack.c.l.b16 %v617
    %v1921 = vunpack.c.h.b16 %v617
    %v1922 = vunpack.c.l.b16 %v618
    %v1923 = vunpack.c.h.b16 %v618
    %v1924 = vunpack.c.l.b16 %v619
    %v1925 = vunpack.c.h.b16 %v619
    %v1926 = vunpack.c.l.b16 %v620
    %v1927 = vunpack.c.h.b16 %v620
    %v1928 = vunpack.c.l.b16 %v621
    %v1929 = vunpack.c.h.b16 %v621
    %v1930 = vunpack.c.l.b16 %v622
    %v1931 = vunpack.c.h.b16 %v622
    %v1932 = vunpack.c.l.b16 %v623
    %v1933 = vunpack.c.h.b16 %v623
    %v1934 = vunpack.c.l.b16 %v624
    %v1935 = vunpack.c.h.b16 %v624
    %v1936 = vunpack.c.l.b16 %v625
    %v1937 = vunpack.c.h.b16 %v625
    %v1938 = vunpack.c.l.b16 %v626
    %v1939 = vunpack.c.h.b16 %v626
    %v1940 = vunpack.c.l.b16 %v627
    %v1941 = vunpack.c.h.b16 %v627
    %v1942 = vunpack.c.l.b16 %v628
    %v1943 = vunpack.c.h.b16 %v628
    %v1944 = vunpack.c.l.b16 %v629
    %v1945 = vunpack.c.h.b16 %v629
    %v1946 = vunpack.c.l.b16 %v630
    %v1947 = vunpack.c.h.b16 %v630
    %v1948 = vunpack.c.l.b16 %v631
    %v1949 = vunpack.c.h.b16 %v631
    %v1950 = vunpack.c.l.b16 %v632
    %v1951 = vunpack.c.h.b16 %v632
    %v1952 = vunpack.c.l.b16 %v633
    %v1953 = vunpack.c.h.b16 %v633
    %v1954 = vunpack.c.l.b16 %v634
    %v1955 = vunpack.c.h.b16 %v634
    %v1956 = vunpack.c.l.b16 %v635
    %v1957 = vunpack.c.h.b16 %v635
    %v1958 = vunpack.c.l.b16 %v636
    %v1959 = vunpack.c.h.b16 %v636
    %v1960 = vunpack.c.l.b16 %v637
    %v1961 = vunpack.c.h.b16 %v637
    %v1962 = vunpack.c.l.b16 %v638
    %v1963 = vunpack.c.h.b16 %v638
    %v1964 = vunpack.c.l.b16 %v639
    %v1965 = vunpack.c.h.b16 %v639
    %v1966 = vunpack.c.l.b16 %v640
    %v1967 = vunpack.c.h.b16 %v640
    %v1968 = vunpack.c.l.b16 %v641
    %v1969 = vunpack.c.h.b16 %v641
    %v1970 = vunpack.c.l.b16 %v642
    %v1971 = vunpack.c.h.b16 %v642
    %v1972 = vunpack.c.l.b16 %v643
    %v1973 = vunpack.c.h.b16 %v643
    %v1974 = vunpack.c.l.b16 %v644
    %v1975 = vunpack.c.h.b16 %v644
    %v1976 = vunpack.c.l.b16 %v645
    %v1977 = vunpack.c.h.b16 %v645
    %v1978 = vunpack.c.l.b16 %v646
    %v1979 = vunpack.c.h.b16 %v646
    %v1980 = vunpack.c.l.b16 %v647
    %v1981 = vunpack.c.h.b16 %v647
    %v1982 = vunpack.c.l.b16 %v648
    %v1983 = vunpack.c.h.b16 %v648
    %v1984 = vunpack.c.l.b16 %v649
    %v1985 = vunpack.c.h.b16 %v649
    %v1986 = vunpack.c.l.b16 %v650
    %v1987 = vunpack.c.h.b16 %v650
    %v1988 = vunpack.c.l.b16 %v651
    %v1989 = vunpack.c.h.b16 %v651
    %v1990 = vunpack.c.l.b16 %v652
    %v1991 = vunpack.c.h.b16 %v652
    %v1992 = vunpack.c.l.b16 %v653
    %v1993 = vunpack.c.h.b16 %v653
    %v1994 = vunpack.c.l.b16 %v654
    %v1995 = vunpack.c.h.b16 %v654
    %v1996 = vunpack.c.l.b16 %v655
    %v1997 = vunpack.c.h.b16 %v655
    %v1998 = vunpack.c.l.b16 %v656
    %v1999 = vunpack.c.h.b16 %v656
    %v2000 = vunpack.c.l.b16 %v657
    %v2001 = vunpack.c.h.b16 %v657
    %v2002 = vunpack.c.l.b16 %v658
    %v2003 = vunpack.c.h.b16 %v658
    %v2004 = vunpack.c.l.b16 %v659
    %v2005 = vunpack.c.h.b16 %v659
    %v2006 = vunpack.c.l.b16 %v660
    %v2007 = vunpack.c.h.b16 %v660
    %v2008 = vunpack.c.l.b16 %v661
    %v2009 = vunpack.c.h.b16 %v661
    %v2010 = vunpack.c.l.b16 %v662
    %v2011 = vunpack.c.h.b16 %v662
    %v2012 = vunpack.c.l.b16 %v663
    %v2013 = vunpack.c.h.b16 %v663
    %v2014 = vunpack.c.l.b16 %v664
    %v2015 = vunpack.c.h.b16 %v664
    %v2016 = vunpack.c.l.b16 %v665
    %v2017 = vunpack.c.h.b16 %v665
    %v2018 = vunpack.c.l.b16 %v666
    %v2019 = vunpack.c.h.b16 %v666
    %v2020 = vunpack.c.l.b16 %v667
    %v2021 = vunpack.c.h.b16 %v667
    %v2022 = vunpack.c.l.b16 %v668
    %v2023 = vunpack.c.h.b16 %v668
    %v2024 = vunpack.c.l.b16 %v669
    %v2025 = vunpack.c.h.b16 %v669
    %v2026 = vunpack.c.l.b16 %v670
    %v2027 = vunpack.c.h.b16 %v670
    %v2028 = vunpack.c.l.b16 %v671
    %v2029 = vunpack.c.h.b16 %v671
    %v2030 = vunpack.c.l.b16 %v672
    %v2031 = vunpack.c.h.b16 %v672
    %v2032 = vunpack.c.l.b16 %v673
    %v2033 = vunpack.c.h.b16 %v673
    %v2034 = vunpack.c.l.b16 %v674
    %v2035 = vunpack.c.h.b16 %v674
    %v2036 = vunpack.c.l.b16 %v675
    %v2037 = vunpack.c.h.b16 %v675
    %v2038 = vunpack.c.l.b16 %v676
    %v2039 = vunpack.c.h.b16 %v676
    %v2040 = vunpack.c.l.b16 %v677
    %v2041 = vunpack.c.h.b16 %v677
    %v2042 = vunpack.c.l.b16 %v678
    %v2043 = vunpack.c.h.b16 %v678
    %v2044 = vunpack.c.l.b16 %v679
    %v2045 = vunpack.c.h.b16 %v679
    %v2046 = vunpack.c.l.b16 %v680
    %v2047 = vunpack.c.h.b16 %v680
    %v2048 = vunpack.c.l.b16 %v681
    %v2049 = vunpack.c.h.b16 %v681
    %v2050 = vunpack.c.l.b16 %v682
    %v2051 = vunpack.c.h.b16 %v682
    %v2052 = vunpack.c.l.b16 %v683
    %v2053 = vunpack.c.h.b16 %v683
    %v2054 = vunpack.c.l.b16 %v684
    %v2055 = vunpack.c.h.b16 %v684
    %v2056 = vunpack.c.l.b16 %v685
    %v2057 = vunpack.c.h.b16 %v685
    %v2058 = vunpack.c.l.b16 %v686
    %v2059 = vunpack.c.h.b16 %v686
    %v2060 = vunpack.c.l.b16 %v687
    %v2061 = vunpack.c.h.b16 %v687
    %v2062 = vunpack.c.l.b16 %v688
    %v2063 = vunpack.c.h.b16 %v688
    %v2064 = vunpack.c.l.b16 %v689
    %v2065 = vunpack.c.h.b16 %v689
    %v2066 = vunpack.c.l.b16 %v690
    %v2067 = vunpack.c.h.b16 %v690
    %v2068 = vunpack.c.l.b16 %v691
    %v2069 = vunpack.c.h.b16 %v691
    %v2070 = vunpack.c.l.b16 %v692
    %v2071 = vunpack.c.h.b16 %v692
    %v2072 = vunpack.c.l.b16 %v693
    %v2073 = vunpack.c.h.b16 %v693
    %v2074 = vunpack.c.l.b16 %v694
    %v2075 = vunpack.c.h.b16 %v694
    %v2076 = vunpack.c.l.b16 %v695
    %v2077 = vunpack.c.h.b16 %v695
    %v2078 = vunpack.c.l.b16 %v696
    %v2079 = vunpack.c.h.b16 %v696
    %v2080 = vunpack.c.l.b16 %v697
    %v2081 = vunpack.c.h.b16 %v697
    %v2082 = vunpack.c.l.b16 %v698
    %v2083 = vunpack.c.h.b16 %v698
    %v2084 = vunpack.c.l.b16 %v699
    %v2085 = vunpack.c.h.b16 %v699
    %v2086 = vunpack.c.l.b16 %v700
    %v2087 = vunpack.c.h.b16 %v700
    %v2088 = vunpack.c.l.b16 %v701
    %v2089 = vunpack.c.h.b16 %v701
    %v2090 = vunpack.c.l.b16 %v702
    %v2091 = vunpack.c.h.b16 %v702
    %v2092 = vunpack.c.l.b16 %v703
    %v2093 = vunpack.c.h.b16 %v703
    %v2094 = vunpack.c.l.b16 %v704
    %v2095 = vunpack.c.h.b16 %v704
    %v2096 = vunpack.c.l.b16 %v705
    %v2097 = vunpack.c.h.b16 %v705
    %v2098 = vunpack.c.l.b16 %v706
    %v2099 = vunpack.c.h.b16 %v706
    %v2100 = vunpack.c.l.b16 %v707
    %v2101 = vunpack.c.h.b16 %v707
    %v2102 = vunpack.c.l.b16 %v708
    %v2103 = vunpack.c.h.b16 %v708
    %v2104 = vunpack.c.l.b16 %v709
    %v2105 = vunpack.c.h.b16 %v709
    %v2106 = vunpack.c.l.b16 %v710
    %v2107 = vunpack.c.h.b16 %v710
    %v2108 = vunpack.c.l.b16 %v711
    %v2109 = vunpack.c.h.b16 %v711
    %v2110 = vunpack.c.l.b16 %v712
    %v2111 = vunpack.c.h.b16 %v712
    %v2112 = vunpack.c.l.b16 %v713
    %v2113 = vunpack.c.h.b16 %v713
    %v2114 = vunpack.c.l.b16 %v714
    %v2115 = vunpack.c.h.b16 %v714
    %v2116 = vunpack.c.l.b16 %v715
    %v2117 = vunpack.c.h.b16 %v715
    %v2118 = vunpack.c.l.b16 %v716
    %v2119 = vunpack.c.h.b16 %v716
    %v2120 = vunpack.c.l.b16 %v717
    %v2121 = vunpack.c.h.b16 %v717
    %v2122 = vunpack.c.l.b16 %v718
    %v2123 = vunpack.c.h.b16 %v718
    %v2124 = vunpack.c.l.b16 %v719
    %v2125 = vunpack.c.h.b16 %v719
    %v2126 = vunpack.c.l.b16 %v720
    %v2127 = vunpack.c.h.b16 %v720
    %v2128 = vunpack.c.l.b16 %v721
    %v2129 = vunpack.c.h.b16 %v721
    %v2130 = vunpack.c.l.b16 %v722
    %v2131 = vunpack.c.h.b16 %v722
    %v2132 = vunpack.c.l.b16 %v723
    %v2133 = vunpack.c.h.b16 %v723
    %v2134 = vunpack.c.l.b16 %v724
    %v2135 = vunpack.c.h.b16 %v724
    %v2136 = vpack.c.b16 %v1248, %v1240
    %v2137 = vpack.c.b16 %v1249, %v1241
    %v2138 = vpack.c.b16 %v1250, %v1242
    %v2139 = vpack.c.b16 %v1251, %v1243
    %v2140 = vpack.c.b16 %v1252, %v1244
    %v2141 = vpack.c.b16 %v1253, %v1245
    %v2142 = vpack.c.b16 %v1254, %v1246
    %v2143 = vpack.c.b16 %v1255, %v1247
    %v2144 = vpack.c.b16 %v1264, %v1256
    %v2145 = vpack.c.b16 %v1265, %v1257
    %v2146 = vpack.c.b16 %v1266, %v1258
    %v2147 = vpack.c.b16 %v1267, %v1259
    %v2148 = vpack.c.b16 %v1268, %v1260
    %v2149 = vpack.c.b16 %v1269, %v1261
    %v2150 = vpack.c.b16 %v1270, %v1262
    %v2151 = vpack.c.b16 %v1271, %v1263
    %v2152 = vpack.c.b16 %v1280, %v1272
    %v2153 = vpack.c.b16 %v1281, %v1273
    %v2154 = vpack.c.b16 %v1282, %v1274
    %v2155 = vpack.c.b16 %v1283, %v1275
    %v2156 = vpack.c.b16 %v1284, %v1276
    %v2157 = vpack.c.b16 %v1285, %v1277
    %v2158 = vpack.c.b16 %v1286, %v1278
    %v2159 = vpack.c.b16 %v1287, %v1279
    %v2160 = vpack.c.b16 %v1296, %v1288
    %v2161 = vpack.c.b16 %v1297, %v1289
    %v2162 = vpack.c.b16 %v1298, %v1290
    %v2163 = vpack.c.b16 %v1299, %v1291
    %v2164 = vpack.c.b16 %v1300, %v1292
    %v2165 = vpack.c.b16 %v1301, %v1293
    %v2166 = vpack.c.b16 %v1302, %v1294
    %v2167 = vpack.c.b16 %v1303, %v1295
    %v2168 = vpack.c.b16 %v1312, %v1304
    %v2169 = vpack.c.b16 %v1313, %v1305
    %v2170 = vpack.c.b16 %v1314, %v1306
    %v2171 = vpack.c.b16 %v1315, %v1307
    %v2172 = vpack.c.b16 %v1316, %v1308
    %v2173 = vpack.c.b16 %v1317, %v1309
    %v2174 = vpack.c.b16 %v1318, %v1310
    %v2175 = vpack.c.b16 %v1319, %v1311
    %v2176 = vpack.c.b16 %v1328, %v1320
    %v2177 = vpack.c.b16 %v1329, %v1321
    %v2178 = vpack.c.b16 %v1330, %v1322
    %v2179 = vpack.c.b16 %v1331, %v1323
    %v2180 = vpack.c.b16 %v1332, %v1324
    %v2181 = vpack.c.b16 %v1333, %v1325
    %v2182 = vpack.c.b16 %v1334, %v1326
    %v2183 = vpack.c.b16 %v1335, %v1327
    %v2184 = vpack.c.b16 %v1344, %v1336
    %v2185 = vpack.c.b16 %v1345, %v1337
    %v2186 = vpack.c.b16 %v1346, %v1338
    %v2187 = vpack.c.b16 %v1347, %v1339
    %v2188 = vpack.c.b16 %v1348, %v1340
    %v2189 = vpack.c.b16 %v1349, %v1341
    %v2190 = vpack.c.b16 %v1350, %v1342
    %v2191 = vpack.c.b16 %v1351, %v1343
    %v2192 = vpack.c.b16 %v1360, %v1352
    %v2193 = vpack.c.b16 %v1361, %v1353
    %v2194 = vpack.c.b16 %v1362, %v1354
    %v2195 = vpack.c.b16 %v1363, %v1355
    %v2196 = vpack.c.b16 %v1364, %v1356
    %v2197 = vpack.c.b16 %v1365, %v1357
    %v2198 = vpack.c.b16 %v1366, %v1358
    %v2199 = vpack.c.b16 %v1367, %v1359
    %v2200 = vpack.c.b16 %v1376, %v1368
    %v2201 = vpack.c.b16 %v1377, %v1369
    %v2202 = vpack.c.b16 %v1378, %v1370
    %v2203 = vpack.c.b16 %v1379, %v1371
    %v2204 = vpack.c.b16 %v1380, %v1372
    %v2205 = vpack.c.b16 %v1381, %v1373
    %v2206 = vpack.c.b16 %v1382, %v1374
    %v2207 = vpack.c.b16 %v1383, %v1375
    %v2208 = vpack.c.b16 %v1392, %v1384
    %v2209 = vpack.c.b16 %v1393, %v1385
    %v2210 = vpack.c.b16 %v1394, %v1386
    %v2211 = vpack.c.b16 %v1395, %v1387
    %v2212 = vpack.c.b16 %v1396, %v1388
    %v2213 = vpack.c.b16 %v1397, %v1389
    %v2214 = vpack.c.b16 %v1398, %v1390
    %v2215 = vpack.c.b16 %v1399, %v1391
    %v2216 = vpack.c.b16 %v1408, %v1400
    %v2217 = vpack.c.b16 %v1409, %v1401
    %v2218 = vpack.c.b16 %v1410, %v1402
    %v2219 = vpack.c.b16 %v1411, %v1403
    %v2220 = vpack.c.b16 %v1412, %v1404
    %v2221 = vpack.c.b16 %v1413, %v1405
    %v2222 = vpack.c.b16 %v1414, %v1406
    %v2223 = vpack.c.b16 %v1415, %v1407
    %v2224 = vpack.c.b16 %v1424, %v1416
    %v2225 = vpack.c.b16 %v1425, %v1417
    %v2226 = vpack.c.b16 %v1426, %v1418
    %v2227 = vpack.c.b16 %v1427, %v1419
    %v2228 = vpack.c.b16 %v1428, %v1420
    %v2229 = vpack.c.b16 %v1429, %v1421
    %v2230 = vpack.c.b16 %v1430, %v1422
    %v2231 = vpack.c.b16 %v1431, %v1423
    %v2232 = vpack.c.b16 %v1440, %v1432
    %v2233 = vpack.c.b16 %v1441, %v1433
    %v2234 = vpack.c.b16 %v1442, %v1434
    %v2235 = vpack.c.b16 %v1443, %v1435
    %v2236 = vpack.c.b16 %v1444, %v1436
    %v2237 = vpack.c.b16 %v1445, %v1437
    %v2238 = vpack.c.b16 %v1446, %v1438
    %v2239 = vpack.c.b16 %v1447, %v1439
    %v2240 = vpack.c.b16 %v1456, %v1448
    %v2241 = vpack.c.b16 %v1457, %v1449
    %v2242 = vpack.c.b16 %v1458, %v1450
    %v2243 = vpack.c.b16 %v1459, %v1451
    %v2244 = vpack.c.b16 %v1460, %v1452
    %v2245 = vpack.c.b16 %v1461, %v1453
    %v2246 = vpack.c.b16 %v1462, %v1454
    %v2247 = vpack.c.b16 %v1463, %v1455
    %v2248 = vpack.c.b16 %v1472, %v1464
    %v2249 = vpack.c.b16 %v1473, %v1465
    %v2250 = vpack.c.b16 %v1474, %v1466
    %v2251 = vpack.c.b16 %v1475, %v1467
    %v2252 = vpack.c.b16 %v1476, %v1468
    %v2253 = vpack.c.b16 %v1477, %v1469
    %v2254 = vpack.c.b16 %v1478, %v1470
    %v2255 = vpack.c.b16 %v1479, %v1471
    %v2256 = vpack.c.b16 %v1488, %v1480
    %v2257 = vpack.c.b16 %v1489, %v1481
    %v2258 = vpack.c.b16 %v1490, %v1482
    %v2259 = vpack.c.b16 %v1491, %v1483
    %v2260 = vpack.c.b16 %v1492, %v1484
    %v2261 = vpack.c.b16 %v1493, %v1485
    %v2262 = vpack.c.b16 %v1494, %v1486
    %v2263 = vpack.c.b16 %v1495, %v1487
    %v2264 = vpack.c.b16 %v1504, %v1496
    %v2265 = vpack.c.b16 %v1505, %v1497
    %v2266 = vpack.c.b16 %v1506, %v1498
    %v2267 = vpack.c.b16 %v1507, %v1499
    %v2268 = vpack.c.b16 %v1508, %v1500
    %v2269 = vpack.c.b16 %v1509, %v1501
    %v2270 = vpack.c.b16 %v1510, %v1502
    %v2271 = vpack.c.b16 %v1511, %v1503
    %v2272 = vpack.c.b16 %v1520, %v1512
    %v2273 = vpack.c.b16 %v1521, %v1513
    %v2274 = vpack.c.b16 %v1522, %v1514
    %v2275 = vpack.c.b16 %v1523, %v1515
    %v2276 = vpack.c.b16 %v1524, %v1516
    %v2277 = vpack.c.b16 %v1525, %v1517
    %v2278 = vpack.c.b16 %v1526, %v1518
    %v2279 = vpack.c.b16 %v1527, %v1519
    %v2280 = vpack.c.b16 %v1536, %v1528
    %v2281 = vpack.c.b16 %v1537, %v1529
    %v2282 = vpack.c.b16 %v1538, %v1530
    %v2283 = vpack.c.b16 %v1539, %v1531
    %v2284 = vpack.c.b16 %v1540, %v1532
    %v2285 = vpack.c.b16 %v1541, %v1533
    %v2286 = vpack.c.b16 %v1542, %v1534
    %v2287 = vpack.c.b16 %v1543, %v1535
    %v2288 = vpack.c.b16 %v1552, %v1544
    %v2289 = vpack.c.b16 %v1553, %v1545
    %v2290 = vpack.c.b16 %v1554, %v1546
    %v2291 = vpack.c.b16 %v1555, %v1547
    %v2292 = vpack.c.b16 %v1556, %v1548
    %v2293 = vpack.c.b16 %v1557, %v1549
    %v2294 = vpack.c.b16 %v1558, %v1550
    %v2295 = vpack.c.b16 %v1559, %v1551
    %v2296 = vpack.c.b16 %v1568, %v1560
    %v2297 = vpack.c.b16 %v1569, %v1561
    %v2298 = vpack.c.b16 %v1570, %v1562
    %v2299 = vpack.c.b16 %v1571, %v1563
    %v2300 = vpack.c.b16 %v1572, %v1564
    %v2301 = vpack.c.b16 %v1573, %v1565
    %v2302 = vpack.c.b16 %v1574, %v1566
    %v2303 = vpack.c.b16 %v1575, %v1567
    %v2304 = vpack.c.b16 %v1584, %v1576
    %v2305 = vpack.c.b16 %v1585, %v1577
    %v2306 = vpack.c.b16 %v1586, %v1578
    %v2307 = vpack.c.b16 %v1587, %v1579
    %v2308 = vpack.c.b16 %v1588, %v1580
    %v2309 = vpack.c.b16 %v1589, %v1581
    %v2310 = vpack.c.b16 %v1590, %v1582
    %v2311 = vpack.c.b16 %v1591, %v1583
    %v2312 = vpack.c.b16 %v1600, %v1592
    %v2313 = vpack.c.b16 %v1601, %v1593
    %v2314 = vpack.c.b16 %v1602, %v1594
    %v2315 = vpack.c.b16 %v1603, %v1595
    %v2316 = vpack.c.b16 %v1604, %v1596
    %v2317 = vpack.c.b16 %v1605, %v1597
    %v2318 = vpack.c.b16 %v1606, %v1598
    %v2319 = vpack.c.b16 %v1607, %v1599
    %v2320 = vpack.c.b16 %v1616, %v1608
    %v2321 = vpack.c.b16 %v1617, %v1609
    %v2322 = vpack.c.b16 %v1618, %v1610
    %v2323 = vpack.c.b16 %v1619, %v1611
    %v2324 = vpack.c.b16 %v1620, %v1612
    %v2325 = vpack.c.b16 %v1621, %v1613
    %v2326 = vpack.c.b16 %v1622, %v1614
    %v2327 = vpack.c.b16 %v1623, %v1615
    %v2328 = vpack.c.b16 %v1632, %v1624
    %v2329 = vpack.c.b16 %v1633, %v1625
    %v2330 = vpack.c.b16 %v1634, %v1626
    %v2331 = vpack.c.b16 %v1635, %v1627
    %v2332 = vpack.c.b16 %v1636, %v1628
    %v2333 = vpack.c.b16 %v1637, %v1629
    %v2334 = vpack.c.b16 %v1638, %v1630
    %v2335 = vpack.c.b16 %v1639, %v1631
    %v2336 = vpack.c.b16 %v1648, %v1640
    %v2337 = vpack.c.b16 %v1649, %v1641
    %v2338 = vpack.c.b16 %v1650, %v1642
    %v2339 = vpack.c.b16 %v1651, %v1643
    %v2340 = vpack.c.b16 %v1652, %v1644
    %v2341 = vpack.c.b16 %v1653, %v1645
    %v2342 = vpack.c.b16 %v1654, %v1646
    %v2343 = vpack.c.b16 %v1655, %v1647
    %v2344 = vpack.c.b16 %v1664, %v1656
    %v2345 = vpack.c.b16 %v1665, %v1657
    %v2346 = vpack.c.b16 %v1666, %v1658
    %v2347 = vpack.c.b16 %v1667, %v1659
    %v2348 = vpack.c.b16 %v1668, %v1660
    %v2349 = vpack.c.b16 %v1669, %v1661
    %v2350 = vpack.c.b16 %v1670, %v1662
    %v2351 = vpack.c.b16 %v1671, %v1663
    %v2352 = vpack.c.b16 %v1680, %v1672
    %v2353 = vpack.c.b16 %v1681, %v1673
    %v2354 = vpack.c.b16 %v1682, %v1674
    %v2355 = vpack.c.b16 %v1683, %v1675
    %v2356 = vpack.c.b16 %v1684, %v1676
    %v2357 = vpack.c.b16 %v1685, %v1677
    %v2358 = vpack.c.b16 %v1686, %v1678
    %v2359 = vpack.c.b16 %v1687, %v1679
    %v2360 = vpack.c.b16 %v1696, %v1688
    %v2361 = vpack.c.b16 %v1697, %v1689
    %v2362 = vpack.c.b16 %v1698, %v1690
    %v2363 = vpack.c.b16 %v1699, %v1691
    %v2364 = vpack.c.b16 %v1700, %v1692
    %v2365 = vpack.c.b16 %v1701, %v1693
    %v2366 = vpack.c.b16 %v1702, %v1694
    %v2367 = vpack.c.b16 %v1703, %v1695
    %v2368 = vpack.c.b16 %v1712, %v1704
    %v2369 = vpack.c.b16 %v1713, %v1705
    %v2370 = vpack.c.b16 %v1714, %v1706
    %v2371 = vpack.c.b16 %v1715, %v1707
    %v2372 = vpack.c.b16 %v1716, %v1708
    %v2373 = vpack.c.b16 %v1717, %v1709
    %v2374 = vpack.c.b16 %v1718, %v1710
    %v2375 = vpack.c.b16 %v1719, %v1711
    %v2376 = vpack.c.b16 %v1728, %v1720
    %v2377 = vpack.c.b16 %v1729, %v1721
    %v2378 = vpack.c.b16 %v1730, %v1722
    %v2379 = vpack.c.b16 %v1731, %v1723
    %v2380 = vpack.c.b16 %v1732, %v1724
    %v2381 = vpack.c.b16 %v1733, %v1725
    %v2382 = vpack.c.b16 %v1734, %v1726
    %v2383 = vpack.c.b16 %v1735, %v1727
    %v2384 = vpack.c.b16 %v1744, %v1736
    %v2385 = vpack.c.b16 %v1745, %v1737
    %v2386 = vpack.c.b16 %v1746, %v1738
    %v2387 = vpack.c.b16 %v1747, %v1739
    %v2388 = vpack.c.b16 %v1748, %v1740
    %v2389 = vpack.c.b16 %v1749, %v1741
    %v2390 = vpack.c.b16 %v1750, %v1742
    %v2391 = vpack.c.b16 %v1751, %v1743
    %v2392 = vpack.c.b16 %v1760, %v1752
    %v2393 = vpack.c.b16 %v1761, %v1753
    %v2394 = vpack.c.b16 %v1762, %v1754
    %v2395 = vpack.c.b16 %v1763, %v1755
    %v2396 = vpack.c.b16 %v1764, %v1756
    %v2397 = vpack.c.b16 %v1765, %v1757
    %v2398 = vpack.c.b16 %v1766, %v1758
    %v2399 = vpack.c.b16 %v1767, %v1759
    %v2400 = vpack.c.b16 %v1776, %v1768
    %v2401 = vpack.c.b16 %v1777, %v1769
    %v2402 = vpack.c.b16 %v1778, %v1770
    %v2403 = vpack.c.b16 %v1779, %v1771
    %v2404 = vpack.c.b16 %v1780, %v1772
    %v2405 = vpack.c.b16 %v1781, %v1773
    %v2406 = vpack.c.b16 %v1782, %v1774
    %v2407 = vpack.c.b16 %v1783, %v1775
    %v2408 = vpack.c.b16 %v1792, %v1784
    %v2409 = vpack.c.b16 %v1793, %v1785
    %v2410 = vpack.c.b16 %v1794, %v1786
    %v2411 = vpack.c.b16 %v1795, %v1787
    %v2412 = vpack.c.b16 %v1796, %v1788
    %v2413 = vpack.c.b16 %v1797, %v1789
    %v2414 = vpack.c.b16 %v1798, %v1790
    %v2415 = vpack.c.b16 %v1799, %v1791
    %v2416 = vpack.c.b16 %v1808, %v1800
    %v2417 = vpack.c.b16 %v1809, %v1801
    %v2418 = vpack.c.b16 %v1810, %v1802
    %v2419 = vpack.c.b16 %v1811, %v1803
    %v2420 = vpack.c.b16 %v1812, %v1804
    %v2421 = vpack.c.b16 %v1813, %v1805
    %v2422 = vpack.c.b16 %v1814, %v1806
    %v2423 = vpack.c.b16 %v1815, %v1807
    %v2424 = vpack.c.b16 %v1824, %v1816
    %v2425 = vpack.c.b16 %v1825, %v1817
    %v2426 = vpack.c.b16 %v1826, %v1818
    %v2427 = vpack.c.b16 %v1827, %v1819
    %v2428 = vpack.c.b16 %v1828, %v1820
    %v2429 = vpack.c.b16 %v1829, %v1821
    %v2430 = vpack.c.b16 %v1830, %v1822
    %v2431 = vpack.c.b16 %v1831, %v1823
    %v2432 = vpack.c.b16 %v1840, %v1832
    %v2433 = vpack.c.b16 %v1841, %v1833
    %v2434 = vpack.c.b16 %v1842, %v1834
    %v2435 = vpack.c.b16 %v1843, %v1835
    %v2436 = vpack.c.b16 %v1844, %v1836
    %v2437 = vpack.c.b16 %v1845, %v1837
    %v2438 = vpack.c.b16 %v1846, %v1838
    %v2439 = vpack.c.b16 %v1847, %v1839
    %v2440 = vpack.c.b16 %v1856, %v1848
    %v2441 = vpack.c.b16 %v1857, %v1849
    %v2442 = vpack.c.b16 %v1858, %v1850
    %v2443 = vpack.c.b16 %v1859, %v1851
    %v2444 = vpack.c.b16 %v1860, %v1852
    %v2445 = vpack.c.b16 %v1861, %v1853
    %v2446 = vpack.c.b16 %v1862, %v1854
    %v2447 = vpack.c.b16 %v1863, %v1855
    %v2448 = vpack.c.b16 %v1872, %v1864
    %v2449 = vpack.c.b16 %v1873, %v1865
    %v2450 = vpack.c.b16 %v1874, %v1866
    %v2451 = vpack.c.b16 %v1875, %v1867
    %v2452 = vpack.c.b16 %v1876, %v1868
    %v2453 = vpack.c.b16 %v1877, %v1869
    %v2454 = vpack.c.b16 %v1878, %v1870
    %v2455 = vpack.c.b16 %v1879, %v1871
    %v2456 = vpack.c.b16 %v1888, %v1880
    %v2457 = vpack.c.b16 %v1889, %v1881
    %v2458 = vpack.c.b16 %v1890, %v1882
    %v2459 = vpack.c.b16 %v1891, %v1883
    %v2460 = vpack.c.b16 %v1892, %v1884
    %v2461 = vpack.c.b16 %v1893, %v1885
    %v2462 = vpack.c.b16 %v1894, %v1886
    %v2463 = vpack.c.b16 %v1895, %v1887
    %v2464 = vpack.c.b16 %v1904, %v1896
    %v2465 = vpack.c.b16 %v1905, %v1897
    %v2466 = vpack.c.b16 %v1906, %v1898
    %v2467 = vpack.c.b16 %v1907, %v1899
    %v2468 = vpack.c.b16 %v1908, %v1900
    %v2469 = vpack.c.b16 %v1909, %v1901
    %v2470 = vpack.c.b16 %v1910, %v1902
    %v2471 = vpack.c.b16 %v1911, %v1903
    %v2472 = vpack.c.b16 %v1920, %v1912
    %v2473 = vpack.c.b16 %v1921, %v1913
    %v2474 = vpack.c.b16 %v1922, %v1914
    %v2475 = vpack.c.b16 %v1923, %v1915
    %v2476 = vpack.c.b16 %v1924, %v1916
    %v2477 = vpack.c.b16 %v1925, %v1917
    %v2478 = vpack.c.b16 %v1926, %v1918
    %v2479 = vpack.c.b16 %v1927, %v1919
    %v2480 = vpack.c.b16 %v1936, %v1928
    %v2481 = vpack.c.b16 %v1937, %v1929
    %v2482 = vpack.c.b16 %v1938, %v1930
    %v2483 = vpack.c.b16 %v1939, %v1931
    %v2484 = vpack.c.b16 %v1940, %v1932
    %v2485 = vpack.c.b16 %v1941, %v1933
    %v2486 = vpack.c.b16 %v1942, %v1934
    %v2487 = vpack.c.b16 %v1943, %v1935
    %v2488 = vpack.c.b16 %v1952, %v1944
    %v2489 = vpack.c.b16 %v1953, %v1945
    %v2490 = vpack.c.b16 %v1954, %v1946
    %v2491 = vpack.c.b16 %v1955, %v1947
    %v2492 = vpack.c.b16 %v1956, %v1948
    %v2493 = vpack.c.b16 %v1957, %v1949
    %v2494 = vpack.c.b16 %v1958, %v1950
    %v2495 = vpack.c.b16 %v1959, %v1951
    %v2496 = vpack.c.b16 %v1968, %v1960
    %v2497 = vpack.c.b16 %v1969, %v1961
    %v2498 = vpack.c.b16 %v1970, %v1962
    %v2499 = vpack.c.b16 %v1971, %v1963
    %v2500 = vpack.c.b16 %v1972, %v1964
    %v2501 = vpack.c.b16 %v1973, %v1965
    %v2502 = vpack.c.b16 %v1974, %v1966
    %v2503 = vpack.c.b16 %v1975, %v1967
    %v2504 = vpack.c.b16 %v1984, %v1976
    %v2505 = vpack.c.b16 %v1985, %v1977
    %v2506 = vpack.c.b16 %v1986, %v1978
    %v2507 = vpack.c.b16 %v1987, %v1979
    %v2508 = vpack.c.b16 %v1988, %v1980
    %v2509 = vpack.c.b16 %v1989, %v1981
    %v2510 = vpack.c.b16 %v1990, %v1982
    %v2511 = vpack.c.b16 %v1991, %v1983
    %v2512 = vpack.c.b16 %v2000, %v1992
    %v2513 = vpack.c.b16 %v2001, %v1993
    %v2514 = vpack.c.b16 %v2002, %v1994
    %v2515 = vpack.c.b16 %v2003, %v1995
    %v2516 = vpack.c.b16 %v2004, %v1996
    %v2517 = vpack.c.b16 %v2005, %v1997
    %v2518 = vpack.c.b16 %v2006, %v1998
    %v2519 = vpack.c.b16 %v2007, %v1999
    %v2520 = vpack.c.b16 %v2016, %v2008
    %v2521 = vpack.c.b16 %v2017, %v2009
    %v2522 = vpack.c.b16 %v2018, %v2010
    %v2523 = vpack.c.b16 %v2019, %v2011
    %v2524 = vpack.c.b16 %v2020, %v2012
    %v2525 = vpack.c.b16 %v2021, %v2013
    %v2526 = vpack.c.b16 %v2022, %v2014
    %v2527 = vpack.c.b16 %v2023, %v2015
    %v2528 = vpack.c.b16 %v2032, %v2024
    %v2529 = vpack.c.b16 %v2033, %v2025
    %v2530 = vpack.c.b16 %v2034, %v2026
    %v2531 = vpack.c.b16 %v2035, %v2027
    %v2532 = vpack.c.b16 %v2036, %v2028
    %v2533 = vpack.c.b16 %v2037, %v2029
    %v2534 = vpack.c.b16 %v2038, %v2030
    %v2535 = vpack.c.b16 %v2039, %v2031
    %v2536 = vpack.c.b16 %v2048, %v2040
    %v2537 = vpack.c.b16 %v2049, %v2041
    %v2538 = vpack.c.b16 %v2050, %v2042
    %v2539 = vpack.c.b16 %v2051, %v2043
    %v2540 = vpack.c.b16 %v2052, %v2044
    %v2541 = vpack.c.b16 %v2053, %v2045
    %v2542 = vpack.c.b16 %v2054, %v2046
    %v2543 = vpack.c.b16 %v2055, %v2047
    %v2544 = vpack.c.b16 %v2064, %v2056
    %v2545 = vpack.c.b16 %v2065, %v2057
    %v2546 = vpack.c.b16 %v2066, %v2058
    %v2547 = vpack.c.b16 %v2067, %v2059
    %v2548 = vpack.c.b16 %v2068, %v2060
    %v2549 = vpack.c.b16 %v2069, %v2061
    %v2550 = vpack.c.b16 %v2070, %v2062
    %v2551 = vpack.c.b16 %v2071, %v2063
    %v2552 = vpack.c.b16 %v2080, %v2072
    %v2553 = vpack.c.b16 %v2081, %v2073
    %v2554 = vpack.c.b16 %v2082, %v2074
    %v2555 = vpack.c.b16 %v2083, %v2075
    %v2556 = vpack.c.b16 %v2084, %v2076
    %v2557 = vpack.c.b16 %v2085, %v2077
    %v2558 = vpack.c.b16 %v2086, %v2078
    %v2559 = vpack.c.b16 %v2087, %v2079
    %v2560 = vpack.c.b16 %v2096, %v2088
    %v2561 = vpack.c.b16 %v2097, %v2089
    %v2562 = vpack.c.b16 %v2098, %v2090
    %v2563 = vpack.c.b16 %v2099, %v2091
    %v2564 = vpack.c.b16 %v2100, %v2092
    %v2565 = vpack.c.b16 %v2101, %v2093
    %v2566 = vpack.c.b16 %v2102, %v2094
    %v2567 = vpack.c.b16 %v2103, %v2095
    %v2568 = vpack.c.b16 %v2112, %v2104
    %v2569 = vpack.c.b16 %v2113, %v2105
    %v2570 = vpack.c.b16 %v2114, %v2106
    %v2571 = vpack.c.b16 %v2115, %v2107
    %v2572 = vpack.c.b16 %v2116, %v2108
    %v2573 = vpack.c.b16 %v2117, %v2109
    %v2574 = vpack.c.b16 %v2118, %v2110
    %v2575 = vpack.c.b16 %v2119, %v2111
    %v2576 = vpack.c.b16 %v2128, %v2120
    %v2577 = vpack.c.b16 %v2129, %v2121
    %v2578 = vpack.c.b16 %v2130, %v2122
    %v2579 = vpack.c.b16 %v2131, %v2123
    %v2580 = vpack.c.b16 %v2132, %v2124
    %v2581 = vpack.c.b16 %v2133, %v2125
    %v2582 = vpack.c.b16 %v2134, %v2126
    %v2583 = vpack.c.b16 %v2135, %v2127
    %3032 = vmatprep.subr.bf16.mxu0 %v2137
    %3033 = vmatpush1.bf16.msra.mxu0 %v2136
    %3034 = vmatprep.subr.bf16.mxu0 %v2145
    %3035 = vmatpush1.bf16.msra.mxu0 %v2144
    %3036 = vmatprep.subr.bf16.mxu0 %v2153
    %3037 = vmatpush1.bf16.msra.mxu0 %v2152
    %3038 = vmatprep.subr.bf16.mxu0 %v2161
    %3039 = vmatpush1.bf16.msra.mxu0 %v2160
    %3040 = vmatprep.subr.bf16.mxu0 %v2169
    %3041 = vmatpush1.bf16.msra.mxu0 %v2168
    %3042 = vmatprep.subr.bf16.mxu0 %v2177
    %3043 = vmatpush1.bf16.msra.mxu0 %v2176
    %3044 = vmatprep.subr.bf16.mxu0 %v2185
    %3045 = vmatpush1.bf16.msra.mxu0 %v2184
    %3046 = vmatprep.subr.bf16.mxu0 %v2193
    %3047 = vmatpush1.bf16.msra.mxu0 %v2192
    %3048 = vmatprep.subr.bf16.mxu0 %v2201
    %3049 = vmatpush1.bf16.msra.mxu0 %v2200
    %3050 = vmatprep.subr.bf16.mxu0 %v2209
    %3051 = vmatpush1.bf16.msra.mxu0 %v2208
    %3052 = vmatprep.subr.bf16.mxu0 %v2217
    %3053 = vmatpush1.bf16.msra.mxu0 %v2216
    %3054 = vmatprep.subr.bf16.mxu0 %v2225
    %3055 = vmatpush1.bf16.msra.mxu0 %v2224
    %3056 = vmatprep.subr.bf16.mxu0 %v2233
    %3057 = vmatpush1.bf16.msra.mxu0 %v2232
    %3058 = vmatprep.subr.bf16.mxu0 %v2241
    %3059 = vmatpush1.bf16.msra.mxu0 %v2240
    %3060 = vmatprep.subr.bf16.mxu0 %v2249
    %3061 = vmatpush1.bf16.msra.mxu0 %v2248
    %3062 = vmatprep.subr.bf16.mxu0 %v2257
    %3063 = vmatpush1.bf16.msra.mxu0 %v2256
    %3064 = vmatprep.mubr.bf16.mxu0 %v779
    %3065 = vmatmul.mubr.bf16.gmra.mrb[0].mxu0 %v778
    %v3066 = vpop.f32.mrb[0].mxu0
    %v3067 = vadd.f32 %v730, %v3066
    %v3068 = vpop.f32.mrb[0].mxu0
    %v3069 = vadd.f32 %v734, %v3068
    %v3070 = vpop.f32.mrb[0].mxu0
    %v3071 = vpop.f32.mrb[0].mxu0
    %3072 = vdwg.mxu0
    %3073 = vmatprep.subr.bf16.mxu0 %v2265
    %3074 = vmatpush1.bf16.msra.mxu0 %v2264
    %3075 = vmatprep.subr.bf16.mxu0 %v2273
    %3076 = vmatpush1.bf16.msra.mxu0 %v2272
    %3077 = vmatprep.subr.bf16.mxu0 %v2281
    %3078 = vmatpush1.bf16.msra.mxu0 %v2280
    %3079 = vmatprep.subr.bf16.mxu0 %v2289
    %3080 = vmatpush1.bf16.msra.mxu0 %v2288
    %3081 = vmatprep.subr.bf16.mxu0 %v2297
    %3082 = vmatpush1.bf16.msra.mxu0 %v2296
    %3083 = vmatprep.subr.bf16.mxu0 %v2305
    %3084 = vmatpush1.bf16.msra.mxu0 %v2304
    %3085 = vmatprep.subr.bf16.mxu0 %v2313
    %3086 = vmatpush1.bf16.msra.mxu0 %v2312
    %3087 = vmatprep.subr.bf16.mxu0 %v2321
    %3088 = vmatpush1.bf16.msra.mxu0 %v2320
    %3089 = vmatprep.subr.bf16.mxu0 %v2329
    %3090 = vmatpush1.bf16.msra.mxu0 %v2328
    %3091 = vmatprep.subr.bf16.mxu0 %v2337
    %3092 = vmatpush1.bf16.msra.mxu0 %v2336
    %3093 = vmatprep.subr.bf16.mxu0 %v2345
    %3094 = vmatpush1.bf16.msra.mxu0 %v2344
    %3095 = vmatprep.subr.bf16.mxu0 %v2353
    %3096 = vmatpush1.bf16.msra.mxu0 %v2352
    %3097 = vmatprep.subr.bf16.mxu0 %v2361
    %3098 = vmatpush1.bf16.msra.mxu0 %v2360
    %3099 = vmatprep.subr.bf16.mxu0 %v2369
    %3100 = vmatpush1.bf16.msra.mxu0 %v2368
    %3101 = vmatprep.subr.bf16.mxu0 %v2377
    %3102 = vmatpush1.bf16.msra.mxu0 %v2376
    %3103 = vmatprep.subr.bf16.mxu0 %v2385
    %3104 = vmatpush1.bf16.msra.mxu0 %v2384
    %3105 = vmatprep.mubr.bf16.mxu0 %v781
    %3106 = vmatmul.mubr.bf16.gmra.mrb[0].mxu0 %v780
    %v3107 = vpop.f32.mrb[0].mxu0
    %v3108 = vadd.f32 %v3067, %v3107
    %v3109 = vpop.f32.mrb[0].mxu0
    %v3110 = vadd.f32 %v3069, %v3109
    %v3111 = vpop.f32.mrb[0].mxu0
    %v3112 = vpop.f32.mrb[0].mxu0
    %3113 = vdwg.mxu0
    %3114 = vmatprep.subr.bf16.mxu0 %v2393
    %3115 = vmatpush1.bf16.msra.mxu0 %v2392
    %3116 = vmatprep.subr.bf16.mxu0 %v2401
    %3117 = vmatpush1.bf16.msra.mxu0 %v2400
    %3118 = vmatprep.subr.bf16.mxu0 %v2409
    %3119 = vmatpush1.bf16.msra.mxu0 %v2408
    %3120 = vmatprep.subr.bf16.mxu0 %v2417
    %3121 = vmatpush1.bf16.msra.mxu0 %v2416
    %3122 = vmatprep.subr.bf16.mxu0 %v2425
    %3123 = vmatpush1.bf16.msra.mxu0 %v2424
    %3124 = vmatprep.subr.bf16.mxu0 %v2433
    %3125 = vmatpush1.bf16.msra.mxu0 %v2432
    %3126 = vmatprep.subr.bf16.mxu0 %v2441
    %3127 = vmatpush1.bf16.msra.mxu0 %v2440
    %3128 = vmatprep.subr.bf16.mxu0 %v2449
    %3129 = vmatpush1.bf16.msra.mxu0 %v2448
    %3130 = vmatprep.subr.bf16.mxu0 %v2457
    %3131 = vmatpush1.bf16.msra.mxu0 %v2456
    %3132 = vmatprep.subr.bf16.mxu0 %v2465
    %3133 = vmatpush1.bf16.msra.mxu0 %v2464
    %3134 = vmatprep.subr.bf16.mxu0 %v2473
    %3135 = vmatpush1.bf16.msra.mxu0 %v2472
    %3136 = vmatprep.subr.bf16.mxu0 %v2481
    %3137 = vmatpush1.bf16.msra.mxu0 %v2480
    %3138 = vmatprep.subr.bf16.mxu0 %v2489
    %3139 = vmatpush1.bf16.msra.mxu0 %v2488
    %3140 = vmatprep.subr.bf16.mxu0 %v2497
    %3141 = vmatpush1.bf16.msra.mxu0 %v2496
    %3142 = vmatprep.subr.bf16.mxu0 %v2505
    %3143 = vmatpush1.bf16.msra.mxu0 %v2504
    %3144 = vmatprep.subr.bf16.mxu0 %v2513
    %3145 = vmatpush1.bf16.msra.mxu0 %v2512
    %3146 = vmatprep.mubr.bf16.mxu0 %v783
    %3147 = vmatmul.mubr.bf16.gmra.mrb[0].mxu0 %v782
    %v3148 = vpop.f32.mrb[0].mxu0
    %v3149 = vadd.f32 %v3108, %v3148
    %v3150 = vpop.f32.mrb[0].mxu0
    %v3151 = vadd.f32 %v3110, %v3150
    %v3152 = vpop.f32.mrb[0].mxu0
    %v3153 = vpop.f32.mrb[0].mxu0
    %3154 = vdwg.mxu0
    %3155 = vmatprep.subr.bf16.mxu0 %v2521
    %3156 = vmatpush1.bf16.msra.mxu0 %v2520
    %3157 = vmatprep.subr.bf16.mxu0 %v2529
    %3158 = vmatpush1.bf16.msra.mxu0 %v2528
    %3159 = vmatprep.subr.bf16.mxu0 %v2537
    %3160 = vmatpush1.bf16.msra.mxu0 %v2536
    %3161 = vmatprep.subr.bf16.mxu0 %v2545
    %3162 = vmatpush1.bf16.msra.mxu0 %v2544
    %3163 = vmatprep.subr.bf16.mxu0 %v2553
    %3164 = vmatpush1.bf16.msra.mxu0 %v2552
    %3165 = vmatprep.subr.bf16.mxu0 %v2561
    %3166 = vmatpush1.bf16.msra.mxu0 %v2560
    %3167 = vmatprep.subr.bf16.mxu0 %v2569
    %3168 = vmatpush1.bf16.msra.mxu0 %v2568
    %3169 = vmatprep.subr.bf16.mxu0 %v2577
    %3170 = vmatpush1.bf16.msra.mxu0 %v2576
    %3171 = vmatprep.subr.bf16.mxu0 0
    %3172 = vmatpush1.bf16.msra.mxu0 0
    %3173 = vmatprep.subr.bf16.mxu0 0
    %3174 = vmatpush1.bf16.msra.mxu0 0
    %3175 = vmatprep.subr.bf16.mxu0 0
    %3176 = vmatpush1.bf16.msra.mxu0 0
    %3177 = vmatprep.subr.bf16.mxu0 0
    %3178 = vmatpush1.bf16.msra.mxu0 0
    %3179 = vmatprep.subr.bf16.mxu0 0
    %3180 = vmatpush1.bf16.msra.mxu0 0
    %3181 = vmatprep.subr.bf16.mxu0 0
    %3182 = vmatpush1.bf16.msra.mxu0 0
    %3183 = vmatprep.subr.bf16.mxu0 0
    %3184 = vmatpush1.bf16.msra.mxu0 0
    %3185 = vmatprep.subr.bf16.mxu0 0
    %3186 = vmatpush1.bf16.msra.mxu0 0
    %3187 = vmatprep.mubr.bf16.mxu0 0
    %3188 = vmatmul.mubr.bf16.gmra.mrb[0].mxu0 %v784
    %v3189 = vpop.f32.mrb[0].mxu0
    %v3190 = vadd.f32 %v3149, %v3189
    %v3191 = vpop.f32.mrb[0].mxu0
    %v3192 = vadd.f32 %v3151, %v3191
    %v3193 = vpop.f32.mrb[0].mxu0
    %v3194 = vpop.f32.mrb[0].mxu0
    %3195 = vdwg.mxu0
    %3196 = vmatprep.subr.bf16.mxu0 %v2139
    %3197 = vmatpush1.bf16.msra.mxu0 %v2138
    %3198 = vmatprep.subr.bf16.mxu0 %v2147
    %3199 = vmatpush1.bf16.msra.mxu0 %v2146
    %3200 = vmatprep.subr.bf16.mxu0 %v2155
    %3201 = vmatpush1.bf16.msra.mxu0 %v2154
    %3202 = vmatprep.subr.bf16.mxu0 %v2163
    %3203 = vmatpush1.bf16.msra.mxu0 %v2162
    %3204 = vmatprep.subr.bf16.mxu0 %v2171
    %3205 = vmatpush1.bf16.msra.mxu0 %v2170
    %3206 = vmatprep.subr.bf16.mxu0 %v2179
    %3207 = vmatpush1.bf16.msra.mxu0 %v2178
    %3208 = vmatprep.subr.bf16.mxu0 %v2187
    %3209 = vmatpush1.bf16.msra.mxu0 %v2186
    %3210 = vmatprep.subr.bf16.mxu0 %v2195
    %3211 = vmatpush1.bf16.msra.mxu0 %v2194
    %3212 = vmatprep.subr.bf16.mxu0 %v2203
    %3213 = vmatpush1.bf16.msra.mxu0 %v2202
    %3214 = vmatprep.subr.bf16.mxu0 %v2211
    %3215 = vmatpush1.bf16.msra.mxu0 %v2210
    %3216 = vmatprep.subr.bf16.mxu0 %v2219
    %3217 = vmatpush1.bf16.msra.mxu0 %v2218
    %3218 = vmatprep.subr.bf16.mxu0 %v2227
    %3219 = vmatpush1.bf16.msra.mxu0 %v2226
    %3220 = vmatprep.subr.bf16.mxu0 %v2235
    %3221 = vmatpush1.bf16.msra.mxu0 %v2234
    %3222 = vmatprep.subr.bf16.mxu0 %v2243
    %3223 = vmatpush1.bf16.msra.mxu0 %v2242
    %3224 = vmatprep.subr.bf16.mxu0 %v2251
    %3225 = vmatpush1.bf16.msra.mxu0 %v2250
    %3226 = vmatprep.subr.bf16.mxu0 %v2259
    %3227 = vmatpush1.bf16.msra.mxu0 %v2258
    %3228 = vmatprep.mubr.bf16.mxu0 %v779
    %3229 = vmatmul.mubr.bf16.gmra.mrb[0].mxu0 %v778
    %v3230 = vpop.f32.mrb[0].mxu0
    %v3231 = vadd.f32 %v738, %v3230
    %v3232 = vpop.f32.mrb[0].mxu0
    %v3233 = vadd.f32 %v742, %v3232
    %v3234 = vpop.f32.mrb[0].mxu0
    %v3235 = vpop.f32.mrb[0].mxu0
    %3236 = vdwg.mxu0
    %3237 = vmatprep.subr.bf16.mxu0 %v2267
    %3238 = vmatpush1.bf16.msra.mxu0 %v2266
    %3239 = vmatprep.subr.bf16.mxu0 %v2275
    %3240 = vmatpush1.bf16.msra.mxu0 %v2274
    %3241 = vmatprep.subr.bf16.mxu0 %v2283
    %3242 = vmatpush1.bf16.msra.mxu0 %v2282
    %3243 = vmatprep.subr.bf16.mxu0 %v2291
    %3244 = vmatpush1.bf16.msra.mxu0 %v2290
    %3245 = vmatprep.subr.bf16.mxu0 %v2299
    %3246 = vmatpush1.bf16.msra.mxu0 %v2298
    %3247 = vmatprep.subr.bf16.mxu0 %v2307
    %3248 = vmatpush1.bf16.msra.mxu0 %v2306
    %3249 = vmatprep.subr.bf16.mxu0 %v2315
    %3250 = vmatpush1.bf16.msra.mxu0 %v2314
    %3251 = vmatprep.subr.bf16.mxu0 %v2323
    %3252 = vmatpush1.bf16.msra.mxu0 %v2322
    %3253 = vmatprep.subr.bf16.mxu0 %v2331
    %3254 = vmatpush1.bf16.msra.mxu0 %v2330
    %3255 = vmatprep.subr.bf16.mxu0 %v2339
    %3256 = vmatpush1.bf16.msra.mxu0 %v2338
    %3257 = vmatprep.subr.bf16.mxu0 %v2347
    %3258 = vmatpush1.bf16.msra.mxu0 %v2346
    %3259 = vmatprep.subr.bf16.mxu0 %v2355
    %3260 = vmatpush1.bf16.msra.mxu0 %v2354
    %3261 = vmatprep.subr.bf16.mxu0 %v2363
    %3262 = vmatpush1.bf16.msra.mxu0 %v2362
    %3263 = vmatprep.subr.bf16.mxu0 %v2371
    %3264 = vmatpush1.bf16.msra.mxu0 %v2370
    %3265 = vmatprep.subr.bf16.mxu0 %v2379
    %3266 = vmatpush1.bf16.msra.mxu0 %v2378
    %3267 = vmatprep.subr.bf16.mxu0 %v2387
    %3268 = vmatpush1.bf16.msra.mxu0 %v2386
    %3269 = vmatprep.mubr.bf16.mxu0 %v781
    %3270 = vmatmul.mubr.bf16.gmra.mrb[0].mxu0 %v780
    %v3271 = vpop.f32.mrb[0].mxu0
    %v3272 = vadd.f32 %v3231, %v3271
    %v3273 = vpop.f32.mrb[0].mxu0
    %v3274 = vadd.f32 %v3233, %v3273
    %v3275 = vpop.f32.mrb[0].mxu0
    %v3276 = vpop.f32.mrb[0].mxu0
    %3277 = vdwg.mxu0
    %3278 = vmatprep.subr.bf16.mxu0 %v2395
    %3279 = vmatpush1.bf16.msra.mxu0 %v2394
    %3280 = vmatprep.subr.bf16.mxu0 %v2403
    %3281 = vmatpush1.bf16.msra.mxu0 %v2402
    %3282 = vmatprep.subr.bf16.mxu0 %v2411
    %3283 = vmatpush1.bf16.msra.mxu0 %v2410
    %3284 = vmatprep.subr.bf16.mxu0 %v2419
    %3285 = vmatpush1.bf16.msra.mxu0 %v2418
    %3286 = vmatprep.subr.bf16.mxu0 %v2427
    %3287 = vmatpush1.bf16.msra.mxu0 %v2426
    %3288 = vmatprep.subr.bf16.mxu0 %v2435
    %3289 = vmatpush1.bf16.msra.mxu0 %v2434
    %3290 = vmatprep.subr.bf16.mxu0 %v2443
    %3291 = vmatpush1.bf16.msra.mxu0 %v2442
    %3292 = vmatprep.subr.bf16.mxu0 %v2451
    %3293 = vmatpush1.bf16.msra.mxu0 %v2450
    %3294 = vmatprep.subr.bf16.mxu0 %v2459
    %3295 = vmatpush1.bf16.msra.mxu0 %v2458
    %3296 = vmatprep.subr.bf16.mxu0 %v2467
    %3297 = vmatpush1.bf16.msra.mxu0 %v2466
    %3298 = vmatprep.subr.bf16.mxu0 %v2475
    %3299 = vmatpush1.bf16.msra.mxu0 %v2474
    %3300 = vmatprep.subr.bf16.mxu0 %v2483
    %3301 = vmatpush1.bf16.msra.mxu0 %v2482
    %3302 = vmatprep.subr.bf16.mxu0 %v2491
    %3303 = vmatpush1.bf16.msra.mxu0 %v2490
    %3304 = vmatprep.subr.bf16.mxu0 %v2499
    %3305 = vmatpush1.bf16.msra.mxu0 %v2498
    %3306 = vmatprep.subr.bf16.mxu0 %v2507
    %3307 = vmatpush1.bf16.msra.mxu0 %v2506
    %3308 = vmatprep.subr.bf16.mxu0 %v2515
    %3309 = vmatpush1.bf16.msra.mxu0 %v2514
    %3310 = vmatprep.mubr.bf16.mxu0 %v783
    %3311 = vmatmul.mubr.bf16.gmra.mrb[0].mxu0 %v782
    %v3312 = vpop.f32.mrb[0].mxu0
    %v3313 = vadd.f32 %v3272, %v3312
    %v3314 = vpop.f32.mrb[0].mxu0
    %v3315 = vadd.f32 %v3274, %v3314
    %v3316 = vpop.f32.mrb[0].mxu0
    %v3317 = vpop.f32.mrb[0].mxu0
    %3318 = vdwg.mxu0
    %3319 = vmatprep.subr.bf16.mxu0 %v2523
    %3320 = vmatpush1.bf16.msra.mxu0 %v2522
    %3321 = vmatprep.subr.bf16.mxu0 %v2531
    %3322 = vmatpush1.bf16.msra.mxu0 %v2530
    %3323 = vmatprep.subr.bf16.mxu0 %v2539
    %3324 = vmatpush1.bf16.msra.mxu0 %v2538
    %3325 = vmatprep.subr.bf16.mxu0 %v2547
    %3326 = vmatpush1.bf16.msra.mxu0 %v2546
    %3327 = vmatprep.subr.bf16.mxu0 %v2555
    %3328 = vmatpush1.bf16.msra.mxu0 %v2554
    %3329 = vmatprep.subr.bf16.mxu0 %v2563
    %3330 = vmatpush1.bf16.msra.mxu0 %v2562
    %3331 = vmatprep.subr.bf16.mxu0 %v2571
    %3332 = vmatpush1.bf16.msra.mxu0 %v2570
    %3333 = vmatprep.subr.bf16.mxu0 %v2579
    %3334 = vmatpush1.bf16.msra.mxu0 %v2578
    %3335 = vmatprep.subr.bf16.mxu0 0
    %3336 = vmatpush1.bf16.msra.mxu0 0
    %3337 = vmatprep.subr.bf16.mxu0 0
    %3338 = vmatpush1.bf16.msra.mxu0 0
    %3339 = vmatprep.subr.bf16.mxu0 0
    %3340 = vmatpush1.bf16.msra.mxu0 0
    %3341 = vmatprep.subr.bf16.mxu0 0
    %3342 = vmatpush1.bf16.msra.mxu0 0
    %3343 = vmatprep.subr.bf16.mxu0 0
    %3344 = vmatpush1.bf16.msra.mxu0 0
    %3345 = vmatprep.subr.bf16.mxu0 0
    %3346 = vmatpush1.bf16.msra.mxu0 0
    %3347 = vmatprep.subr.bf16.mxu0 0
    %3348 = vmatpush1.bf16.msra.mxu0 0
    %3349 = vmatprep.subr.bf16.mxu0 0
    %3350 = vmatpush1.bf16.msra.mxu0 0
    %3351 = vmatprep.mubr.bf16.mxu0 0
    %3352 = vmatmul.mubr.bf16.gmra.mrb[0].mxu0 %v784
    %v3353 = vpop.f32.mrb[0].mxu0
    %v3354 = vadd.f32 %v3313, %v3353
    %v3355 = vpop.f32.mrb[0].mxu0
    %v3356 = vadd.f32 %v3315, %v3355
    %v3357 = vpop.f32.mrb[0].mxu0
    %v3358 = vpop.f32.mrb[0].mxu0
    %3359 = vdwg.mxu0
    %3360 = vmatprep.subr.bf16.mxu0 %v2141
    %3361 = vmatpush1.bf16.msra.mxu0 %v2140
    %3362 = vmatprep.subr.bf16.mxu0 %v2149
    %3363 = vmatpush1.bf16.msra.mxu0 %v2148
    %3364 = vmatprep.subr.bf16.mxu0 %v2157
    %3365 = vmatpush1.bf16.msra.mxu0 %v2156
    %3366 = vmatprep.subr.bf16.mxu0 %v2165
    %3367 = vmatpush1.bf16.msra.mxu0 %v2164
    %3368 = vmatprep.subr.bf16.mxu0 %v2173
    %3369 = vmatpush1.bf16.msra.mxu0 %v2172
    %3370 = vmatprep.subr.bf16.mxu0 %v2181
    %3371 = vmatpush1.bf16.msra.mxu0 %v2180
    %3372 = vmatprep.subr.bf16.mxu0 %v2189
    %3373 = vmatpush1.bf16.msra.mxu0 %v2188
    %3374 = vmatprep.subr.bf16.mxu0 %v2197
    %3375 = vmatpush1.bf16.msra.mxu0 %v2196
    %3376 = vmatprep.subr.bf16.mxu0 %v2205
    %3377 = vmatpush1.bf16.msra.mxu0 %v2204
    %3378 = vmatprep.subr.bf16.mxu0 %v2213
    %3379 = vmatpush1.bf16.msra.mxu0 %v2212
    %3380 = vmatprep.subr.bf16.mxu0 %v2221
    %3381 = vmatpush1.bf16.msra.mxu0 %v2220
    %3382 = vmatprep.subr.bf16.mxu0 %v2229
    %3383 = vmatpush1.bf16.msra.mxu0 %v2228
    %3384 = vmatprep.subr.bf16.mxu0 %v2237
    %3385 = vmatpush1.bf16.msra.mxu0 %v2236
    %3386 = vmatprep.subr.bf16.mxu0 %v2245
    %3387 = vmatpush1.bf16.msra.mxu0 %v2244
    %3388 = vmatprep.subr.bf16.mxu0 %v2253
    %3389 = vmatpush1.bf16.msra.mxu0 %v2252
    %3390 = vmatprep.subr.bf16.mxu0 %v2261
    %3391 = vmatpush1.bf16.msra.mxu0 %v2260
    %3392 = vmatprep.mubr.bf16.mxu0 %v779
    %3393 = vmatmul.mubr.bf16.gmra.mrb[0].mxu0 %v778
    %v3394 = vpop.f32.mrb[0].mxu0
    %v3395 = vadd.f32 %v746, %v3394
    %v3396 = vpop.f32.mrb[0].mxu0
    %v3397 = vadd.f32 %v750, %v3396
    %v3398 = vpop.f32.mrb[0].mxu0
    %v3399 = vpop.f32.mrb[0].mxu0
    %3400 = vdwg.mxu0
    %3401 = vmatprep.subr.bf16.mxu0 %v2269
    %3402 = vmatpush1.bf16.msra.mxu0 %v2268
    %3403 = vmatprep.subr.bf16.mxu0 %v2277
    %3404 = vmatpush1.bf16.msra.mxu0 %v2276
    %3405 = vmatprep.subr.bf16.mxu0 %v2285
    %3406 = vmatpush1.bf16.msra.mxu0 %v2284
    %3407 = vmatprep.subr.bf16.mxu0 %v2293
    %3408 = vmatpush1.bf16.msra.mxu0 %v2292
    %3409 = vmatprep.subr.bf16.mxu0 %v2301
    %3410 = vmatpush1.bf16.msra.mxu0 %v2300
    %3411 = vmatprep.subr.bf16.mxu0 %v2309
    %3412 = vmatpush1.bf16.msra.mxu0 %v2308
    %3413 = vmatprep.subr.bf16.mxu0 %v2317
    %3414 = vmatpush1.bf16.msra.mxu0 %v2316
    %3415 = vmatprep.subr.bf16.mxu0 %v2325
    %3416 = vmatpush1.bf16.msra.mxu0 %v2324
    %3417 = vmatprep.subr.bf16.mxu0 %v2333
    %3418 = vmatpush1.bf16.msra.mxu0 %v2332
    %3419 = vmatprep.subr.bf16.mxu0 %v2341
    %3420 = vmatpush1.bf16.msra.mxu0 %v2340
    %3421 = vmatprep.subr.bf16.mxu0 %v2349
    %3422 = vmatpush1.bf16.msra.mxu0 %v2348
    %3423 = vmatprep.subr.bf16.mxu0 %v2357
    %3424 = vmatpush1.bf16.msra.mxu0 %v2356
    %3425 = vmatprep.subr.bf16.mxu0 %v2365
    %3426 = vmatpush1.bf16.msra.mxu0 %v2364
    %3427 = vmatprep.subr.bf16.mxu0 %v2373
    %3428 = vmatpush1.bf16.msra.mxu0 %v2372
    %3429 = vmatprep.subr.bf16.mxu0 %v2381
    %3430 = vmatpush1.bf16.msra.mxu0 %v2380
    %3431 = vmatprep.subr.bf16.mxu0 %v2389
    %3432 = vmatpush1.bf16.msra.mxu0 %v2388
    %3433 = vmatprep.mubr.bf16.mxu0 %v781
    %3434 = vmatmul.mubr.bf16.gmra.mrb[0].mxu0 %v780
    %v3435 = vpop.f32.mrb[0].mxu0
    %v3436 = vadd.f32 %v3395, %v3435
    %v3437 = vpop.f32.mrb[0].mxu0
    %v3438 = vadd.f32 %v3397, %v3437
    %v3439 = vpop.f32.mrb[0].mxu0
    %v3440 = vpop.f32.mrb[0].mxu0
    %3441 = vdwg.mxu0
    %3442 = vmatprep.subr.bf16.mxu0 %v2397
    %3443 = vmatpush1.bf16.msra.mxu0 %v2396
    %3444 = vmatprep.subr.bf16.mxu0 %v2405
    %3445 = vmatpush1.bf16.msra.mxu0 %v2404
    %3446 = vmatprep.subr.bf16.mxu0 %v2413
    %3447 = vmatpush1.bf16.msra.mxu0 %v2412
    %3448 = vmatprep.subr.bf16.mxu0 %v2421
    %3449 = vmatpush1.bf16.msra.mxu0 %v2420
    %3450 = vmatprep.subr.bf16.mxu0 %v2429
    %3451 = vmatpush1.bf16.msra.mxu0 %v2428
    %3452 = vmatprep.subr.bf16.mxu0 %v2437
    %3453 = vmatpush1.bf16.msra.mxu0 %v2436
    %3454 = vmatprep.subr.bf16.mxu0 %v2445
    %3455 = vmatpush1.bf16.msra.mxu0 %v2444
    %3456 = vmatprep.subr.bf16.mxu0 %v2453
    %3457 = vmatpush1.bf16.msra.mxu0 %v2452
    %3458 = vmatprep.subr.bf16.mxu0 %v2461
    %3459 = vmatpush1.bf16.msra.mxu0 %v2460
    %3460 = vmatprep.subr.bf16.mxu0 %v2469
    %3461 = vmatpush1.bf16.msra.mxu0 %v2468
    %3462 = vmatprep.subr.bf16.mxu0 %v2477
    %3463 = vmatpush1.bf16.msra.mxu0 %v2476
    %3464 = vmatprep.subr.bf16.mxu0 %v2485
    %3465 = vmatpush1.bf16.msra.mxu0 %v2484
    %3466 = vmatprep.subr.bf16.mxu0 %v2493
    %3467 = vmatpush1.bf16.msra.mxu0 %v2492
    %3468 = vmatprep.subr.bf16.mxu0 %v2501
    %3469 = vmatpush1.bf16.msra.mxu0 %v2500
    %3470 = vmatprep.subr.bf16.mxu0 %v2509
    %3471 = vmatpush1.bf16.msra.mxu0 %v2508
    %3472 = vmatprep.subr.bf16.mxu0 %v2517
    %3473 = vmatpush1.bf16.msra.mxu0 %v2516
    %3474 = vmatprep.mubr.bf16.mxu0 %v783
    %3475 = vmatmul.mubr.bf16.gmra.mrb[0].mxu0 %v782
    %v3476 = vpop.f32.mrb[0].mxu0
    %v3477 = vadd.f32 %v3436, %v3476
    %v3478 = vpop.f32.mrb[0].mxu0
    %v3479 = vadd.f32 %v3438, %v3478
    %v3480 = vpop.f32.mrb[0].mxu0
    %v3481 = vpop.f32.mrb[0].mxu0
    %3482 = vdwg.mxu0
    %3483 = vmatprep.subr.bf16.mxu0 %v2525
    %3484 = vmatpush1.bf16.msra.mxu0 %v2524
    %3485 = vmatprep.subr.bf16.mxu0 %v2533
    %3486 = vmatpush1.bf16.msra.mxu0 %v2532
    %3487 = vmatprep.subr.bf16.mxu0 %v2541
    %3488 = vmatpush1.bf16.msra.mxu0 %v2540
    %3489 = vmatprep.subr.bf16.mxu0 %v2549
    %3490 = vmatpush1.bf16.msra.mxu0 %v2548
    %3491 = vmatprep.subr.bf16.mxu0 %v2557
    %3492 = vmatpush1.bf16.msra.mxu0 %v2556
    %3493 = vmatprep.subr.bf16.mxu0 %v2565
    %3494 = vmatpush1.bf16.msra.mxu0 %v2564
    %3495 = vmatprep.subr.bf16.mxu0 %v2573
    %3496 = vmatpush1.bf16.msra.mxu0 %v2572
    %3497 = vmatprep.subr.bf16.mxu0 %v2581
    %3498 = vmatpush1.bf16.msra.mxu0 %v2580
    %3499 = vmatprep.subr.bf16.mxu0 0
    %3500 = vmatpush1.bf16.msra.mxu0 0
    %3501 = vmatprep.subr.bf16.mxu0 0
    %3502 = vmatpush1.bf16.msra.mxu0 0
    %3503 = vmatprep.subr.bf16.mxu0 0
    %3504 = vmatpush1.bf16.msra.mxu0 0
    %3505 = vmatprep.subr.bf16.mxu0 0
    %3506 = vmatpush1.bf16.msra.mxu0 0
    %3507 = vmatprep.subr.bf16.mxu0 0
    %3508 = vmatpush1.bf16.msra.mxu0 0
    %3509 = vmatprep.subr.bf16.mxu0 0
    %3510 = vmatpush1.bf16.msra.mxu0 0
    %3511 = vmatprep.subr.bf16.mxu0 0
    %3512 = vmatpush1.bf16.msra.mxu0 0
    %3513 = vmatprep.subr.bf16.mxu0 0
    %3514 = vmatpush1.bf16.msra.mxu0 0
    %3515 = vmatprep.mubr.bf16.mxu0 0
    %3516 = vmatmul.mubr.bf16.gmra.mrb[0].mxu0 %v784
    %v3517 = vpop.f32.mrb[0].mxu0
    %v3518 = vadd.f32 %v3477, %v3517
    %v3519 = vpop.f32.mrb[0].mxu0
    %v3520 = vadd.f32 %v3479, %v3519
    %v3521 = vpop.f32.mrb[0].mxu0
    %v3522 = vpop.f32.mrb[0].mxu0
    %3523 = vdwg.mxu0
    %3524 = vmatprep.subr.bf16.mxu0 %v2143
    %3525 = vmatpush1.bf16.msra.mxu0 %v2142
    %3526 = vmatprep.subr.bf16.mxu0 %v2151
    %3527 = vmatpush1.bf16.msra.mxu0 %v2150
    %3528 = vmatprep.subr.bf16.mxu0 %v2159
    %3529 = vmatpush1.bf16.msra.mxu0 %v2158
    %3530 = vmatprep.subr.bf16.mxu0 %v2167
    %3531 = vmatpush1.bf16.msra.mxu0 %v2166
    %3532 = vmatprep.subr.bf16.mxu0 %v2175
    %3533 = vmatpush1.bf16.msra.mxu0 %v2174
    %3534 = vmatprep.subr.bf16.mxu0 %v2183
    %3535 = vmatpush1.bf16.msra.mxu0 %v2182
    %3536 = vmatprep.subr.bf16.mxu0 %v2191
    %3537 = vmatpush1.bf16.msra.mxu0 %v2190
    %3538 = vmatprep.subr.bf16.mxu0 %v2199
    %3539 = vmatpush1.bf16.msra.mxu0 %v2198
    %3540 = vmatprep.subr.bf16.mxu0 %v2207
    %3541 = vmatpush1.bf16.msra.mxu0 %v2206
    %3542 = vmatprep.subr.bf16.mxu0 %v2215
    %3543 = vmatpush1.bf16.msra.mxu0 %v2214
    %3544 = vmatprep.subr.bf16.mxu0 %v2223
    %3545 = vmatpush1.bf16.msra.mxu0 %v2222
    %3546 = vmatprep.subr.bf16.mxu0 %v2231
    %3547 = vmatpush1.bf16.msra.mxu0 %v2230
    %3548 = vmatprep.subr.bf16.mxu0 %v2239
    %3549 = vmatpush1.bf16.msra.mxu0 %v2238
    %3550 = vmatprep.subr.bf16.mxu0 %v2247
    %3551 = vmatpush1.bf16.msra.mxu0 %v2246
    %3552 = vmatprep.subr.bf16.mxu0 %v2255
    %3553 = vmatpush1.bf16.msra.mxu0 %v2254
    %3554 = vmatprep.subr.bf16.mxu0 %v2263
    %3555 = vmatpush1.bf16.msra.mxu0 %v2262
    %3556 = vmatprep.mubr.bf16.mxu0 %v779
    %3557 = vmatmul.mubr.bf16.gmra.mrb[0].mxu0 %v778
    %v3558 = vpop.f32.mrb[0].mxu0
    %v3559 = vadd.f32 %v754, %v3558
    %v3560 = vpop.f32.mrb[0].mxu0
    %v3561 = vadd.f32 %v758, %v3560
    %v3562 = vpop.f32.mrb[0].mxu0
    %v3563 = vpop.f32.mrb[0].mxu0
    %3564 = vdwg.mxu0
    %3565 = vmatprep.subr.bf16.mxu0 %v2271
    %3566 = vmatpush1.bf16.msra.mxu0 %v2270
    %3567 = vmatprep.subr.bf16.mxu0 %v2279
    %3568 = vmatpush1.bf16.msra.mxu0 %v2278
    %3569 = vmatprep.subr.bf16.mxu0 %v2287
    %3570 = vmatpush1.bf16.msra.mxu0 %v2286
    %3571 = vmatprep.subr.bf16.mxu0 %v2295
    %3572 = vmatpush1.bf16.msra.mxu0 %v2294
    %3573 = vmatprep.subr.bf16.mxu0 %v2303
    %3574 = vmatpush1.bf16.msra.mxu0 %v2302
    %3575 = vmatprep.subr.bf16.mxu0 %v2311
    %3576 = vmatpush1.bf16.msra.mxu0 %v2310
    %3577 = vmatprep.subr.bf16.mxu0 %v2319
    %3578 = vmatpush1.bf16.msra.mxu0 %v2318
    %3579 = vmatprep.subr.bf16.mxu0 %v2327
    %3580 = vmatpush1.bf16.msra.mxu0 %v2326
    %3581 = vmatprep.subr.bf16.mxu0 %v2335
    %3582 = vmatpush1.bf16.msra.mxu0 %v2334
    %3583 = vmatprep.subr.bf16.mxu0 %v2343
    %3584 = vmatpush1.bf16.msra.mxu0 %v2342
    %3585 = vmatprep.subr.bf16.mxu0 %v2351
    %3586 = vmatpush1.bf16.msra.mxu0 %v2350
    %3587 = vmatprep.subr.bf16.mxu0 %v2359
    %3588 = vmatpush1.bf16.msra.mxu0 %v2358
    %3589 = vmatprep.subr.bf16.mxu0 %v2367
    %3590 = vmatpush1.bf16.msra.mxu0 %v2366
    %3591 = vmatprep.subr.bf16.mxu0 %v2375
    %3592 = vmatpush1.bf16.msra.mxu0 %v2374
    %3593 = vmatprep.subr.bf16.mxu0 %v2383
    %3594 = vmatpush1.bf16.msra.mxu0 %v2382
    %3595 = vmatprep.subr.bf16.mxu0 %v2391
    %3596 = vmatpush1.bf16.msra.mxu0 %v2390
    %3597 = vmatprep.mubr.bf16.mxu0 %v781
    %3598 = vmatmul.mubr.bf16.gmra.mrb[0].mxu0 %v780
    %v3599 = vpop.f32.mrb[0].mxu0
    %v3600 = vadd.f32 %v3559, %v3599
    %v3601 = vpop.f32.mrb[0].mxu0
    %v3602 = vadd.f32 %v3561, %v3601
    %v3603 = vpop.f32.mrb[0].mxu0
    %v3604 = vpop.f32.mrb[0].mxu0
    %3605 = vdwg.mxu0
    %3606 = vmatprep.subr.bf16.mxu0 %v2399
    %3607 = vmatpush1.bf16.msra.mxu0 %v2398
    %3608 = vmatprep.subr.bf16.mxu0 %v2407
    %3609 = vmatpush1.bf16.msra.mxu0 %v2406
    %3610 = vmatprep.subr.bf16.mxu0 %v2415
    %3611 = vmatpush1.bf16.msra.mxu0 %v2414
    %3612 = vmatprep.subr.bf16.mxu0 %v2423
    %3613 = vmatpush1.bf16.msra.mxu0 %v2422
    %3614 = vmatprep.subr.bf16.mxu0 %v2431
    %3615 = vmatpush1.bf16.msra.mxu0 %v2430
    %3616 = vmatprep.subr.bf16.mxu0 %v2439
    %3617 = vmatpush1.bf16.msra.mxu0 %v2438
    %3618 = vmatprep.subr.bf16.mxu0 %v2447
    %3619 = vmatpush1.bf16.msra.mxu0 %v2446
    %3620 = vmatprep.subr.bf16.mxu0 %v2455
    %3621 = vmatpush1.bf16.msra.mxu0 %v2454
    %3622 = vmatprep.subr.bf16.mxu0 %v2463
    %3623 = vmatpush1.bf16.msra.mxu0 %v2462
    %3624 = vmatprep.subr.bf16.mxu0 %v2471
    %3625 = vmatpush1.bf16.msra.mxu0 %v2470
    %3626 = vmatprep.subr.bf16.mxu0 %v2479
    %3627 = vmatpush1.bf16.msra.mxu0 %v2478
    %3628 = vmatprep.subr.bf16.mxu0 %v2487
    %3629 = vmatpush1.bf16.msra.mxu0 %v2486
    %3630 = vmatprep.subr.bf16.mxu0 %v2495
    %3631 = vmatpush1.bf16.msra.mxu0 %v2494
    %3632 = vmatprep.subr.bf16.mxu0 %v2503
    %3633 = vmatpush1.bf16.msra.mxu0 %v2502
    %3634 = vmatprep.subr.bf16.mxu0 %v2511
    %3635 = vmatpush1.bf16.msra.mxu0 %v2510
    %3636 = vmatprep.subr.bf16.mxu0 %v2519
    %3637 = vmatpush1.bf16.msra.mxu0 %v2518
    %3638 = vmatprep.mubr.bf16.mxu0 %v783
    %3639 = vmatmul.mubr.bf16.gmra.mrb[0].mxu0 %v782
    %v3640 = vpop.f32.mrb[0].mxu0
    %v3641 = vadd.f32 %v3600, %v3640
    %v3642 = vpop.f32.mrb[0].mxu0
    %v3643 = vadd.f32 %v3602, %v3642
    %v3644 = vpop.f32.mrb[0].mxu0
    %v3645 = vpop.f32.mrb[0].mxu0
    %3646 = vdwg.mxu0
    %3647 = vmatprep.subr.bf16.mxu0 %v2527
    %3648 = vmatpush1.bf16.msra.mxu0 %v2526
    %3649 = vmatprep.subr.bf16.mxu0 %v2535
    %3650 = vmatpush1.bf16.msra.mxu0 %v2534
    %3651 = vmatprep.subr.bf16.mxu0 %v2543
    %3652 = vmatpush1.bf16.msra.mxu0 %v2542
    %3653 = vmatprep.subr.bf16.mxu0 %v2551
    %3654 = vmatpush1.bf16.msra.mxu0 %v2550
    %3655 = vmatprep.subr.bf16.mxu0 %v2559
    %3656 = vmatpush1.bf16.msra.mxu0 %v2558
    %3657 = vmatprep.subr.bf16.mxu0 %v2567
    %3658 = vmatpush1.bf16.msra.mxu0 %v2566
    %3659 = vmatprep.subr.bf16.mxu0 %v2575
    %3660 = vmatpush1.bf16.msra.mxu0 %v2574
    %3661 = vmatprep.subr.bf16.mxu0 %v2583
    %3662 = vmatpush1.bf16.msra.mxu0 %v2582
    %3663 = vmatprep.subr.bf16.mxu0 0
    %3664 = vmatpush1.bf16.msra.mxu0 0
    %3665 = vmatprep.subr.bf16.mxu0 0
    %3666 = vmatpush1.bf16.msra.mxu0 0
    %3667 = vmatprep.subr.bf16.mxu0 0
    %3668 = vmatpush1.bf16.msra.mxu0 0
    %3669 = vmatprep.subr.bf16.mxu0 0
    %3670 = vmatpush1.bf16.msra.mxu0 0
    %3671 = vmatprep.subr.bf16.mxu0 0
    %3672 = vmatpush1.bf16.msra.mxu0 0
    %3673 = vmatprep.subr.bf16.mxu0 0
    %3674 = vmatpush1.bf16.msra.mxu0 0
    %3675 = vmatprep.subr.bf16.mxu0 0
    %3676 = vmatpush1.bf16.msra.mxu0 0
    %3677 = vmatprep.subr.bf16.mxu0 0
    %3678 = vmatpush1.bf16.msra.mxu0 0
    %3679 = vmatprep.mubr.bf16.mxu0 0
    %3680 = vmatmul.mubr.bf16.gmra.mrb[0].mxu0 %v784
    %v3681 = vpop.f32.mrb[0].mxu0
    %v3682 = vadd.f32 %v3641, %v3681
    %v3683 = vpop.f32.mrb[0].mxu0
    %v3684 = vadd.f32 %v3643, %v3683
    %v3685 = vpop.f32.mrb[0].mxu0
    %v3686 = vpop.f32.mrb[0].mxu0
    %3687 = vdwg.mxu0
    %vm3688 = vcmp.gt.f32.partialorder %v3190, 0.0
    %vm3689 = vcmp.gt.f32.partialorder %v3192, 0.0
    %vm3690 = vcmp.gt.f32.partialorder %v3354, 0.0
    %vm3691 = vcmp.gt.f32.partialorder %v3356, 0.0
    %vm3692 = vcmp.gt.f32.partialorder %v3518, 0.0
    %vm3693 = vcmp.gt.f32.partialorder %v3520, 0.0
    %vm3694 = vcmp.gt.f32.partialorder %v3682, 0.0
    %vm3695 = vcmp.gt.f32.partialorder %v3684, 0.0
    %v3696 = vmul.f32 %v3190, 0.2
    %v3697 = vmul.f32 %v3192, 0.2
    %v3698 = vmul.f32 %v3354, 0.2
    %v3699 = vmul.f32 %v3356, 0.2
    %v3700 = vmul.f32 %v3518, 0.2
    %v3701 = vmul.f32 %v3520, 0.2
    %v3702 = vmul.f32 %v3682, 0.2
    %v3703 = vmul.f32 %v3684, 0.2
    %v3704 = vsel %vm3688, %v3190, %v3696
    %v3705 = vsel %vm3689, %v3192, %v3697
    %v3706 = vsel %vm3690, %v3354, %v3698
    %v3707 = vsel %vm3691, %v3356, %v3699
    %v3708 = vsel %vm3692, %v3518, %v3700
    %v3709 = vsel %vm3693, %v3520, %v3701
    %v3710 = vsel %vm3694, %v3682, %v3702
    %v3711 = vsel %vm3695, %v3684, %v3703
    %v3712 = vpack.c.bf16 %v3704, %v3704
    %v3713 = vpack.c.bf16 %v3705, %v3705
    %v3714 = vpack.c.bf16 %v3706, %v3706
    %v3715 = vpack.c.bf16 %v3707, %v3707
    %v3716 = vpack.c.bf16 %v3708, %v3708
    %v3717 = vpack.c.bf16 %v3709, %v3709
    %v3718 = vpack.c.bf16 %v3710, %v3710
    %v3719 = vpack.c.bf16 %v3711, %v3711
    %v3720 = vld [vmem:[#allocation12] sm:$0xff]
    %v3721 = vld [vmem:[#allocation12 + $0x8] sm:$0xff]
    %v3722 = vld [vmem:[#allocation12 + $0x10] sm:$0xff]
    %v3723 = vld [vmem:[#allocation12 + $0x18] sm:$0xff]
    %v3724 = vld [vmem:[#allocation12 + $0x20] sm:$0xff]
    %v3725 = vld [vmem:[#allocation12 + $0x28] sm:$0xff]
    %v3726 = vld [vmem:[#allocation12 + $0x30] sm:$0xff]
    %v3727 = vld [vmem:[#allocation12 + $0x38] sm:$0xff]
    %v3728 = vld [vmem:[#allocation12 + $0x40] sm:$0xff]
    %v3729 = vld [vmem:[#allocation12 + $0x48] sm:$0xff]
    %v3730 = vld [vmem:[#allocation12 + $0x50] sm:$0xff]
    %v3731 = vld [vmem:[#allocation12 + $0x58] sm:$0xff]
    %v3732 = vld [vmem:[#allocation12 + $0x60] sm:$0xff]
    %v3733 = vld [vmem:[#allocation12 + $0x68] sm:$0xff]
    %v3734 = vld [vmem:[#allocation12 + $0x70] sm:$0xff]
    %v3735 = vld [vmem:[#allocation12 + $0x78] sm:$0xff]
    %v3736 = vld [vmem:[#allocation12 + $0x80] sm:$0xff]
    %v3737 = vld [vmem:[#allocation12 + $0x88] sm:$0xff]
    %v3738 = vld [vmem:[#allocation12 + $0x90] sm:$0xff]
    %v3739 = vld [vmem:[#allocation12 + $0x98] sm:$0xff]
    %v3740 = vld [vmem:[#allocation12 + $0xa0] sm:$0xff]
    %v3741 = vld [vmem:[#allocation12 + $0xa8] sm:$0xff]
    %v3742 = vld [vmem:[#allocation12 + $0xb0] sm:$0xff]
    %v3743 = vld [vmem:[#allocation12 + $0xb8] sm:$0xff]
    %v3744 = vld [vmem:[#allocation12 + $0xc0] sm:$0xff]
    %v3745 = vld [vmem:[#allocation12 + $0xc8] sm:$0xff]
    %v3746 = vld [vmem:[#allocation12 + $0xd0] sm:$0xff]
    %v3747 = vld [vmem:[#allocation12 + $0xd8] sm:$0xff]
    %v3748 = vld [vmem:[#allocation12 + $0xe0] sm:$0xff]
    %v3749 = vld [vmem:[#allocation12 + $0xe8] sm:$0xff]
    %v3750 = vld [vmem:[#allocation12 + $0xf0] sm:$0xff]
    %v3751 = vld [vmem:[#allocation12 + $0xf8] sm:$0xff]
    %v3752 = vld [vmem:[#allocation12 + $0x100] sm:$0xff]
    %v3753 = vld [vmem:[#allocation12 + $0x108] sm:$0xff]
    %v3754 = vld [vmem:[#allocation12 + $0x110] sm:$0xff]
    %v3755 = vld [vmem:[#allocation12 + $0x118] sm:$0xff]
    %v3756 = vld [vmem:[#allocation12 + $0x120] sm:$0xff]
    %v3757 = vld [vmem:[#allocation12 + $0x128] sm:$0xff]
    %v3758 = vld [vmem:[#allocation12 + $0x130] sm:$0xff]
    %v3759 = vld [vmem:[#allocation12 + $0x138] sm:$0xff]
    %v3760 = vld [vmem:[#allocation12 + $0x140] sm:$0xff]
    %v3761 = vld [vmem:[#allocation12 + $0x148] sm:$0xff]
    %v3762 = vld [vmem:[#allocation12 + $0x150] sm:$0xff]
    %v3763 = vld [vmem:[#allocation12 + $0x158] sm:$0xff]
    %v3764 = vld [vmem:[#allocation12 + $0x160] sm:$0xff]
    %v3765 = vld [vmem:[#allocation12 + $0x168] sm:$0xff]
    %v3766 = vld [vmem:[#allocation12 + $0x170] sm:$0xff]
    %v3767 = vld [vmem:[#allocation12 + $0x178] sm:$0xff]
    %v3768 = vld [vmem:[#allocation12 + $0x180] sm:$0xff]
    %v3769 = vld [vmem:[#allocation12 + $0x188] sm:$0xff]
    %v3770 = vld [vmem:[#allocation12 + $0x190] sm:$0xff]
    %v3771 = vld [vmem:[#allocation12 + $0x198] sm:$0xff]
    %v3772 = vld [vmem:[#allocation12 + $0x1a0] sm:$0xff]
    %v3773 = vld [vmem:[#allocation12 + $0x1a8] sm:$0xff]
    %v3774 = vld [vmem:[#allocation12 + $0x1b0] sm:$0xff]
    %v3775 = vld [vmem:[#allocation12 + $0x1b8] sm:$0xff]
    %v3776 = vld [vmem:[#allocation12 + $0x1c0] sm:$0xff]
    %v3777 = vld [vmem:[#allocation12 + $0x1c8] sm:$0xff]
    %v3778 = vld [vmem:[#allocation12 + $0x1d0] sm:$0xff]
    %v3779 = vld [vmem:[#allocation12 + $0x1d8] sm:$0xff]
    %v3780 = vld [vmem:[#allocation12 + $0x1e0] sm:$0xff]
    %v3781 = vld [vmem:[#allocation12 + $0x1e8] sm:$0xff]
    %v3782 = vld [vmem:[#allocation12 + $0x1f0] sm:$0xff]
    %v3783 = vld [vmem:[#allocation12 + $0x1f8] sm:$0xff]
    %v3784 = vld [vmem:[#allocation12 + $0x200] sm:$0xff]
    %v3785 = vld [vmem:[#allocation12 + $0x208] sm:$0xff]
    %v3786 = vld [vmem:[#allocation12 + $0x210] sm:$0xff]
    %v3787 = vld [vmem:[#allocation12 + $0x218] sm:$0xff]
    %v3788 = vld [vmem:[#allocation12 + $0x220] sm:$0xff]
    %v3789 = vld [vmem:[#allocation12 + $0x228] sm:$0xff]
    %v3790 = vld [vmem:[#allocation12 + $0x230] sm:$0xff]
    %v3791 = vld [vmem:[#allocation12 + $0x238] sm:$0xff]
    %v3792 = vld [vmem:[#allocation12 + $0x240] sm:$0xff]
    %v3793 = vld [vmem:[#allocation12 + $0x248] sm:$0xff]
    %v3794 = vld [vmem:[#allocation12 + $0x250] sm:$0xff]
    %v3795 = vld [vmem:[#allocation12 + $0x258] sm:$0xff]
    %v3796 = vld [vmem:[#allocation12 + $0x260] sm:$0xff]
    %v3797 = vld [vmem:[#allocation12 + $0x268] sm:$0xff]
    %v3798 = vld [vmem:[#allocation12 + $0x270] sm:$0xff]
    %v3799 = vld [vmem:[#allocation12 + $0x278] sm:$0xff]
    %v3800 = vld [vmem:[#allocation12 + $0x280] sm:$0xff]
    %v3801 = vld [vmem:[#allocation12 + $0x288] sm:$0xff]
    %v3802 = vld [vmem:[#allocation12 + $0x290] sm:$0xff]
    %v3803 = vld [vmem:[#allocation12 + $0x298] sm:$0xff]
    %v3804 = vld [vmem:[#allocation12 + $0x2a0] sm:$0xff]
    %v3805 = vld [vmem:[#allocation12 + $0x2a8] sm:$0xff]
    %v3806 = vld [vmem:[#allocation12 + $0x2b0] sm:$0xff]
    %v3807 = vld [vmem:[#allocation12 + $0x2b8] sm:$0xff]
    %v3808 = vld [vmem:[#allocation12 + $0x2c0] sm:$0xff]
    %v3809 = vld [vmem:[#allocation12 + $0x2c8] sm:$0xff]
    %v3810 = vld [vmem:[#allocation12 + $0x2d0] sm:$0xff]
    %v3811 = vld [vmem:[#allocation12 + $0x2d8] sm:$0xff]
    %v3812 = vld [vmem:[#allocation12 + $0x2e0] sm:$0xff]
    %v3813 = vld [vmem:[#allocation12 + $0x2e8] sm:$0xff]
    %v3814 = vld [vmem:[#allocation12 + $0x2f0] sm:$0xff]
    %v3815 = vld [vmem:[#allocation12 + $0x2f8] sm:$0xff]
    %v3816 = vld [vmem:[#allocation12 + $0x300] sm:$0xff]
    %v3817 = vld [vmem:[#allocation12 + $0x308] sm:$0xff]
    %v3818 = vld [vmem:[#allocation12 + $0x310] sm:$0xff]
    %v3819 = vld [vmem:[#allocation12 + $0x318] sm:$0xff]
    %v3820 = vld [vmem:[#allocation12 + $0x320] sm:$0xff]
    %v3821 = vld [vmem:[#allocation12 + $0x328] sm:$0xff]
    %v3822 = vld [vmem:[#allocation12 + $0x330] sm:$0xff]
    %v3823 = vld [vmem:[#allocation12 + $0x338] sm:$0xff]
    %v3824 = vld [vmem:[#allocation12 + $0x340] sm:$0xff]
    %v3825 = vld [vmem:[#allocation12 + $0x348] sm:$0xff]
    %v3826 = vld [vmem:[#allocation12 + $0x350] sm:$0xff]
    %v3827 = vld [vmem:[#allocation12 + $0x358] sm:$0xff]
    %v3828 = vld [vmem:[#allocation12 + $0x360] sm:$0xff]
    %v3829 = vld [vmem:[#allocation12 + $0x368] sm:$0xff]
    %v3830 = vld [vmem:[#allocation12 + $0x370] sm:$0xff]
    %v3831 = vld [vmem:[#allocation12 + $0x378] sm:$0xff]
    %v3832 = vld [vmem:[#allocation12 + $0x380] sm:$0xff]
    %v3833 = vld [vmem:[#allocation12 + $0x388] sm:$0xff]
    %v3834 = vld [vmem:[#allocation12 + $0x390] sm:$0xff]
    %v3835 = vld [vmem:[#allocation12 + $0x398] sm:$0xff]
    %v3836 = vld [vmem:[#allocation12 + $0x3a0] sm:$0xff]
    %v3837 = vld [vmem:[#allocation12 + $0x3a8] sm:$0xff]
    %v3838 = vld [vmem:[#allocation12 + $0x3b0] sm:$0xff]
    %v3839 = vld [vmem:[#allocation12 + $0x3b8] sm:$0xff]
    %v3840 = vld [vmem:[#allocation12 + $0x3c0] sm:$0xff]
    %v3841 = vld [vmem:[#allocation12 + $0x3c8] sm:$0xff]
    %v3842 = vld [vmem:[#allocation12 + $0x3d0] sm:$0xff]
    %v3843 = vld [vmem:[#allocation12 + $0x3d8] sm:$0xff]
    %v3844 = vld [vmem:[#allocation12 + $0x3e0] sm:$0xff]
    %v3845 = vld [vmem:[#allocation12 + $0x3e8] sm:$0xff]
    %v3846 = vld [vmem:[#allocation12 + $0x3f0] sm:$0xff]
    %v3847 = vld [vmem:[#allocation12 + $0x3f8] sm:$0xff]
    %v3848 = vld [vmem:[#allocation12 + $0x400] sm:$0xff]
    %v3849 = vld [vmem:[#allocation12 + $0x408] sm:$0xff]
    %v3850 = vld [vmem:[#allocation12 + $0x410] sm:$0xff]
    %v3851 = vld [vmem:[#allocation12 + $0x418] sm:$0xff]
    %v3852 = vld [vmem:[#allocation12 + $0x420] sm:$0xff]
    %v3853 = vld [vmem:[#allocation12 + $0x428] sm:$0xff]
    %v3854 = vld [vmem:[#allocation12 + $0x430] sm:$0xff]
    %v3855 = vld [vmem:[#allocation12 + $0x438] sm:$0xff]
    %v3856 = vld [vmem:[#allocation12 + $0x440] sm:$0xff]
    %v3857 = vld [vmem:[#allocation12 + $0x448] sm:$0xff]
    %v3858 = vld [vmem:[#allocation12 + $0x450] sm:$0xff]
    %v3859 = vld [vmem:[#allocation12 + $0x458] sm:$0xff]
    %v3860 = vld [vmem:[#allocation12 + $0x460] sm:$0xff]
    %v3861 = vld [vmem:[#allocation12 + $0x468] sm:$0xff]
    %v3862 = vld [vmem:[#allocation12 + $0x470] sm:$0xff]
    %v3863 = vld [vmem:[#allocation12 + $0x478] sm:$0xff]
    %v3864 = vld [vmem:[#allocation12 + $0x480] sm:$0xff]
    %v3865 = vld [vmem:[#allocation12 + $0x488] sm:$0xff]
    %v3866 = vld [vmem:[#allocation12 + $0x490] sm:$0xff]
    %v3867 = vld [vmem:[#allocation12 + $0x498] sm:$0xff]
    %v3868 = vld [vmem:[#allocation12 + $0x4a0] sm:$0xff]
    %v3869 = vld [vmem:[#allocation12 + $0x4a8] sm:$0xff]
    %v3870 = vld [vmem:[#allocation12 + $0x4b0] sm:$0xff]
    %v3871 = vld [vmem:[#allocation12 + $0x4b8] sm:$0xff]
    %v3872 = vld [vmem:[#allocation12 + $0x4c0] sm:$0xff]
    %v3873 = vld [vmem:[#allocation12 + $0x4c8] sm:$0xff]
    %v3874 = vld [vmem:[#allocation12 + $0x4d0] sm:$0xff]
    %v3875 = vld [vmem:[#allocation12 + $0x4d8] sm:$0xff]
    %v3876 = vld [vmem:[#allocation12 + $0x4e0] sm:$0xff]
    %v3877 = vld [vmem:[#allocation12 + $0x4e8] sm:$0xff]
    %v3878 = vld [vmem:[#allocation12 + $0x4f0] sm:$0xff]
    %v3879 = vld [vmem:[#allocation12 + $0x4f8] sm:$0xff]
    %v3880 = vld [vmem:[#allocation12 + $0x500] sm:$0xff]
    %v3881 = vld [vmem:[#allocation12 + $0x508] sm:$0xff]
    %v3882 = vld [vmem:[#allocation12 + $0x510] sm:$0xff]
    %v3883 = vld [vmem:[#allocation12 + $0x518] sm:$0xff]
    %v3884 = vld [vmem:[#allocation12 + $0x520] sm:$0xff]
    %v3885 = vld [vmem:[#allocation12 + $0x528] sm:$0xff]
    %v3886 = vld [vmem:[#allocation12 + $0x530] sm:$0xff]
    %v3887 = vld [vmem:[#allocation12 + $0x538] sm:$0xff]
    %v3888 = vld [vmem:[#allocation12 + $0x540] sm:$0xff]
    %v3889 = vld [vmem:[#allocation12 + $0x548] sm:$0xff]
    %v3890 = vld [vmem:[#allocation12 + $0x550] sm:$0xff]
    %v3891 = vld [vmem:[#allocation12 + $0x558] sm:$0xff]
    %v3892 = vld [vmem:[#allocation12 + $0x560] sm:$0xff]
    %v3893 = vld [vmem:[#allocation12 + $0x568] sm:$0xff]
    %v3894 = vld [vmem:[#allocation12 + $0x570] sm:$0xff]
    %v3895 = vld [vmem:[#allocation12 + $0x578] sm:$0xff]
    %v3896 = vld [vmem:[#allocation12 + $0x580] sm:$0xff]
    %v3897 = vld [vmem:[#allocation12 + $0x588] sm:$0xff]
    %v3898 = vld [vmem:[#allocation12 + $0x590] sm:$0xff]
    %v3899 = vld [vmem:[#allocation12 + $0x598] sm:$0xff]
    %v3900 = vld [vmem:[#allocation12 + $0x5a0] sm:$0xff]
    %v3901 = vld [vmem:[#allocation12 + $0x5a8] sm:$0xff]
    %v3902 = vld [vmem:[#allocation12 + $0x5b0] sm:$0xff]
    %v3903 = vld [vmem:[#allocation12 + $0x5b8] sm:$0xff]
    %v3904 = vld [vmem:[#allocation12 + $0x5c0] sm:$0xff]
    %v3905 = vld [vmem:[#allocation12 + $0x5c8] sm:$0xff]
    %v3906 = vld [vmem:[#allocation12 + $0x5d0] sm:$0xff]
    %v3907 = vld [vmem:[#allocation12 + $0x5d8] sm:$0xff]
    %v3908 = vld [vmem:[#allocation12 + $0x5e0] sm:$0xff]
    %v3909 = vld [vmem:[#allocation12 + $0x5e8] sm:$0xff]
    %v3910 = vld [vmem:[#allocation12 + $0x5f0] sm:$0xff]
    %v3911 = vld [vmem:[#allocation12 + $0x5f8] sm:$0xff]
    %v3912 = vld [vmem:[#allocation12 + $0x600] sm:$0xff]
    %v3913 = vld [vmem:[#allocation12 + $0x608] sm:$0xff]
    %v3914 = vld [vmem:[#allocation12 + $0x610] sm:$0xff]
    %v3915 = vld [vmem:[#allocation12 + $0x618] sm:$0xff]
    %v3916 = vld [vmem:[#allocation12 + $0x620] sm:$0xff]
    %v3917 = vld [vmem:[#allocation12 + $0x628] sm:$0xff]
    %v3918 = vld [vmem:[#allocation12 + $0x630] sm:$0xff]
    %v3919 = vld [vmem:[#allocation12 + $0x638] sm:$0xff]
    %v3920 = vld [vmem:[#allocation12 + $0x640] sm:$0xff]
    %v3921 = vld [vmem:[#allocation12 + $0x648] sm:$0xff]
    %v3922 = vld [vmem:[#allocation12 + $0x650] sm:$0xff]
    %v3923 = vld [vmem:[#allocation12 + $0x658] sm:$0xff]
    %v3924 = vld [vmem:[#allocation12 + $0x660] sm:$0xff]
    %v3925 = vld [vmem:[#allocation12 + $0x668] sm:$0xff]
    %v3926 = vld [vmem:[#allocation12 + $0x670] sm:$0xff]
    %v3927 = vld [vmem:[#allocation12 + $0x678] sm:$0xff]
    %v3928 = vld [vmem:[#allocation12 + $0x680] sm:$0xff]
    %v3929 = vld [vmem:[#allocation12 + $0x688] sm:$0xff]
    %v3930 = vld [vmem:[#allocation12 + $0x690] sm:$0xff]
    %v3931 = vld [vmem:[#allocation12 + $0x698] sm:$0xff]
    %v3932 = vld [vmem:[#allocation12 + $0x6a0] sm:$0xff]
    %v3933 = vld [vmem:[#allocation12 + $0x6a8] sm:$0xff]
    %v3934 = vld [vmem:[#allocation12 + $0x6b0] sm:$0xff]
    %v3935 = vld [vmem:[#allocation12 + $0x6b8] sm:$0xff]
    %v3936 = vld [vmem:[#allocation12 + $0x6c0] sm:$0xff]
    %v3937 = vld [vmem:[#allocation12 + $0x6c8] sm:$0xff]
    %v3938 = vld [vmem:[#allocation12 + $0x6d0] sm:$0xff]
    %v3939 = vld [vmem:[#allocation12 + $0x6d8] sm:$0xff]
    %v3940 = vld [vmem:[#allocation12 + $0x6e0] sm:$0xff]
    %v3941 = vld [vmem:[#allocation12 + $0x6e8] sm:$0xff]
    %v3942 = vld [vmem:[#allocation12 + $0x6f0] sm:$0xff]
    %v3943 = vld [vmem:[#allocation12 + $0x6f8] sm:$0xff]
    %v3944 = vld [vmem:[#allocation12 + $0x700] sm:$0xff]
    %v3945 = vld [vmem:[#allocation12 + $0x708] sm:$0xff]
    %v3946 = vld [vmem:[#allocation12 + $0x710] sm:$0xff]
    %v3947 = vld [vmem:[#allocation12 + $0x718] sm:$0xff]
    %v3948 = vld [vmem:[#allocation12 + $0x720] sm:$0xff]
    %v3949 = vld [vmem:[#allocation12 + $0x728] sm:$0xff]
    %v3950 = vld [vmem:[#allocation12 + $0x730] sm:$0xff]
    %v3951 = vld [vmem:[#allocation12 + $0x738] sm:$0xff]
    %v3952 = vld [vmem:[#allocation12 + $0x740] sm:$0xff]
    %v3953 = vld [vmem:[#allocation12 + $0x748] sm:$0xff]
    %v3954 = vld [vmem:[#allocation12 + $0x750] sm:$0xff]
    %v3955 = vld [vmem:[#allocation12 + $0x758] sm:$0xff]
    %v3956 = vld [vmem:[#allocation12 + $0x760] sm:$0xff]
    %v3957 = vld [vmem:[#allocation12 + $0x768] sm:$0xff]
    %v3958 = vld [vmem:[#allocation12 + $0x770] sm:$0xff]
    %v3959 = vld [vmem:[#allocation12 + $0x778] sm:$0xff]
    %v3960 = vld [vmem:[#allocation12 + $0x780] sm:$0xff]
    %v3961 = vld [vmem:[#allocation12 + $0x788] sm:$0xff]
    %v3962 = vld [vmem:[#allocation12 + $0x790] sm:$0xff]
    %v3963 = vld [vmem:[#allocation12 + $0x798] sm:$0xff]
    %v3964 = vld [vmem:[#allocation12 + $0x7a0] sm:$0xff]
    %v3965 = vld [vmem:[#allocation12 + $0x7a8] sm:$0xff]
    %v3966 = vld [vmem:[#allocation12 + $0x7b0] sm:$0xff]
    %v3967 = vld [vmem:[#allocation12 + $0x7b8] sm:$0xff]
    %v3968 = vld [vmem:[#allocation12 + $0x7c0] sm:$0xff]
    %v3969 = vld [vmem:[#allocation12 + $0x7c8] sm:$0xff]
    %v3970 = vld [vmem:[#allocation12 + $0x7d0] sm:$0xff]
    %v3971 = vld [vmem:[#allocation12 + $0x7d8] sm:$0xff]
    %v3972 = vld [vmem:[#allocation12 + $0x7e0] sm:$0xff]
    %v3973 = vld [vmem:[#allocation12 + $0x7e8] sm:$0xff]
    %v3974 = vld [vmem:[#allocation12 + $0x7f0] sm:$0xff]
    %v3975 = vld [vmem:[#allocation12 + $0x7f8] sm:$0xff]
    %v3976 = vld [vmem:[#allocation13] sm:$0xf]
    %v3978 = vlaneseq
    %v3979 = vshrl.u32 %v3978, 7
    %v3980 = vsub.s32 0, %v3979
    %v3981 = vrot.slane %v3976, %v3980
    %v3982 = vlaneseq
    %v3983 = vshrl.u32 %v3982, 7
    %v3984 = vsub.s32 1, %v3983
    %v3985 = vrot.slane %v3976, %v3984
    %v3986 = vlaneseq
    %v3987 = vshrl.u32 %v3986, 7
    %v3988 = vsub.s32 2, %v3987
    %v3989 = vrot.slane %v3976, %v3988
    %v3990 = vlaneseq
    %v3991 = vshrl.u32 %v3990, 7
    %v3992 = vsub.s32 3, %v3991
    %v3993 = vrot.slane %v3976, %v3992
    %v4254 = vunpack.c.l.b16 %v3720
    %v4255 = vunpack.c.h.b16 %v3720
    %v4256 = vunpack.c.l.b16 %v3721
    %v4257 = vunpack.c.h.b16 %v3721
    %v4258 = vunpack.c.l.b16 %v3722
    %v4259 = vunpack.c.h.b16 %v3722
    %v4260 = vunpack.c.l.b16 %v3723
    %v4261 = vunpack.c.h.b16 %v3723
    %v4262 = vunpack.c.l.b16 %v3724
    %v4263 = vunpack.c.h.b16 %v3724
    %v4264 = vunpack.c.l.b16 %v3725
    %v4265 = vunpack.c.h.b16 %v3725
    %v4266 = vunpack.c.l.b16 %v3726
    %v4267 = vunpack.c.h.b16 %v3726
    %v4268 = vunpack.c.l.b16 %v3727
    %v4269 = vunpack.c.h.b16 %v3727
    %v4270 = vunpack.c.l.b16 %v3728
    %v4271 = vunpack.c.h.b16 %v3728
    %v4272 = vunpack.c.l.b16 %v3729
    %v4273 = vunpack.c.h.b16 %v3729
    %v4274 = vunpack.c.l.b16 %v3730
    %v4275 = vunpack.c.h.b16 %v3730
    %v4276 = vunpack.c.l.b16 %v3731
    %v4277 = vunpack.c.h.b16 %v3731
    %v4278 = vunpack.c.l.b16 %v3732
    %v4279 = vunpack.c.h.b16 %v3732
    %v4280 = vunpack.c.l.b16 %v3733
    %v4281 = vunpack.c.h.b16 %v3733
    %v4282 = vunpack.c.l.b16 %v3734
    %v4283 = vunpack.c.h.b16 %v3734
    %v4284 = vunpack.c.l.b16 %v3735
    %v4285 = vunpack.c.h.b16 %v3735
    %v4286 = vunpack.c.l.b16 %v3736
    %v4287 = vunpack.c.h.b16 %v3736
    %v4288 = vunpack.c.l.b16 %v3737
    %v4289 = vunpack.c.h.b16 %v3737
    %v4290 = vunpack.c.l.b16 %v3738
    %v4291 = vunpack.c.h.b16 %v3738
    %v4292 = vunpack.c.l.b16 %v3739
    %v4293 = vunpack.c.h.b16 %v3739
    %v4294 = vunpack.c.l.b16 %v3740
    %v4295 = vunpack.c.h.b16 %v3740
    %v4296 = vunpack.c.l.b16 %v3741
    %v4297 = vunpack.c.h.b16 %v3741
    %v4298 = vunpack.c.l.b16 %v3742
    %v4299 = vunpack.c.h.b16 %v3742
    %v4300 = vunpack.c.l.b16 %v3743
    %v4301 = vunpack.c.h.b16 %v3743
    %v4302 = vunpack.c.l.b16 %v3744
    %v4303 = vunpack.c.h.b16 %v3744
    %v4304 = vunpack.c.l.b16 %v3745
    %v4305 = vunpack.c.h.b16 %v3745
    %v4306 = vunpack.c.l.b16 %v3746
    %v4307 = vunpack.c.h.b16 %v3746
    %v4308 = vunpack.c.l.b16 %v3747
    %v4309 = vunpack.c.h.b16 %v3747
    %v4310 = vunpack.c.l.b16 %v3748
    %v4311 = vunpack.c.h.b16 %v3748
    %v4312 = vunpack.c.l.b16 %v3749
    %v4313 = vunpack.c.h.b16 %v3749
    %v4314 = vunpack.c.l.b16 %v3750
    %v4315 = vunpack.c.h.b16 %v3750
    %v4316 = vunpack.c.l.b16 %v3751
    %v4317 = vunpack.c.h.b16 %v3751
    %v4318 = vunpack.c.l.b16 %v3752
    %v4319 = vunpack.c.h.b16 %v3752
    %v4320 = vunpack.c.l.b16 %v3753
    %v4321 = vunpack.c.h.b16 %v3753
    %v4322 = vunpack.c.l.b16 %v3754
    %v4323 = vunpack.c.h.b16 %v3754
    %v4324 = vunpack.c.l.b16 %v3755
    %v4325 = vunpack.c.h.b16 %v3755
    %v4326 = vunpack.c.l.b16 %v3756
    %v4327 = vunpack.c.h.b16 %v3756
    %v4328 = vunpack.c.l.b16 %v3757
    %v4329 = vunpack.c.h.b16 %v3757
    %v4330 = vunpack.c.l.b16 %v3758
    %v4331 = vunpack.c.h.b16 %v3758
    %v4332 = vunpack.c.l.b16 %v3759
    %v4333 = vunpack.c.h.b16 %v3759
    %v4334 = vunpack.c.l.b16 %v3760
    %v4335 = vunpack.c.h.b16 %v3760
    %v4336 = vunpack.c.l.b16 %v3761
    %v4337 = vunpack.c.h.b16 %v3761
    %v4338 = vunpack.c.l.b16 %v3762
    %v4339 = vunpack.c.h.b16 %v3762
    %v4340 = vunpack.c.l.b16 %v3763
    %v4341 = vunpack.c.h.b16 %v3763
    %v4342 = vunpack.c.l.b16 %v3764
    %v4343 = vunpack.c.h.b16 %v3764
    %v4344 = vunpack.c.l.b16 %v3765
    %v4345 = vunpack.c.h.b16 %v3765
    %v4346 = vunpack.c.l.b16 %v3766
    %v4347 = vunpack.c.h.b16 %v3766
    %v4348 = vunpack.c.l.b16 %v3767
    %v4349 = vunpack.c.h.b16 %v3767
    %v4350 = vunpack.c.l.b16 %v3768
    %v4351 = vunpack.c.h.b16 %v3768
    %v4352 = vunpack.c.l.b16 %v3769
    %v4353 = vunpack.c.h.b16 %v3769
    %v4354 = vunpack.c.l.b16 %v3770
    %v4355 = vunpack.c.h.b16 %v3770
    %v4356 = vunpack.c.l.b16 %v3771
    %v4357 = vunpack.c.h.b16 %v3771
    %v4358 = vunpack.c.l.b16 %v3772
    %v4359 = vunpack.c.h.b16 %v3772
    %v4360 = vunpack.c.l.b16 %v3773
    %v4361 = vunpack.c.h.b16 %v3773
    %v4362 = vunpack.c.l.b16 %v3774
    %v4363 = vunpack.c.h.b16 %v3774
    %v4364 = vunpack.c.l.b16 %v3775
    %v4365 = vunpack.c.h.b16 %v3775
    %v4366 = vunpack.c.l.b16 %v3776
    %v4367 = vunpack.c.h.b16 %v3776
    %v4368 = vunpack.c.l.b16 %v3777
    %v4369 = vunpack.c.h.b16 %v3777
    %v4370 = vunpack.c.l.b16 %v3778
    %v4371 = vunpack.c.h.b16 %v3778
    %v4372 = vunpack.c.l.b16 %v3779
    %v4373 = vunpack.c.h.b16 %v3779
    %v4374 = vunpack.c.l.b16 %v3780
    %v4375 = vunpack.c.h.b16 %v3780
    %v4376 = vunpack.c.l.b16 %v3781
    %v4377 = vunpack.c.h.b16 %v3781
    %v4378 = vunpack.c.l.b16 %v3782
    %v4379 = vunpack.c.h.b16 %v3782
    %v4380 = vunpack.c.l.b16 %v3783
    %v4381 = vunpack.c.h.b16 %v3783
    %v4382 = vunpack.c.l.b16 %v3784
    %v4383 = vunpack.c.h.b16 %v3784
    %v4384 = vunpack.c.l.b16 %v3785
    %v4385 = vunpack.c.h.b16 %v3785
    %v4386 = vunpack.c.l.b16 %v3786
    %v4387 = vunpack.c.h.b16 %v3786
    %v4388 = vunpack.c.l.b16 %v3787
    %v4389 = vunpack.c.h.b16 %v3787
    %v4390 = vunpack.c.l.b16 %v3788
    %v4391 = vunpack.c.h.b16 %v3788
    %v4392 = vunpack.c.l.b16 %v3789
    %v4393 = vunpack.c.h.b16 %v3789
    %v4394 = vunpack.c.l.b16 %v3790
    %v4395 = vunpack.c.h.b16 %v3790
    %v4396 = vunpack.c.l.b16 %v3791
    %v4397 = vunpack.c.h.b16 %v3791
    %v4398 = vunpack.c.l.b16 %v3792
    %v4399 = vunpack.c.h.b16 %v3792
    %v4400 = vunpack.c.l.b16 %v3793
    %v4401 = vunpack.c.h.b16 %v3793
    %v4402 = vunpack.c.l.b16 %v3794
    %v4403 = vunpack.c.h.b16 %v3794
    %v4404 = vunpack.c.l.b16 %v3795
    %v4405 = vunpack.c.h.b16 %v3795
    %v4406 = vunpack.c.l.b16 %v3796
    %v4407 = vunpack.c.h.b16 %v3796
    %v4408 = vunpack.c.l.b16 %v3797
    %v4409 = vunpack.c.h.b16 %v3797
    %v4410 = vunpack.c.l.b16 %v3798
    %v4411 = vunpack.c.h.b16 %v3798
    %v4412 = vunpack.c.l.b16 %v3799
    %v4413 = vunpack.c.h.b16 %v3799
    %v4414 = vunpack.c.l.b16 %v3800
    %v4415 = vunpack.c.h.b16 %v3800
    %v4416 = vunpack.c.l.b16 %v3801
    %v4417 = vunpack.c.h.b16 %v3801
    %v4418 = vunpack.c.l.b16 %v3802
    %v4419 = vunpack.c.h.b16 %v3802
    %v4420 = vunpack.c.l.b16 %v3803
    %v4421 = vunpack.c.h.b16 %v3803
    %v4422 = vunpack.c.l.b16 %v3804
    %v4423 = vunpack.c.h.b16 %v3804
    %v4424 = vunpack.c.l.b16 %v3805
    %v4425 = vunpack.c.h.b16 %v3805
    %v4426 = vunpack.c.l.b16 %v3806
    %v4427 = vunpack.c.h.b16 %v3806
    %v4428 = vunpack.c.l.b16 %v3807
    %v4429 = vunpack.c.h.b16 %v3807
    %v4430 = vunpack.c.l.b16 %v3808
    %v4431 = vunpack.c.h.b16 %v3808
    %v4432 = vunpack.c.l.b16 %v3809
    %v4433 = vunpack.c.h.b16 %v3809
    %v4434 = vunpack.c.l.b16 %v3810
    %v4435 = vunpack.c.h.b16 %v3810
    %v4436 = vunpack.c.l.b16 %v3811
    %v4437 = vunpack.c.h.b16 %v3811
    %v4438 = vunpack.c.l.b16 %v3812
    %v4439 = vunpack.c.h.b16 %v3812
    %v4440 = vunpack.c.l.b16 %v3813
    %v4441 = vunpack.c.h.b16 %v3813
    %v4442 = vunpack.c.l.b16 %v3814
    %v4443 = vunpack.c.h.b16 %v3814
    %v4444 = vunpack.c.l.b16 %v3815
    %v4445 = vunpack.c.h.b16 %v3815
    %v4446 = vunpack.c.l.b16 %v3816
    %v4447 = vunpack.c.h.b16 %v3816
    %v4448 = vunpack.c.l.b16 %v3817
    %v4449 = vunpack.c.h.b16 %v3817
    %v4450 = vunpack.c.l.b16 %v3818
    %v4451 = vunpack.c.h.b16 %v3818
    %v4452 = vunpack.c.l.b16 %v3819
    %v4453 = vunpack.c.h.b16 %v3819
    %v4454 = vunpack.c.l.b16 %v3820
    %v4455 = vunpack.c.h.b16 %v3820
    %v4456 = vunpack.c.l.b16 %v3821
    %v4457 = vunpack.c.h.b16 %v3821
    %v4458 = vunpack.c.l.b16 %v3822
    %v4459 = vunpack.c.h.b16 %v3822
    %v4460 = vunpack.c.l.b16 %v3823
    %v4461 = vunpack.c.h.b16 %v3823
    %v4462 = vunpack.c.l.b16 %v3824
    %v4463 = vunpack.c.h.b16 %v3824
    %v4464 = vunpack.c.l.b16 %v3825
    %v4465 = vunpack.c.h.b16 %v3825
    %v4466 = vunpack.c.l.b16 %v3826
    %v4467 = vunpack.c.h.b16 %v3826
    %v4468 = vunpack.c.l.b16 %v3827
    %v4469 = vunpack.c.h.b16 %v3827
    %v4470 = vunpack.c.l.b16 %v3828
    %v4471 = vunpack.c.h.b16 %v3828
    %v4472 = vunpack.c.l.b16 %v3829
    %v4473 = vunpack.c.h.b16 %v3829
    %v4474 = vunpack.c.l.b16 %v3830
    %v4475 = vunpack.c.h.b16 %v3830
    %v4476 = vunpack.c.l.b16 %v3831
    %v4477 = vunpack.c.h.b16 %v3831
    %v4478 = vunpack.c.l.b16 %v3832
    %v4479 = vunpack.c.h.b16 %v3832
    %v4480 = vunpack.c.l.b16 %v3833
    %v4481 = vunpack.c.h.b16 %v3833
    %v4482 = vunpack.c.l.b16 %v3834
    %v4483 = vunpack.c.h.b16 %v3834
    %v4484 = vunpack.c.l.b16 %v3835
    %v4485 = vunpack.c.h.b16 %v3835
    %v4486 = vunpack.c.l.b16 %v3836
    %v4487 = vunpack.c.h.b16 %v3836
    %v4488 = vunpack.c.l.b16 %v3837
    %v4489 = vunpack.c.h.b16 %v3837
    %v4490 = vunpack.c.l.b16 %v3838
    %v4491 = vunpack.c.h.b16 %v3838
    %v4492 = vunpack.c.l.b16 %v3839
    %v4493 = vunpack.c.h.b16 %v3839
    %v4494 = vunpack.c.l.b16 %v3840
    %v4495 = vunpack.c.h.b16 %v3840
    %v4496 = vunpack.c.l.b16 %v3841
    %v4497 = vunpack.c.h.b16 %v3841
    %v4498 = vunpack.c.l.b16 %v3842
    %v4499 = vunpack.c.h.b16 %v3842
    %v4500 = vunpack.c.l.b16 %v3843
    %v4501 = vunpack.c.h.b16 %v3843
    %v4502 = vunpack.c.l.b16 %v3844
    %v4503 = vunpack.c.h.b16 %v3844
    %v4504 = vunpack.c.l.b16 %v3845
    %v4505 = vunpack.c.h.b16 %v3845
    %v4506 = vunpack.c.l.b16 %v3846
    %v4507 = vunpack.c.h.b16 %v3846
    %v4508 = vunpack.c.l.b16 %v3847
    %v4509 = vunpack.c.h.b16 %v3847
    %v4510 = vunpack.c.l.b16 %v3848
    %v4511 = vunpack.c.h.b16 %v3848
    %v4512 = vunpack.c.l.b16 %v3849
    %v4513 = vunpack.c.h.b16 %v3849
    %v4514 = vunpack.c.l.b16 %v3850
    %v4515 = vunpack.c.h.b16 %v3850
    %v4516 = vunpack.c.l.b16 %v3851
    %v4517 = vunpack.c.h.b16 %v3851
    %v4518 = vunpack.c.l.b16 %v3852
    %v4519 = vunpack.c.h.b16 %v3852
    %v4520 = vunpack.c.l.b16 %v3853
    %v4521 = vunpack.c.h.b16 %v3853
    %v4522 = vunpack.c.l.b16 %v3854
    %v4523 = vunpack.c.h.b16 %v3854
    %v4524 = vunpack.c.l.b16 %v3855
    %v4525 = vunpack.c.h.b16 %v3855
    %v4526 = vunpack.c.l.b16 %v3856
    %v4527 = vunpack.c.h.b16 %v3856
    %v4528 = vunpack.c.l.b16 %v3857
    %v4529 = vunpack.c.h.b16 %v3857
    %v4530 = vunpack.c.l.b16 %v3858
    %v4531 = vunpack.c.h.b16 %v3858
    %v4532 = vunpack.c.l.b16 %v3859
    %v4533 = vunpack.c.h.b16 %v3859
    %v4534 = vunpack.c.l.b16 %v3860
    %v4535 = vunpack.c.h.b16 %v3860
    %v4536 = vunpack.c.l.b16 %v3861
    %v4537 = vunpack.c.h.b16 %v3861
    %v4538 = vunpack.c.l.b16 %v3862
    %v4539 = vunpack.c.h.b16 %v3862
    %v4540 = vunpack.c.l.b16 %v3863
    %v4541 = vunpack.c.h.b16 %v3863
    %v4542 = vunpack.c.l.b16 %v3864
    %v4543 = vunpack.c.h.b16 %v3864
    %v4544 = vunpack.c.l.b16 %v3865
    %v4545 = vunpack.c.h.b16 %v3865
    %v4546 = vunpack.c.l.b16 %v3866
    %v4547 = vunpack.c.h.b16 %v3866
    %v4548 = vunpack.c.l.b16 %v3867
    %v4549 = vunpack.c.h.b16 %v3867
    %v4550 = vunpack.c.l.b16 %v3868
    %v4551 = vunpack.c.h.b16 %v3868
    %v4552 = vunpack.c.l.b16 %v3869
    %v4553 = vunpack.c.h.b16 %v3869
    %v4554 = vunpack.c.l.b16 %v3870
    %v4555 = vunpack.c.h.b16 %v3870
    %v4556 = vunpack.c.l.b16 %v3871
    %v4557 = vunpack.c.h.b16 %v3871
    %v4558 = vunpack.c.l.b16 %v3872
    %v4559 = vunpack.c.h.b16 %v3872
    %v4560 = vunpack.c.l.b16 %v3873
    %v4561 = vunpack.c.h.b16 %v3873
    %v4562 = vunpack.c.l.b16 %v3874
    %v4563 = vunpack.c.h.b16 %v3874
    %v4564 = vunpack.c.l.b16 %v3875
    %v4565 = vunpack.c.h.b16 %v3875
    %v4566 = vunpack.c.l.b16 %v3876
    %v4567 = vunpack.c.h.b16 %v3876
    %v4568 = vunpack.c.l.b16 %v3877
    %v4569 = vunpack.c.h.b16 %v3877
    %v4570 = vunpack.c.l.b16 %v3878
    %v4571 = vunpack.c.h.b16 %v3878
    %v4572 = vunpack.c.l.b16 %v3879
    %v4573 = vunpack.c.h.b16 %v3879
    %v4574 = vunpack.c.l.b16 %v3880
    %v4575 = vunpack.c.h.b16 %v3880
    %v4576 = vunpack.c.l.b16 %v3881
    %v4577 = vunpack.c.h.b16 %v3881
    %v4578 = vunpack.c.l.b16 %v3882
    %v4579 = vunpack.c.h.b16 %v3882
    %v4580 = vunpack.c.l.b16 %v3883
    %v4581 = vunpack.c.h.b16 %v3883
    %v4582 = vunpack.c.l.b16 %v3884
    %v4583 = vunpack.c.h.b16 %v3884
    %v4584 = vunpack.c.l.b16 %v3885
    %v4585 = vunpack.c.h.b16 %v3885
    %v4586 = vunpack.c.l.b16 %v3886
    %v4587 = vunpack.c.h.b16 %v3886
    %v4588 = vunpack.c.l.b16 %v3887
    %v4589 = vunpack.c.h.b16 %v3887
    %v4590 = vunpack.c.l.b16 %v3888
    %v4591 = vunpack.c.h.b16 %v3888
    %v4592 = vunpack.c.l.b16 %v3889
    %v4593 = vunpack.c.h.b16 %v3889
    %v4594 = vunpack.c.l.b16 %v3890
    %v4595 = vunpack.c.h.b16 %v3890
    %v4596 = vunpack.c.l.b16 %v3891
    %v4597 = vunpack.c.h.b16 %v3891
    %v4598 = vunpack.c.l.b16 %v3892
    %v4599 = vunpack.c.h.b16 %v3892
    %v4600 = vunpack.c.l.b16 %v3893
    %v4601 = vunpack.c.h.b16 %v3893
    %v4602 = vunpack.c.l.b16 %v3894
    %v4603 = vunpack.c.h.b16 %v3894
    %v4604 = vunpack.c.l.b16 %v3895
    %v4605 = vunpack.c.h.b16 %v3895
    %v4606 = vunpack.c.l.b16 %v3896
    %v4607 = vunpack.c.h.b16 %v3896
    %v4608 = vunpack.c.l.b16 %v3897
    %v4609 = vunpack.c.h.b16 %v3897
    %v4610 = vunpack.c.l.b16 %v3898
    %v4611 = vunpack.c.h.b16 %v3898
    %v4612 = vunpack.c.l.b16 %v3899
    %v4613 = vunpack.c.h.b16 %v3899
    %v4614 = vunpack.c.l.b16 %v3900
    %v4615 = vunpack.c.h.b16 %v3900
    %v4616 = vunpack.c.l.b16 %v3901
    %v4617 = vunpack.c.h.b16 %v3901
    %v4618 = vunpack.c.l.b16 %v3902
    %v4619 = vunpack.c.h.b16 %v3902
    %v4620 = vunpack.c.l.b16 %v3903
    %v4621 = vunpack.c.h.b16 %v3903
    %v4622 = vunpack.c.l.b16 %v3904
    %v4623 = vunpack.c.h.b16 %v3904
    %v4624 = vunpack.c.l.b16 %v3905
    %v4625 = vunpack.c.h.b16 %v3905
    %v4626 = vunpack.c.l.b16 %v3906
    %v4627 = vunpack.c.h.b16 %v3906
    %v4628 = vunpack.c.l.b16 %v3907
    %v4629 = vunpack.c.h.b16 %v3907
    %v4630 = vunpack.c.l.b16 %v3908
    %v4631 = vunpack.c.h.b16 %v3908
    %v4632 = vunpack.c.l.b16 %v3909
    %v4633 = vunpack.c.h.b16 %v3909
    %v4634 = vunpack.c.l.b16 %v3910
    %v4635 = vunpack.c.h.b16 %v3910
    %v4636 = vunpack.c.l.b16 %v3911
    %v4637 = vunpack.c.h.b16 %v3911
    %v4638 = vunpack.c.l.b16 %v3912
    %v4639 = vunpack.c.h.b16 %v3912
    %v4640 = vunpack.c.l.b16 %v3913
    %v4641 = vunpack.c.h.b16 %v3913
    %v4642 = vunpack.c.l.b16 %v3914
    %v4643 = vunpack.c.h.b16 %v3914
    %v4644 = vunpack.c.l.b16 %v3915
    %v4645 = vunpack.c.h.b16 %v3915
    %v4646 = vunpack.c.l.b16 %v3916
    %v4647 = vunpack.c.h.b16 %v3916
    %v4648 = vunpack.c.l.b16 %v3917
    %v4649 = vunpack.c.h.b16 %v3917
    %v4650 = vunpack.c.l.b16 %v3918
    %v4651 = vunpack.c.h.b16 %v3918
    %v4652 = vunpack.c.l.b16 %v3919
    %v4653 = vunpack.c.h.b16 %v3919
    %v4654 = vunpack.c.l.b16 %v3920
    %v4655 = vunpack.c.h.b16 %v3920
    %v4656 = vunpack.c.l.b16 %v3921
    %v4657 = vunpack.c.h.b16 %v3921
    %v4658 = vunpack.c.l.b16 %v3922
    %v4659 = vunpack.c.h.b16 %v3922
    %v4660 = vunpack.c.l.b16 %v3923
    %v4661 = vunpack.c.h.b16 %v3923
    %v4662 = vunpack.c.l.b16 %v3924
    %v4663 = vunpack.c.h.b16 %v3924
    %v4664 = vunpack.c.l.b16 %v3925
    %v4665 = vunpack.c.h.b16 %v3925
    %v4666 = vunpack.c.l.b16 %v3926
    %v4667 = vunpack.c.h.b16 %v3926
    %v4668 = vunpack.c.l.b16 %v3927
    %v4669 = vunpack.c.h.b16 %v3927
    %v4670 = vunpack.c.l.b16 %v3928
    %v4671 = vunpack.c.h.b16 %v3928
    %v4672 = vunpack.c.l.b16 %v3929
    %v4673 = vunpack.c.h.b16 %v3929
    %v4674 = vunpack.c.l.b16 %v3930
    %v4675 = vunpack.c.h.b16 %v3930
    %v4676 = vunpack.c.l.b16 %v3931
    %v4677 = vunpack.c.h.b16 %v3931
    %v4678 = vunpack.c.l.b16 %v3932
    %v4679 = vunpack.c.h.b16 %v3932
    %v4680 = vunpack.c.l.b16 %v3933
    %v4681 = vunpack.c.h.b16 %v3933
    %v4682 = vunpack.c.l.b16 %v3934
    %v4683 = vunpack.c.h.b16 %v3934
    %v4684 = vunpack.c.l.b16 %v3935
    %v4685 = vunpack.c.h.b16 %v3935
    %v4686 = vunpack.c.l.b16 %v3936
    %v4687 = vunpack.c.h.b16 %v3936
    %v4688 = vunpack.c.l.b16 %v3937
    %v4689 = vunpack.c.h.b16 %v3937
    %v4690 = vunpack.c.l.b16 %v3938
    %v4691 = vunpack.c.h.b16 %v3938
    %v4692 = vunpack.c.l.b16 %v3939
    %v4693 = vunpack.c.h.b16 %v3939
    %v4694 = vunpack.c.l.b16 %v3940
    %v4695 = vunpack.c.h.b16 %v3940
    %v4696 = vunpack.c.l.b16 %v3941
    %v4697 = vunpack.c.h.b16 %v3941
    %v4698 = vunpack.c.l.b16 %v3942
    %v4699 = vunpack.c.h.b16 %v3942
    %v4700 = vunpack.c.l.b16 %v3943
    %v4701 = vunpack.c.h.b16 %v3943
    %v4702 = vunpack.c.l.b16 %v3944
    %v4703 = vunpack.c.h.b16 %v3944
    %v4704 = vunpack.c.l.b16 %v3945
    %v4705 = vunpack.c.h.b16 %v3945
    %v4706 = vunpack.c.l.b16 %v3946
    %v4707 = vunpack.c.h.b16 %v3946
    %v4708 = vunpack.c.l.b16 %v3947
    %v4709 = vunpack.c.h.b16 %v3947
    %v4710 = vunpack.c.l.b16 %v3948
    %v4711 = vunpack.c.h.b16 %v3948
    %v4712 = vunpack.c.l.b16 %v3949
    %v4713 = vunpack.c.h.b16 %v3949
    %v4714 = vunpack.c.l.b16 %v3950
    %v4715 = vunpack.c.h.b16 %v3950
    %v4716 = vunpack.c.l.b16 %v3951
    %v4717 = vunpack.c.h.b16 %v3951
    %v4718 = vunpack.c.l.b16 %v3952
    %v4719 = vunpack.c.h.b16 %v3952
    %v4720 = vunpack.c.l.b16 %v3953
    %v4721 = vunpack.c.h.b16 %v3953
    %v4722 = vunpack.c.l.b16 %v3954
    %v4723 = vunpack.c.h.b16 %v3954
    %v4724 = vunpack.c.l.b16 %v3955
    %v4725 = vunpack.c.h.b16 %v3955
    %v4726 = vunpack.c.l.b16 %v3956
    %v4727 = vunpack.c.h.b16 %v3956
    %v4728 = vunpack.c.l.b16 %v3957
    %v4729 = vunpack.c.h.b16 %v3957
    %v4730 = vunpack.c.l.b16 %v3958
    %v4731 = vunpack.c.h.b16 %v3958
    %v4732 = vunpack.c.l.b16 %v3959
    %v4733 = vunpack.c.h.b16 %v3959
    %v4734 = vunpack.c.l.b16 %v3960
    %v4735 = vunpack.c.h.b16 %v3960
    %v4736 = vunpack.c.l.b16 %v3961
    %v4737 = vunpack.c.h.b16 %v3961
    %v4738 = vunpack.c.l.b16 %v3962
    %v4739 = vunpack.c.h.b16 %v3962
    %v4740 = vunpack.c.l.b16 %v3963
    %v4741 = vunpack.c.h.b16 %v3963
    %v4742 = vunpack.c.l.b16 %v3964
    %v4743 = vunpack.c.h.b16 %v3964
    %v4744 = vunpack.c.l.b16 %v3965
    %v4745 = vunpack.c.h.b16 %v3965
    %v4746 = vunpack.c.l.b16 %v3966
    %v4747 = vunpack.c.h.b16 %v3966
    %v4748 = vunpack.c.l.b16 %v3967
    %v4749 = vunpack.c.h.b16 %v3967
    %v4750 = vunpack.c.l.b16 %v3968
    %v4751 = vunpack.c.h.b16 %v3968
    %v4752 = vunpack.c.l.b16 %v3969
    %v4753 = vunpack.c.h.b16 %v3969
    %v4754 = vunpack.c.l.b16 %v3970
    %v4755 = vunpack.c.h.b16 %v3970
    %v4756 = vunpack.c.l.b16 %v3971
    %v4757 = vunpack.c.h.b16 %v3971
    %v4758 = vunpack.c.l.b16 %v3972
    %v4759 = vunpack.c.h.b16 %v3972
    %v4760 = vunpack.c.l.b16 %v3973
    %v4761 = vunpack.c.h.b16 %v3973
    %v4762 = vunpack.c.l.b16 %v3974
    %v4763 = vunpack.c.h.b16 %v3974
    %v4764 = vunpack.c.l.b16 %v3975
    %v4765 = vunpack.c.h.b16 %v3975
    %v4766 = vpack.c.b16 %v4258, %v4254
    %v4767 = vpack.c.b16 %v4259, %v4255
    %v4768 = vpack.c.b16 %v4260, %v4256
    %v4769 = vpack.c.b16 %v4261, %v4257
    %v4770 = vpack.c.b16 %v4266, %v4262
    %v4771 = vpack.c.b16 %v4267, %v4263
    %v4772 = vpack.c.b16 %v4268, %v4264
    %v4773 = vpack.c.b16 %v4269, %v4265
    %v4774 = vpack.c.b16 %v4274, %v4270
    %v4775 = vpack.c.b16 %v4275, %v4271
    %v4776 = vpack.c.b16 %v4276, %v4272
    %v4777 = vpack.c.b16 %v4277, %v4273
    %v4778 = vpack.c.b16 %v4282, %v4278
    %v4779 = vpack.c.b16 %v4283, %v4279
    %v4780 = vpack.c.b16 %v4284, %v4280
    %v4781 = vpack.c.b16 %v4285, %v4281
    %v4782 = vpack.c.b16 %v4290, %v4286
    %v4783 = vpack.c.b16 %v4291, %v4287
    %v4784 = vpack.c.b16 %v4292, %v4288
    %v4785 = vpack.c.b16 %v4293, %v4289
    %v4786 = vpack.c.b16 %v4298, %v4294
    %v4787 = vpack.c.b16 %v4299, %v4295
    %v4788 = vpack.c.b16 %v4300, %v4296
    %v4789 = vpack.c.b16 %v4301, %v4297
    %v4790 = vpack.c.b16 %v4306, %v4302
    %v4791 = vpack.c.b16 %v4307, %v4303
    %v4792 = vpack.c.b16 %v4308, %v4304
    %v4793 = vpack.c.b16 %v4309, %v4305
    %v4794 = vpack.c.b16 %v4314, %v4310
    %v4795 = vpack.c.b16 %v4315, %v4311
    %v4796 = vpack.c.b16 %v4316, %v4312
    %v4797 = vpack.c.b16 %v4317, %v4313
    %v4798 = vpack.c.b16 %v4322, %v4318
    %v4799 = vpack.c.b16 %v4323, %v4319
    %v4800 = vpack.c.b16 %v4324, %v4320
    %v4801 = vpack.c.b16 %v4325, %v4321
    %v4802 = vpack.c.b16 %v4330, %v4326
    %v4803 = vpack.c.b16 %v4331, %v4327
    %v4804 = vpack.c.b16 %v4332, %v4328
    %v4805 = vpack.c.b16 %v4333, %v4329
    %v4806 = vpack.c.b16 %v4338, %v4334
    %v4807 = vpack.c.b16 %v4339, %v4335
    %v4808 = vpack.c.b16 %v4340, %v4336
    %v4809 = vpack.c.b16 %v4341, %v4337
    %v4810 = vpack.c.b16 %v4346, %v4342
    %v4811 = vpack.c.b16 %v4347, %v4343
    %v4812 = vpack.c.b16 %v4348, %v4344
    %v4813 = vpack.c.b16 %v4349, %v4345
    %v4814 = vpack.c.b16 %v4354, %v4350
    %v4815 = vpack.c.b16 %v4355, %v4351
    %v4816 = vpack.c.b16 %v4356, %v4352
    %v4817 = vpack.c.b16 %v4357, %v4353
    %v4818 = vpack.c.b16 %v4362, %v4358
    %v4819 = vpack.c.b16 %v4363, %v4359
    %v4820 = vpack.c.b16 %v4364, %v4360
    %v4821 = vpack.c.b16 %v4365, %v4361
    %v4822 = vpack.c.b16 %v4370, %v4366
    %v4823 = vpack.c.b16 %v4371, %v4367
    %v4824 = vpack.c.b16 %v4372, %v4368
    %v4825 = vpack.c.b16 %v4373, %v4369
    %v4826 = vpack.c.b16 %v4378, %v4374
    %v4827 = vpack.c.b16 %v4379, %v4375
    %v4828 = vpack.c.b16 %v4380, %v4376
    %v4829 = vpack.c.b16 %v4381, %v4377
    %v4830 = vpack.c.b16 %v4386, %v4382
    %v4831 = vpack.c.b16 %v4387, %v4383
    %v4832 = vpack.c.b16 %v4388, %v4384
    %v4833 = vpack.c.b16 %v4389, %v4385
    %v4834 = vpack.c.b16 %v4394, %v4390
    %v4835 = vpack.c.b16 %v4395, %v4391
    %v4836 = vpack.c.b16 %v4396, %v4392
    %v4837 = vpack.c.b16 %v4397, %v4393
    %v4838 = vpack.c.b16 %v4402, %v4398
    %v4839 = vpack.c.b16 %v4403, %v4399
    %v4840 = vpack.c.b16 %v4404, %v4400
    %v4841 = vpack.c.b16 %v4405, %v4401
    %v4842 = vpack.c.b16 %v4410, %v4406
    %v4843 = vpack.c.b16 %v4411, %v4407
    %v4844 = vpack.c.b16 %v4412, %v4408
    %v4845 = vpack.c.b16 %v4413, %v4409
    %v4846 = vpack.c.b16 %v4418, %v4414
    %v4847 = vpack.c.b16 %v4419, %v4415
    %v4848 = vpack.c.b16 %v4420, %v4416
    %v4849 = vpack.c.b16 %v4421, %v4417
    %v4850 = vpack.c.b16 %v4426, %v4422
    %v4851 = vpack.c.b16 %v4427, %v4423
    %v4852 = vpack.c.b16 %v4428, %v4424
    %v4853 = vpack.c.b16 %v4429, %v4425
    %v4854 = vpack.c.b16 %v4434, %v4430
    %v4855 = vpack.c.b16 %v4435, %v4431
    %v4856 = vpack.c.b16 %v4436, %v4432
    %v4857 = vpack.c.b16 %v4437, %v4433
    %v4858 = vpack.c.b16 %v4442, %v4438
    %v4859 = vpack.c.b16 %v4443, %v4439
    %v4860 = vpack.c.b16 %v4444, %v4440
    %v4861 = vpack.c.b16 %v4445, %v4441
    %v4862 = vpack.c.b16 %v4450, %v4446
    %v4863 = vpack.c.b16 %v4451, %v4447
    %v4864 = vpack.c.b16 %v4452, %v4448
    %v4865 = vpack.c.b16 %v4453, %v4449
    %v4866 = vpack.c.b16 %v4458, %v4454
    %v4867 = vpack.c.b16 %v4459, %v4455
    %v4868 = vpack.c.b16 %v4460, %v4456
    %v4869 = vpack.c.b16 %v4461, %v4457
    %v4870 = vpack.c.b16 %v4466, %v4462
    %v4871 = vpack.c.b16 %v4467, %v4463
    %v4872 = vpack.c.b16 %v4468, %v4464
    %v4873 = vpack.c.b16 %v4469, %v4465
    %v4874 = vpack.c.b16 %v4474, %v4470
    %v4875 = vpack.c.b16 %v4475, %v4471
    %v4876 = vpack.c.b16 %v4476, %v4472
    %v4877 = vpack.c.b16 %v4477, %v4473
    %v4878 = vpack.c.b16 %v4482, %v4478
    %v4879 = vpack.c.b16 %v4483, %v4479
    %v4880 = vpack.c.b16 %v4484, %v4480
    %v4881 = vpack.c.b16 %v4485, %v4481
    %v4882 = vpack.c.b16 %v4490, %v4486
    %v4883 = vpack.c.b16 %v4491, %v4487
    %v4884 = vpack.c.b16 %v4492, %v4488
    %v4885 = vpack.c.b16 %v4493, %v4489
    %v4886 = vpack.c.b16 %v4498, %v4494
    %v4887 = vpack.c.b16 %v4499, %v4495
    %v4888 = vpack.c.b16 %v4500, %v4496
    %v4889 = vpack.c.b16 %v4501, %v4497
    %v4890 = vpack.c.b16 %v4506, %v4502
    %v4891 = vpack.c.b16 %v4507, %v4503
    %v4892 = vpack.c.b16 %v4508, %v4504
    %v4893 = vpack.c.b16 %v4509, %v4505
    %v4894 = vpack.c.b16 %v4514, %v4510
    %v4895 = vpack.c.b16 %v4515, %v4511
    %v4896 = vpack.c.b16 %v4516, %v4512
    %v4897 = vpack.c.b16 %v4517, %v4513
    %v4898 = vpack.c.b16 %v4522, %v4518
    %v4899 = vpack.c.b16 %v4523, %v4519
    %v4900 = vpack.c.b16 %v4524, %v4520
    %v4901 = vpack.c.b16 %v4525, %v4521
    %v4902 = vpack.c.b16 %v4530, %v4526
    %v4903 = vpack.c.b16 %v4531, %v4527
    %v4904 = vpack.c.b16 %v4532, %v4528
    %v4905 = vpack.c.b16 %v4533, %v4529
    %v4906 = vpack.c.b16 %v4538, %v4534
    %v4907 = vpack.c.b16 %v4539, %v4535
    %v4908 = vpack.c.b16 %v4540, %v4536
    %v4909 = vpack.c.b16 %v4541, %v4537
    %v4910 = vpack.c.b16 %v4546, %v4542
    %v4911 = vpack.c.b16 %v4547, %v4543
    %v4912 = vpack.c.b16 %v4548, %v4544
    %v4913 = vpack.c.b16 %v4549, %v4545
    %v4914 = vpack.c.b16 %v4554, %v4550
    %v4915 = vpack.c.b16 %v4555, %v4551
    %v4916 = vpack.c.b16 %v4556, %v4552
    %v4917 = vpack.c.b16 %v4557, %v4553
    %v4918 = vpack.c.b16 %v4562, %v4558
    %v4919 = vpack.c.b16 %v4563, %v4559
    %v4920 = vpack.c.b16 %v4564, %v4560
    %v4921 = vpack.c.b16 %v4565, %v4561
    %v4922 = vpack.c.b16 %v4570, %v4566
    %v4923 = vpack.c.b16 %v4571, %v4567
    %v4924 = vpack.c.b16 %v4572, %v4568
    %v4925 = vpack.c.b16 %v4573, %v4569
    %v4926 = vpack.c.b16 %v4578, %v4574
    %v4927 = vpack.c.b16 %v4579, %v4575
    %v4928 = vpack.c.b16 %v4580, %v4576
    %v4929 = vpack.c.b16 %v4581, %v4577
    %v4930 = vpack.c.b16 %v4586, %v4582
    %v4931 = vpack.c.b16 %v4587, %v4583
    %v4932 = vpack.c.b16 %v4588, %v4584
    %v4933 = vpack.c.b16 %v4589, %v4585
    %v4934 = vpack.c.b16 %v4594, %v4590
    %v4935 = vpack.c.b16 %v4595, %v4591
    %v4936 = vpack.c.b16 %v4596, %v4592
    %v4937 = vpack.c.b16 %v4597, %v4593
    %v4938 = vpack.c.b16 %v4602, %v4598
    %v4939 = vpack.c.b16 %v4603, %v4599
    %v4940 = vpack.c.b16 %v4604, %v4600
    %v4941 = vpack.c.b16 %v4605, %v4601
    %v4942 = vpack.c.b16 %v4610, %v4606
    %v4943 = vpack.c.b16 %v4611, %v4607
    %v4944 = vpack.c.b16 %v4612, %v4608
    %v4945 = vpack.c.b16 %v4613, %v4609
    %v4946 = vpack.c.b16 %v4618, %v4614
    %v4947 = vpack.c.b16 %v4619, %v4615
    %v4948 = vpack.c.b16 %v4620, %v4616
    %v4949 = vpack.c.b16 %v4621, %v4617
    %v4950 = vpack.c.b16 %v4626, %v4622
    %v4951 = vpack.c.b16 %v4627, %v4623
    %v4952 = vpack.c.b16 %v4628, %v4624
    %v4953 = vpack.c.b16 %v4629, %v4625
    %v4954 = vpack.c.b16 %v4634, %v4630
    %v4955 = vpack.c.b16 %v4635, %v4631
    %v4956 = vpack.c.b16 %v4636, %v4632
    %v4957 = vpack.c.b16 %v4637, %v4633
    %v4958 = vpack.c.b16 %v4642, %v4638
    %v4959 = vpack.c.b16 %v4643, %v4639
    %v4960 = vpack.c.b16 %v4644, %v4640
    %v4961 = vpack.c.b16 %v4645, %v4641
    %v4962 = vpack.c.b16 %v4650, %v4646
    %v4963 = vpack.c.b16 %v4651, %v4647
    %v4964 = vpack.c.b16 %v4652, %v4648
    %v4965 = vpack.c.b16 %v4653, %v4649
    %v4966 = vpack.c.b16 %v4658, %v4654
    %v4967 = vpack.c.b16 %v4659, %v4655
    %v4968 = vpack.c.b16 %v4660, %v4656
    %v4969 = vpack.c.b16 %v4661, %v4657
    %v4970 = vpack.c.b16 %v4666, %v4662
    %v4971 = vpack.c.b16 %v4667, %v4663
    %v4972 = vpack.c.b16 %v4668, %v4664
    %v4973 = vpack.c.b16 %v4669, %v4665
    %v4974 = vpack.c.b16 %v4674, %v4670
    %v4975 = vpack.c.b16 %v4675, %v4671
    %v4976 = vpack.c.b16 %v4676, %v4672
    %v4977 = vpack.c.b16 %v4677, %v4673
    %v4978 = vpack.c.b16 %v4682, %v4678
    %v4979 = vpack.c.b16 %v4683, %v4679
    %v4980 = vpack.c.b16 %v4684, %v4680
    %v4981 = vpack.c.b16 %v4685, %v4681
    %v4982 = vpack.c.b16 %v4690, %v4686
    %v4983 = vpack.c.b16 %v4691, %v4687
    %v4984 = vpack.c.b16 %v4692, %v4688
    %v4985 = vpack.c.b16 %v4693, %v4689
    %v4986 = vpack.c.b16 %v4698, %v4694
    %v4987 = vpack.c.b16 %v4699, %v4695
    %v4988 = vpack.c.b16 %v4700, %v4696
    %v4989 = vpack.c.b16 %v4701, %v4697
    %v4990 = vpack.c.b16 %v4706, %v4702
    %v4991 = vpack.c.b16 %v4707, %v4703
    %v4992 = vpack.c.b16 %v4708, %v4704
    %v4993 = vpack.c.b16 %v4709, %v4705
    %v4994 = vpack.c.b16 %v4714, %v4710
    %v4995 = vpack.c.b16 %v4715, %v4711
    %v4996 = vpack.c.b16 %v4716, %v4712
    %v4997 = vpack.c.b16 %v4717, %v4713
    %v4998 = vpack.c.b16 %v4722, %v4718
    %v4999 = vpack.c.b16 %v4723, %v4719
    %v5000 = vpack.c.b16 %v4724, %v4720
    %v5001 = vpack.c.b16 %v4725, %v4721
    %v5002 = vpack.c.b16 %v4730, %v4726
    %v5003 = vpack.c.b16 %v4731, %v4727
    %v5004 = vpack.c.b16 %v4732, %v4728
    %v5005 = vpack.c.b16 %v4733, %v4729
    %v5006 = vpack.c.b16 %v4738, %v4734
    %v5007 = vpack.c.b16 %v4739, %v4735
    %v5008 = vpack.c.b16 %v4740, %v4736
    %v5009 = vpack.c.b16 %v4741, %v4737
    %v5010 = vpack.c.b16 %v4746, %v4742
    %v5011 = vpack.c.b16 %v4747, %v4743
    %v5012 = vpack.c.b16 %v4748, %v4744
    %v5013 = vpack.c.b16 %v4749, %v4745
    %v5014 = vpack.c.b16 %v4754, %v4750
    %v5015 = vpack.c.b16 %v4755, %v4751
    %v5016 = vpack.c.b16 %v4756, %v4752
    %v5017 = vpack.c.b16 %v4757, %v4753
    %v5018 = vpack.c.b16 %v4762, %v4758
    %v5019 = vpack.c.b16 %v4763, %v4759
    %v5020 = vpack.c.b16 %v4764, %v4760
    %v5021 = vpack.c.b16 %v4765, %v4761
    %5278 = vmatprep.subr.bf16.mxu0 %v4767
    %5279 = vmatpush1.bf16.msra.mxu0 %v4766
    %5280 = vmatprep.subr.bf16.mxu0 %v4771
    %5281 = vmatpush1.bf16.msra.mxu0 %v4770
    %5282 = vmatprep.subr.bf16.mxu0 %v4775
    %5283 = vmatpush1.bf16.msra.mxu0 %v4774
    %5284 = vmatprep.subr.bf16.mxu0 %v4779
    %5285 = vmatpush1.bf16.msra.mxu0 %v4778
    %5286 = vmatprep.subr.bf16.mxu0 %v4783
    %5287 = vmatpush1.bf16.msra.mxu0 %v4782
    %5288 = vmatprep.subr.bf16.mxu0 %v4787
    %5289 = vmatpush1.bf16.msra.mxu0 %v4786
    %5290 = vmatprep.subr.bf16.mxu0 %v4791
    %5291 = vmatpush1.bf16.msra.mxu0 %v4790
    %5292 = vmatprep.subr.bf16.mxu0 %v4795
    %5293 = vmatpush1.bf16.msra.mxu0 %v4794
    %5294 = vmatprep.subr.bf16.mxu0 %v4799
    %5295 = vmatpush1.bf16.msra.mxu0 %v4798
    %5296 = vmatprep.subr.bf16.mxu0 %v4803
    %5297 = vmatpush1.bf16.msra.mxu0 %v4802
    %5298 = vmatprep.subr.bf16.mxu0 %v4807
    %5299 = vmatpush1.bf16.msra.mxu0 %v4806
    %5300 = vmatprep.subr.bf16.mxu0 %v4811
    %5301 = vmatpush1.bf16.msra.mxu0 %v4810
    %5302 = vmatprep.subr.bf16.mxu0 %v4815
    %5303 = vmatpush1.bf16.msra.mxu0 %v4814
    %5304 = vmatprep.subr.bf16.mxu0 %v4819
    %5305 = vmatpush1.bf16.msra.mxu0 %v4818
    %5306 = vmatprep.subr.bf16.mxu0 %v4823
    %5307 = vmatpush1.bf16.msra.mxu0 %v4822
    %5308 = vmatprep.subr.bf16.mxu0 %v4827
    %5309 = vmatpush1.bf16.msra.mxu0 %v4826
    %5310 = vmatprep.mubr.bf16.mxu0 %v3713
    %5311 = vmatmul.mubr.bf16.gmra.mrb[0].mxu0 %v3712
    %v5312 = vpop.f32.mrb[0].mxu0
    %v5313 = vadd.f32 %v3981, %v5312
    %v5314 = vpop.f32.mrb[0].mxu0
    %v5315 = vadd.f32 %v3985, %v5314
    %v5316 = vpop.f32.mrb[0].mxu0
    %v5317 = vpop.f32.mrb[0].mxu0
    %5318 = vdwg.mxu0
    %5319 = vmatprep.subr.bf16.mxu0 %v4831
    %5320 = vmatpush1.bf16.msra.mxu0 %v4830
    %5321 = vmatprep.subr.bf16.mxu0 %v4835
    %5322 = vmatpush1.bf16.msra.mxu0 %v4834
    %5323 = vmatprep.subr.bf16.mxu0 %v4839
    %5324 = vmatpush1.bf16.msra.mxu0 %v4838
    %5325 = vmatprep.subr.bf16.mxu0 %v4843
    %5326 = vmatpush1.bf16.msra.mxu0 %v4842
    %5327 = vmatprep.subr.bf16.mxu0 %v4847
    %5328 = vmatpush1.bf16.msra.mxu0 %v4846
    %5329 = vmatprep.subr.bf16.mxu0 %v4851
    %5330 = vmatpush1.bf16.msra.mxu0 %v4850
    %5331 = vmatprep.subr.bf16.mxu0 %v4855
    %5332 = vmatpush1.bf16.msra.mxu0 %v4854
    %5333 = vmatprep.subr.bf16.mxu0 %v4859
    %5334 = vmatpush1.bf16.msra.mxu0 %v4858
    %5335 = vmatprep.subr.bf16.mxu0 %v4863
    %5336 = vmatpush1.bf16.msra.mxu0 %v4862
    %5337 = vmatprep.subr.bf16.mxu0 %v4867
    %5338 = vmatpush1.bf16.msra.mxu0 %v4866
    %5339 = vmatprep.subr.bf16.mxu0 %v4871
    %5340 = vmatpush1.bf16.msra.mxu0 %v4870
    %5341 = vmatprep.subr.bf16.mxu0 %v4875
    %5342 = vmatpush1.bf16.msra.mxu0 %v4874
    %5343 = vmatprep.subr.bf16.mxu0 %v4879
    %5344 = vmatpush1.bf16.msra.mxu0 %v4878
    %5345 = vmatprep.subr.bf16.mxu0 %v4883
    %5346 = vmatpush1.bf16.msra.mxu0 %v4882
    %5347 = vmatprep.subr.bf16.mxu0 %v4887
    %5348 = vmatpush1.bf16.msra.mxu0 %v4886
    %5349 = vmatprep.subr.bf16.mxu0 %v4891
    %5350 = vmatpush1.bf16.msra.mxu0 %v4890
    %5351 = vmatprep.mubr.bf16.mxu0 %v3715
    %5352 = vmatmul.mubr.bf16.gmra.mrb[0].mxu0 %v3714
    %v5353 = vpop.f32.mrb[0].mxu0
    %v5354 = vadd.f32 %v5313, %v5353
    %v5355 = vpop.f32.mrb[0].mxu0
    %v5356 = vadd.f32 %v5315, %v5355
    %v5357 = vpop.f32.mrb[0].mxu0
    %v5358 = vpop.f32.mrb[0].mxu0
    %5359 = vdwg.mxu0
    %5360 = vmatprep.subr.bf16.mxu0 %v4895
    %5361 = vmatpush1.bf16.msra.mxu0 %v4894
    %5362 = vmatprep.subr.bf16.mxu0 %v4899
    %5363 = vmatpush1.bf16.msra.mxu0 %v4898
    %5364 = vmatprep.subr.bf16.mxu0 %v4903
    %5365 = vmatpush1.bf16.msra.mxu0 %v4902
    %5366 = vmatprep.subr.bf16.mxu0 %v4907
    %5367 = vmatpush1.bf16.msra.mxu0 %v4906
    %5368 = vmatprep.subr.bf16.mxu0 %v4911
    %5369 = vmatpush1.bf16.msra.mxu0 %v4910
    %5370 = vmatprep.subr.bf16.mxu0 %v4915
    %5371 = vmatpush1.bf16.msra.mxu0 %v4914
    %5372 = vmatprep.subr.bf16.mxu0 %v4919
    %5373 = vmatpush1.bf16.msra.mxu0 %v4918
    %5374 = vmatprep.subr.bf16.mxu0 %v4923
    %5375 = vmatpush1.bf16.msra.mxu0 %v4922
    %5376 = vmatprep.subr.bf16.mxu0 %v4927
    %5377 = vmatpush1.bf16.msra.mxu0 %v4926
    %5378 = vmatprep.subr.bf16.mxu0 %v4931
    %5379 = vmatpush1.bf16.msra.mxu0 %v4930
    %5380 = vmatprep.subr.bf16.mxu0 %v4935
    %5381 = vmatpush1.bf16.msra.mxu0 %v4934
    %5382 = vmatprep.subr.bf16.mxu0 %v4939
    %5383 = vmatpush1.bf16.msra.mxu0 %v4938
    %5384 = vmatprep.subr.bf16.mxu0 %v4943
    %5385 = vmatpush1.bf16.msra.mxu0 %v4942
    %5386 = vmatprep.subr.bf16.mxu0 %v4947
    %5387 = vmatpush1.bf16.msra.mxu0 %v4946
    %5388 = vmatprep.subr.bf16.mxu0 %v4951
    %5389 = vmatpush1.bf16.msra.mxu0 %v4950
    %5390 = vmatprep.subr.bf16.mxu0 %v4955
    %5391 = vmatpush1.bf16.msra.mxu0 %v4954
    %5392 = vmatprep.mubr.bf16.mxu0 %v3717
    %5393 = vmatmul.mubr.bf16.gmra.mrb[0].mxu0 %v3716
    %v5394 = vpop.f32.mrb[0].mxu0
    %v5395 = vadd.f32 %v5354, %v5394
    %v5396 = vpop.f32.mrb[0].mxu0
    %v5397 = vadd.f32 %v5356, %v5396
    %v5398 = vpop.f32.mrb[0].mxu0
    %v5399 = vpop.f32.mrb[0].mxu0
    %5400 = vdwg.mxu0
    %5401 = vmatprep.subr.bf16.mxu0 %v4959
    %5402 = vmatpush1.bf16.msra.mxu0 %v4958
    %5403 = vmatprep.subr.bf16.mxu0 %v4963
    %5404 = vmatpush1.bf16.msra.mxu0 %v4962
    %5405 = vmatprep.subr.bf16.mxu0 %v4967
    %5406 = vmatpush1.bf16.msra.mxu0 %v4966
    %5407 = vmatprep.subr.bf16.mxu0 %v4971
    %5408 = vmatpush1.bf16.msra.mxu0 %v4970
    %5409 = vmatprep.subr.bf16.mxu0 %v4975
    %5410 = vmatpush1.bf16.msra.mxu0 %v4974
    %5411 = vmatprep.subr.bf16.mxu0 %v4979
    %5412 = vmatpush1.bf16.msra.mxu0 %v4978
    %5413 = vmatprep.subr.bf16.mxu0 %v4983
    %5414 = vmatpush1.bf16.msra.mxu0 %v4982
    %5415 = vmatprep.subr.bf16.mxu0 %v4987
    %5416 = vmatpush1.bf16.msra.mxu0 %v4986
    %5417 = vmatprep.subr.bf16.mxu0 %v4991
    %5418 = vmatpush1.bf16.msra.mxu0 %v4990
    %5419 = vmatprep.subr.bf16.mxu0 %v4995
    %5420 = vmatpush1.bf16.msra.mxu0 %v4994
    %5421 = vmatprep.subr.bf16.mxu0 %v4999
    %5422 = vmatpush1.bf16.msra.mxu0 %v4998
    %5423 = vmatprep.subr.bf16.mxu0 %v5003
    %5424 = vmatpush1.bf16.msra.mxu0 %v5002
    %5425 = vmatprep.subr.bf16.mxu0 %v5007
    %5426 = vmatpush1.bf16.msra.mxu0 %v5006
    %5427 = vmatprep.subr.bf16.mxu0 %v5011
    %5428 = vmatpush1.bf16.msra.mxu0 %v5010
    %5429 = vmatprep.subr.bf16.mxu0 %v5015
    %5430 = vmatpush1.bf16.msra.mxu0 %v5014
    %5431 = vmatprep.subr.bf16.mxu0 %v5019
    %5432 = vmatpush1.bf16.msra.mxu0 %v5018
    %5433 = vmatprep.mubr.bf16.mxu0 %v3719
    %5434 = vmatmul.mubr.bf16.gmra.mrb[0].mxu0 %v3718
    %v5435 = vpop.f32.mrb[0].mxu0
    %v5436 = vadd.f32 %v5395, %v5435
    %v5437 = vpop.f32.mrb[0].mxu0
    %v5438 = vadd.f32 %v5397, %v5437
    %v5439 = vpop.f32.mrb[0].mxu0
    %v5440 = vpop.f32.mrb[0].mxu0
    %5441 = vdwg.mxu0
    %5442 = vmatprep.subr.bf16.mxu0 %v4769
    %5443 = vmatpush1.bf16.msra.mxu0 %v4768
    %5444 = vmatprep.subr.bf16.mxu0 %v4773
    %5445 = vmatpush1.bf16.msra.mxu0 %v4772
    %5446 = vmatprep.subr.bf16.mxu0 %v4777
    %5447 = vmatpush1.bf16.msra.mxu0 %v4776
    %5448 = vmatprep.subr.bf16.mxu0 %v4781
    %5449 = vmatpush1.bf16.msra.mxu0 %v4780
    %5450 = vmatprep.subr.bf16.mxu0 %v4785
    %5451 = vmatpush1.bf16.msra.mxu0 %v4784
    %5452 = vmatprep.subr.bf16.mxu0 %v4789
    %5453 = vmatpush1.bf16.msra.mxu0 %v4788
    %5454 = vmatprep.subr.bf16.mxu0 %v4793
    %5455 = vmatpush1.bf16.msra.mxu0 %v4792
    %5456 = vmatprep.subr.bf16.mxu0 %v4797
    %5457 = vmatpush1.bf16.msra.mxu0 %v4796
    %5458 = vmatprep.subr.bf16.mxu0 %v4801
    %5459 = vmatpush1.bf16.msra.mxu0 %v4800
    %5460 = vmatprep.subr.bf16.mxu0 %v4805
    %5461 = vmatpush1.bf16.msra.mxu0 %v4804
    %5462 = vmatprep.subr.bf16.mxu0 %v4809
    %5463 = vmatpush1.bf16.msra.mxu0 %v4808
    %5464 = vmatprep.subr.bf16.mxu0 %v4813
    %5465 = vmatpush1.bf16.msra.mxu0 %v4812
    %5466 = vmatprep.subr.bf16.mxu0 %v4817
    %5467 = vmatpush1.bf16.msra.mxu0 %v4816
    %5468 = vmatprep.subr.bf16.mxu0 %v4821
    %5469 = vmatpush1.bf16.msra.mxu0 %v4820
    %5470 = vmatprep.subr.bf16.mxu0 %v4825
    %5471 = vmatpush1.bf16.msra.mxu0 %v4824
    %5472 = vmatprep.subr.bf16.mxu0 %v4829
    %5473 = vmatpush1.bf16.msra.mxu0 %v4828
    %5474 = vmatprep.mubr.bf16.mxu0 %v3713
    %5475 = vmatmul.mubr.bf16.gmra.mrb[0].mxu0 %v3712
    %v5476 = vpop.f32.mrb[0].mxu0
    %v5477 = vadd.f32 %v3989, %v5476
    %v5478 = vpop.f32.mrb[0].mxu0
    %v5479 = vadd.f32 %v3993, %v5478
    %v5480 = vpop.f32.mrb[0].mxu0
    %v5481 = vpop.f32.mrb[0].mxu0
    %5482 = vdwg.mxu0
    %5483 = vmatprep.subr.bf16.mxu0 %v4833
    %5484 = vmatpush1.bf16.msra.mxu0 %v4832
    %5485 = vmatprep.subr.bf16.mxu0 %v4837
    %5486 = vmatpush1.bf16.msra.mxu0 %v4836
    %5487 = vmatprep.subr.bf16.mxu0 %v4841
    %5488 = vmatpush1.bf16.msra.mxu0 %v4840
    %5489 = vmatprep.subr.bf16.mxu0 %v4845
    %5490 = vmatpush1.bf16.msra.mxu0 %v4844
    %5491 = vmatprep.subr.bf16.mxu0 %v4849
    %5492 = vmatpush1.bf16.msra.mxu0 %v4848
    %5493 = vmatprep.subr.bf16.mxu0 %v4853
    %5494 = vmatpush1.bf16.msra.mxu0 %v4852
    %5495 = vmatprep.subr.bf16.mxu0 %v4857
    %5496 = vmatpush1.bf16.msra.mxu0 %v4856
    %5497 = vmatprep.subr.bf16.mxu0 %v4861
    %5498 = vmatpush1.bf16.msra.mxu0 %v4860
    %5499 = vmatprep.subr.bf16.mxu0 %v4865
    %5500 = vmatpush1.bf16.msra.mxu0 %v4864
    %5501 = vmatprep.subr.bf16.mxu0 %v4869
    %5502 = vmatpush1.bf16.msra.mxu0 %v4868
    %5503 = vmatprep.subr.bf16.mxu0 %v4873
    %5504 = vmatpush1.bf16.msra.mxu0 %v4872
    %5505 = vmatprep.subr.bf16.mxu0 %v4877
    %5506 = vmatpush1.bf16.msra.mxu0 %v4876
    %5507 = vmatprep.subr.bf16.mxu0 %v4881
    %5508 = vmatpush1.bf16.msra.mxu0 %v4880
    %5509 = vmatprep.subr.bf16.mxu0 %v4885
    %5510 = vmatpush1.bf16.msra.mxu0 %v4884
    %5511 = vmatprep.subr.bf16.mxu0 %v4889
    %5512 = vmatpush1.bf16.msra.mxu0 %v4888
    %5513 = vmatprep.subr.bf16.mxu0 %v4893
    %5514 = vmatpush1.bf16.msra.mxu0 %v4892
    %5515 = vmatprep.mubr.bf16.mxu0 %v3715
    %5516 = vmatmul.mubr.bf16.gmra.mrb[0].mxu0 %v3714
    %v5517 = vpop.f32.mrb[0].mxu0
    %v5518 = vadd.f32 %v5477, %v5517
    %v5519 = vpop.f32.mrb[0].mxu0
    %v5520 = vadd.f32 %v5479, %v5519
    %v5521 = vpop.f32.mrb[0].mxu0
    %v5522 = vpop.f32.mrb[0].mxu0
    %5523 = vdwg.mxu0
    %5524 = vmatprep.subr.bf16.mxu0 %v4897
    %5525 = vmatpush1.bf16.msra.mxu0 %v4896
    %5526 = vmatprep.subr.bf16.mxu0 %v4901
    %5527 = vmatpush1.bf16.msra.mxu0 %v4900
    %5528 = vmatprep.subr.bf16.mxu0 %v4905
    %5529 = vmatpush1.bf16.msra.mxu0 %v4904
    %5530 = vmatprep.subr.bf16.mxu0 %v4909
    %5531 = vmatpush1.bf16.msra.mxu0 %v4908
    %5532 = vmatprep.subr.bf16.mxu0 %v4913
    %5533 = vmatpush1.bf16.msra.mxu0 %v4912
    %5534 = vmatprep.subr.bf16.mxu0 %v4917
    %5535 = vmatpush1.bf16.msra.mxu0 %v4916
    %5536 = vmatprep.subr.bf16.mxu0 %v4921
    %5537 = vmatpush1.bf16.msra.mxu0 %v4920
    %5538 = vmatprep.subr.bf16.mxu0 %v4925
    %5539 = vmatpush1.bf16.msra.mxu0 %v4924
    %5540 = vmatprep.subr.bf16.mxu0 %v4929
    %5541 = vmatpush1.bf16.msra.mxu0 %v4928
    %5542 = vmatprep.subr.bf16.mxu0 %v4933
    %5543 = vmatpush1.bf16.msra.mxu0 %v4932
    %5544 = vmatprep.subr.bf16.mxu0 %v4937
    %5545 = vmatpush1.bf16.msra.mxu0 %v4936
    %5546 = vmatprep.subr.bf16.mxu0 %v4941
    %5547 = vmatpush1.bf16.msra.mxu0 %v4940
    %5548 = vmatprep.subr.bf16.mxu0 %v4945
    %5549 = vmatpush1.bf16.msra.mxu0 %v4944
    %5550 = vmatprep.subr.bf16.mxu0 %v4949
    %5551 = vmatpush1.bf16.msra.mxu0 %v4948
    %5552 = vmatprep.subr.bf16.mxu0 %v4953
    %5553 = vmatpush1.bf16.msra.mxu0 %v4952
    %5554 = vmatprep.subr.bf16.mxu0 %v4957
    %5555 = vmatpush1.bf16.msra.mxu0 %v4956
    %5556 = vmatprep.mubr.bf16.mxu0 %v3717
    %5557 = vmatmul.mubr.bf16.gmra.mrb[0].mxu0 %v3716
    %v5558 = vpop.f32.mrb[0].mxu0
    %v5559 = vadd.f32 %v5518, %v5558
    %v5560 = vpop.f32.mrb[0].mxu0
    %v5561 = vadd.f32 %v5520, %v5560
    %v5562 = vpop.f32.mrb[0].mxu0
    %v5563 = vpop.f32.mrb[0].mxu0
    %5564 = vdwg.mxu0
    %5565 = vmatprep.subr.bf16.mxu0 %v4961
    %5566 = vmatpush1.bf16.msra.mxu0 %v4960
    %5567 = vmatprep.subr.bf16.mxu0 %v4965
    %5568 = vmatpush1.bf16.msra.mxu0 %v4964
    %5569 = vmatprep.subr.bf16.mxu0 %v4969
    %5570 = vmatpush1.bf16.msra.mxu0 %v4968
    %5571 = vmatprep.subr.bf16.mxu0 %v4973
    %5572 = vmatpush1.bf16.msra.mxu0 %v4972
    %5573 = vmatprep.subr.bf16.mxu0 %v4977
    %5574 = vmatpush1.bf16.msra.mxu0 %v4976
    %5575 = vmatprep.subr.bf16.mxu0 %v4981
    %5576 = vmatpush1.bf16.msra.mxu0 %v4980
    %5577 = vmatprep.subr.bf16.mxu0 %v4985
    %5578 = vmatpush1.bf16.msra.mxu0 %v4984
    %5579 = vmatprep.subr.bf16.mxu0 %v4989
    %5580 = vmatpush1.bf16.msra.mxu0 %v4988
    %5581 = vmatprep.subr.bf16.mxu0 %v4993
    %5582 = vmatpush1.bf16.msra.mxu0 %v4992
    %5583 = vmatprep.subr.bf16.mxu0 %v4997
    %5584 = vmatpush1.bf16.msra.mxu0 %v4996
    %5585 = vmatprep.subr.bf16.mxu0 %v5001
    %5586 = vmatpush1.bf16.msra.mxu0 %v5000
    %5587 = vmatprep.subr.bf16.mxu0 %v5005
    %5588 = vmatpush1.bf16.msra.mxu0 %v5004
    %5589 = vmatprep.subr.bf16.mxu0 %v5009
    %5590 = vmatpush1.bf16.msra.mxu0 %v5008
    %5591 = vmatprep.subr.bf16.mxu0 %v5013
    %5592 = vmatpush1.bf16.msra.mxu0 %v5012
    %5593 = vmatprep.subr.bf16.mxu0 %v5017
    %5594 = vmatpush1.bf16.msra.mxu0 %v5016
    %5595 = vmatprep.subr.bf16.mxu0 %v5021
    %5596 = vmatpush1.bf16.msra.mxu0 %v5020
    %5597 = vmatprep.mubr.bf16.mxu0 %v3719
    %5598 = vmatmul.mubr.bf16.gmra.mrb[0].mxu0 %v3718
    %v5599 = vpop.f32.mrb[0].mxu0
    %v5600 = vadd.f32 %v5559, %v5599
    %v5601 = vpop.f32.mrb[0].mxu0
    %v5602 = vadd.f32 %v5561, %v5601
    %v5603 = vpop.f32.mrb[0].mxu0
    %v5604 = vpop.f32.mrb[0].mxu0
    %5605 = vdwg.mxu0
    %vm5606 = vcmp.gt.f32.partialorder %v5436, 0.0
    %vm5607 = vcmp.gt.f32.partialorder %v5438, 0.0
    %vm5608 = vcmp.gt.f32.partialorder %v5600, 0.0
    %vm5609 = vcmp.gt.f32.partialorder %v5602, 0.0
    %v5610 = vmul.f32 %v5436, 0.2
    %v5611 = vmul.f32 %v5438, 0.2
    %v5612 = vmul.f32 %v5600, 0.2
    %v5613 = vmul.f32 %v5602, 0.2
    %v5614 = vsel %vm5606, %v5436, %v5610
    %v5615 = vsel %vm5607, %v5438, %v5611
    %v5616 = vsel %vm5608, %v5600, %v5612
    %v5617 = vsel %vm5609, %v5602, %v5613
    %v5618 = vpack.c.bf16 %v5614, %v5614
    %v5619 = vpack.c.bf16 %v5615, %v5615
    %v5620 = vpack.c.bf16 %v5616, %v5616
    %v5621 = vpack.c.bf16 %v5617, %v5617
    %v5622 = vld [vmem:[#allocation15] sm:$0xff]
    %v5623 = vld [vmem:[#allocation15 + $0x8] sm:$0xff]
    %v5624 = vld [vmem:[#allocation15 + $0x10] sm:$0xff]
    %v5625 = vld [vmem:[#allocation15 + $0x18] sm:$0xff]
    %v5626 = vld [vmem:[#allocation15 + $0x20] sm:$0xff]
    %v5627 = vld [vmem:[#allocation15 + $0x28] sm:$0xff]
    %v5628 = vld [vmem:[#allocation15 + $0x30] sm:$0xff]
    %v5629 = vld [vmem:[#allocation15 + $0x38] sm:$0xff]
    %v5630 = vld [vmem:[#allocation15 + $0x40] sm:$0xff]
    %v5631 = vld [vmem:[#allocation15 + $0x48] sm:$0xff]
    %v5632 = vld [vmem:[#allocation15 + $0x50] sm:$0xff]
    %v5633 = vld [vmem:[#allocation15 + $0x58] sm:$0xff]
    %v5634 = vld [vmem:[#allocation15 + $0x60] sm:$0xff]
    %v5635 = vld [vmem:[#allocation15 + $0x68] sm:$0xff]
    %v5636 = vld [vmem:[#allocation15 + $0x70] sm:$0xff]
    %v5637 = vld [vmem:[#allocation15 + $0x78] sm:$0xff]
    %v5638 = vld [vmem:[#allocation15 + $0x80] sm:$0xff]
    %v5639 = vld [vmem:[#allocation15 + $0x88] sm:$0xff]
    %v5640 = vld [vmem:[#allocation15 + $0x90] sm:$0xff]
    %v5641 = vld [vmem:[#allocation15 + $0x98] sm:$0xff]
    %v5642 = vld [vmem:[#allocation15 + $0xa0] sm:$0xff]
    %v5643 = vld [vmem:[#allocation15 + $0xa8] sm:$0xff]
    %v5644 = vld [vmem:[#allocation15 + $0xb0] sm:$0xff]
    %v5645 = vld [vmem:[#allocation15 + $0xb8] sm:$0xff]
    %v5646 = vld [vmem:[#allocation15 + $0xc0] sm:$0xff]
    %v5647 = vld [vmem:[#allocation15 + $0xc8] sm:$0xff]
    %v5648 = vld [vmem:[#allocation15 + $0xd0] sm:$0xff]
    %v5649 = vld [vmem:[#allocation15 + $0xd8] sm:$0xff]
    %v5650 = vld [vmem:[#allocation15 + $0xe0] sm:$0xff]
    %v5651 = vld [vmem:[#allocation15 + $0xe8] sm:$0xff]
    %v5652 = vld [vmem:[#allocation15 + $0xf0] sm:$0xff]
    %v5653 = vld [vmem:[#allocation15 + $0xf8] sm:$0xff]
    %v5654 = vld [vmem:[#allocation15 + $0x100] sm:$0xff]
    %v5655 = vld [vmem:[#allocation15 + $0x108] sm:$0xff]
    %v5656 = vld [vmem:[#allocation15 + $0x110] sm:$0xff]
    %v5657 = vld [vmem:[#allocation15 + $0x118] sm:$0xff]
    %v5658 = vld [vmem:[#allocation15 + $0x120] sm:$0xff]
    %v5659 = vld [vmem:[#allocation15 + $0x128] sm:$0xff]
    %v5660 = vld [vmem:[#allocation15 + $0x130] sm:$0xff]
    %v5661 = vld [vmem:[#allocation15 + $0x138] sm:$0xff]
    %v5662 = vld [vmem:[#allocation15 + $0x140] sm:$0xff]
    %v5663 = vld [vmem:[#allocation15 + $0x148] sm:$0xff]
    %v5664 = vld [vmem:[#allocation15 + $0x150] sm:$0xff]
    %v5665 = vld [vmem:[#allocation15 + $0x158] sm:$0xff]
    %v5666 = vld [vmem:[#allocation15 + $0x160] sm:$0xff]
    %v5667 = vld [vmem:[#allocation15 + $0x168] sm:$0xff]
    %v5668 = vld [vmem:[#allocation15 + $0x170] sm:$0xff]
    %v5669 = vld [vmem:[#allocation15 + $0x178] sm:$0xff]
    %v5670 = vld [vmem:[#allocation15 + $0x180] sm:$0xff]
    %v5671 = vld [vmem:[#allocation15 + $0x188] sm:$0xff]
    %v5672 = vld [vmem:[#allocation15 + $0x190] sm:$0xff]
    %v5673 = vld [vmem:[#allocation15 + $0x198] sm:$0xff]
    %v5674 = vld [vmem:[#allocation15 + $0x1a0] sm:$0xff]
    %v5675 = vld [vmem:[#allocation15 + $0x1a8] sm:$0xff]
    %v5676 = vld [vmem:[#allocation15 + $0x1b0] sm:$0xff]
    %v5677 = vld [vmem:[#allocation15 + $0x1b8] sm:$0xff]
    %v5678 = vld [vmem:[#allocation15 + $0x1c0] sm:$0xff]
    %v5679 = vld [vmem:[#allocation15 + $0x1c8] sm:$0xff]
    %v5680 = vld [vmem:[#allocation15 + $0x1d0] sm:$0xff]
    %v5681 = vld [vmem:[#allocation15 + $0x1d8] sm:$0xff]
    %v5682 = vld [vmem:[#allocation15 + $0x1e0] sm:$0xff]
    %v5683 = vld [vmem:[#allocation15 + $0x1e8] sm:$0xff]
    %v5684 = vld [vmem:[#allocation15 + $0x1f0] sm:$0xff]
    %v5685 = vld [vmem:[#allocation15 + $0x1f8] sm:$0xff]
    %v5686 = vld [vmem:[#allocation16] sm:$0x3]
    %v5688 = vlaneseq
    %v5689 = vshrl.u32 %v5688, 7
    %v5690 = vsub.s32 0, %v5689
    %v5691 = vrot.slane %v5686, %v5690
    %v5692 = vlaneseq
    %v5693 = vshrl.u32 %v5692, 7
    %v5694 = vsub.s32 1, %v5693
    %v5695 = vrot.slane %v5686, %v5694
    %v5762 = vunpack.c.l.b16 %v5622
    %v5763 = vunpack.c.h.b16 %v5622
    %v5764 = vunpack.c.l.b16 %v5623
    %v5765 = vunpack.c.h.b16 %v5623
    %v5766 = vunpack.c.l.b16 %v5624
    %v5767 = vunpack.c.h.b16 %v5624
    %v5768 = vunpack.c.l.b16 %v5625
    %v5769 = vunpack.c.h.b16 %v5625
    %v5770 = vunpack.c.l.b16 %v5626
    %v5771 = vunpack.c.h.b16 %v5626
    %v5772 = vunpack.c.l.b16 %v5627
    %v5773 = vunpack.c.h.b16 %v5627
    %v5774 = vunpack.c.l.b16 %v5628
    %v5775 = vunpack.c.h.b16 %v5628
    %v5776 = vunpack.c.l.b16 %v5629
    %v5777 = vunpack.c.h.b16 %v5629
    %v5778 = vunpack.c.l.b16 %v5630
    %v5779 = vunpack.c.h.b16 %v5630
    %v5780 = vunpack.c.l.b16 %v5631
    %v5781 = vunpack.c.h.b16 %v5631
    %v5782 = vunpack.c.l.b16 %v5632
    %v5783 = vunpack.c.h.b16 %v5632
    %v5784 = vunpack.c.l.b16 %v5633
    %v5785 = vunpack.c.h.b16 %v5633
    %v5786 = vunpack.c.l.b16 %v5634
    %v5787 = vunpack.c.h.b16 %v5634
    %v5788 = vunpack.c.l.b16 %v5635
    %v5789 = vunpack.c.h.b16 %v5635
    %v5790 = vunpack.c.l.b16 %v5636
    %v5791 = vunpack.c.h.b16 %v5636
    %v5792 = vunpack.c.l.b16 %v5637
    %v5793 = vunpack.c.h.b16 %v5637
    %v5794 = vunpack.c.l.b16 %v5638
    %v5795 = vunpack.c.h.b16 %v5638
    %v5796 = vunpack.c.l.b16 %v5639
    %v5797 = vunpack.c.h.b16 %v5639
    %v5798 = vunpack.c.l.b16 %v5640
    %v5799 = vunpack.c.h.b16 %v5640
    %v5800 = vunpack.c.l.b16 %v5641
    %v5801 = vunpack.c.h.b16 %v5641
    %v5802 = vunpack.c.l.b16 %v5642
    %v5803 = vunpack.c.h.b16 %v5642
    %v5804 = vunpack.c.l.b16 %v5643
    %v5805 = vunpack.c.h.b16 %v5643
    %v5806 = vunpack.c.l.b16 %v5644
    %v5807 = vunpack.c.h.b16 %v5644
    %v5808 = vunpack.c.l.b16 %v5645
    %v5809 = vunpack.c.h.b16 %v5645
    %v5810 = vunpack.c.l.b16 %v5646
    %v5811 = vunpack.c.h.b16 %v5646
    %v5812 = vunpack.c.l.b16 %v5647
    %v5813 = vunpack.c.h.b16 %v5647
    %v5814 = vunpack.c.l.b16 %v5648
    %v5815 = vunpack.c.h.b16 %v5648
    %v5816 = vunpack.c.l.b16 %v5649
    %v5817 = vunpack.c.h.b16 %v5649
    %v5818 = vunpack.c.l.b16 %v5650
    %v5819 = vunpack.c.h.b16 %v5650
    %v5820 = vunpack.c.l.b16 %v5651
    %v5821 = vunpack.c.h.b16 %v5651
    %v5822 = vunpack.c.l.b16 %v5652
    %v5823 = vunpack.c.h.b16 %v5652
    %v5824 = vunpack.c.l.b16 %v5653
    %v5825 = vunpack.c.h.b16 %v5653
    %v5826 = vunpack.c.l.b16 %v5654
    %v5827 = vunpack.c.h.b16 %v5654
    %v5828 = vunpack.c.l.b16 %v5655
    %v5829 = vunpack.c.h.b16 %v5655
    %v5830 = vunpack.c.l.b16 %v5656
    %v5831 = vunpack.c.h.b16 %v5656
    %v5832 = vunpack.c.l.b16 %v5657
    %v5833 = vunpack.c.h.b16 %v5657
    %v5834 = vunpack.c.l.b16 %v5658
    %v5835 = vunpack.c.h.b16 %v5658
    %v5836 = vunpack.c.l.b16 %v5659
    %v5837 = vunpack.c.h.b16 %v5659
    %v5838 = vunpack.c.l.b16 %v5660
    %v5839 = vunpack.c.h.b16 %v5660
    %v5840 = vunpack.c.l.b16 %v5661
    %v5841 = vunpack.c.h.b16 %v5661
    %v5842 = vunpack.c.l.b16 %v5662
    %v5843 = vunpack.c.h.b16 %v5662
    %v5844 = vunpack.c.l.b16 %v5663
    %v5845 = vunpack.c.h.b16 %v5663
    %v5846 = vunpack.c.l.b16 %v5664
    %v5847 = vunpack.c.h.b16 %v5664
    %v5848 = vunpack.c.l.b16 %v5665
    %v5849 = vunpack.c.h.b16 %v5665
    %v5850 = vunpack.c.l.b16 %v5666
    %v5851 = vunpack.c.h.b16 %v5666
    %v5852 = vunpack.c.l.b16 %v5667
    %v5853 = vunpack.c.h.b16 %v5667
    %v5854 = vunpack.c.l.b16 %v5668
    %v5855 = vunpack.c.h.b16 %v5668
    %v5856 = vunpack.c.l.b16 %v5669
    %v5857 = vunpack.c.h.b16 %v5669
    %v5858 = vunpack.c.l.b16 %v5670
    %v5859 = vunpack.c.h.b16 %v5670
    %v5860 = vunpack.c.l.b16 %v5671
    %v5861 = vunpack.c.h.b16 %v5671
    %v5862 = vunpack.c.l.b16 %v5672
    %v5863 = vunpack.c.h.b16 %v5672
    %v5864 = vunpack.c.l.b16 %v5673
    %v5865 = vunpack.c.h.b16 %v5673
    %v5866 = vunpack.c.l.b16 %v5674
    %v5867 = vunpack.c.h.b16 %v5674
    %v5868 = vunpack.c.l.b16 %v5675
    %v5869 = vunpack.c.h.b16 %v5675
    %v5870 = vunpack.c.l.b16 %v5676
    %v5871 = vunpack.c.h.b16 %v5676
    %v5872 = vunpack.c.l.b16 %v5677
    %v5873 = vunpack.c.h.b16 %v5677
    %v5874 = vunpack.c.l.b16 %v5678
    %v5875 = vunpack.c.h.b16 %v5678
    %v5876 = vunpack.c.l.b16 %v5679
    %v5877 = vunpack.c.h.b16 %v5679
    %v5878 = vunpack.c.l.b16 %v5680
    %v5879 = vunpack.c.h.b16 %v5680
    %v5880 = vunpack.c.l.b16 %v5681
    %v5881 = vunpack.c.h.b16 %v5681
    %v5882 = vunpack.c.l.b16 %v5682
    %v5883 = vunpack.c.h.b16 %v5682
    %v5884 = vunpack.c.l.b16 %v5683
    %v5885 = vunpack.c.h.b16 %v5683
    %v5886 = vunpack.c.l.b16 %v5684
    %v5887 = vunpack.c.h.b16 %v5684
    %v5888 = vunpack.c.l.b16 %v5685
    %v5889 = vunpack.c.h.b16 %v5685
    %v5890 = vpack.c.b16 %v5764, %v5762
    %v5891 = vpack.c.b16 %v5765, %v5763
    %v5892 = vpack.c.b16 %v5768, %v5766
    %v5893 = vpack.c.b16 %v5769, %v5767
    %v5894 = vpack.c.b16 %v5772, %v5770
    %v5895 = vpack.c.b16 %v5773, %v5771
    %v5896 = vpack.c.b16 %v5776, %v5774
    %v5897 = vpack.c.b16 %v5777, %v5775
    %v5898 = vpack.c.b16 %v5780, %v5778
    %v5899 = vpack.c.b16 %v5781, %v5779
    %v5900 = vpack.c.b16 %v5784, %v5782
    %v5901 = vpack.c.b16 %v5785, %v5783
    %v5902 = vpack.c.b16 %v5788, %v5786
    %v5903 = vpack.c.b16 %v5789, %v5787
    %v5904 = vpack.c.b16 %v5792, %v5790
    %v5905 = vpack.c.b16 %v5793, %v5791
    %v5906 = vpack.c.b16 %v5796, %v5794
    %v5907 = vpack.c.b16 %v5797, %v5795
    %v5908 = vpack.c.b16 %v5800, %v5798
    %v5909 = vpack.c.b16 %v5801, %v5799
    %v5910 = vpack.c.b16 %v5804, %v5802
    %v5911 = vpack.c.b16 %v5805, %v5803
    %v5912 = vpack.c.b16 %v5808, %v5806
    %v5913 = vpack.c.b16 %v5809, %v5807
    %v5914 = vpack.c.b16 %v5812, %v5810
    %v5915 = vpack.c.b16 %v5813, %v5811
    %v5916 = vpack.c.b16 %v5816, %v5814
    %v5917 = vpack.c.b16 %v5817, %v5815
    %v5918 = vpack.c.b16 %v5820, %v5818
    %v5919 = vpack.c.b16 %v5821, %v5819
    %v5920 = vpack.c.b16 %v5824, %v5822
    %v5921 = vpack.c.b16 %v5825, %v5823
    %v5922 = vpack.c.b16 %v5828, %v5826
    %v5923 = vpack.c.b16 %v5829, %v5827
    %v5924 = vpack.c.b16 %v5832, %v5830
    %v5925 = vpack.c.b16 %v5833, %v5831
    %v5926 = vpack.c.b16 %v5836, %v5834
    %v5927 = vpack.c.b16 %v5837, %v5835
    %v5928 = vpack.c.b16 %v5840, %v5838
    %v5929 = vpack.c.b16 %v5841, %v5839
    %v5930 = vpack.c.b16 %v5844, %v5842
    %v5931 = vpack.c.b16 %v5845, %v5843
    %v5932 = vpack.c.b16 %v5848, %v5846
    %v5933 = vpack.c.b16 %v5849, %v5847
    %v5934 = vpack.c.b16 %v5852, %v5850
    %v5935 = vpack.c.b16 %v5853, %v5851
    %v5936 = vpack.c.b16 %v5856, %v5854
    %v5937 = vpack.c.b16 %v5857, %v5855
    %v5938 = vpack.c.b16 %v5860, %v5858
    %v5939 = vpack.c.b16 %v5861, %v5859
    %v5940 = vpack.c.b16 %v5864, %v5862
    %v5941 = vpack.c.b16 %v5865, %v5863
    %v5942 = vpack.c.b16 %v5868, %v5866
    %v5943 = vpack.c.b16 %v5869, %v5867
    %v5944 = vpack.c.b16 %v5872, %v5870
    %v5945 = vpack.c.b16 %v5873, %v5871
    %v5946 = vpack.c.b16 %v5876, %v5874
    %v5947 = vpack.c.b16 %v5877, %v5875
    %v5948 = vpack.c.b16 %v5880, %v5878
    %v5949 = vpack.c.b16 %v5881, %v5879
    %v5950 = vpack.c.b16 %v5884, %v5882
    %v5951 = vpack.c.b16 %v5885, %v5883
    %v5952 = vpack.c.b16 %v5888, %v5886
    %v5953 = vpack.c.b16 %v5889, %v5887
    %6018 = vmatprep.subr.bf16.mxu0 %v5891
    %6019 = vmatpush1.bf16.msra.mxu0 %v5890
    %6020 = vmatprep.subr.bf16.mxu0 %v5893
    %6021 = vmatpush1.bf16.msra.mxu0 %v5892
    %6022 = vmatprep.subr.bf16.mxu0 %v5895
    %6023 = vmatpush1.bf16.msra.mxu0 %v5894
    %6024 = vmatprep.subr.bf16.mxu0 %v5897
    %6025 = vmatpush1.bf16.msra.mxu0 %v5896
    %6026 = vmatprep.subr.bf16.mxu0 %v5899
    %6027 = vmatpush1.bf16.msra.mxu0 %v5898
    %6028 = vmatprep.subr.bf16.mxu0 %v5901
    %6029 = vmatpush1.bf16.msra.mxu0 %v5900
    %6030 = vmatprep.subr.bf16.mxu0 %v5903
    %6031 = vmatpush1.bf16.msra.mxu0 %v5902
    %6032 = vmatprep.subr.bf16.mxu0 %v5905
    %6033 = vmatpush1.bf16.msra.mxu0 %v5904
    %6034 = vmatprep.subr.bf16.mxu0 %v5907
    %6035 = vmatpush1.bf16.msra.mxu0 %v5906
    %6036 = vmatprep.subr.bf16.mxu0 %v5909
    %6037 = vmatpush1.bf16.msra.mxu0 %v5908
    %6038 = vmatprep.subr.bf16.mxu0 %v5911
    %6039 = vmatpush1.bf16.msra.mxu0 %v5910
    %6040 = vmatprep.subr.bf16.mxu0 %v5913
    %6041 = vmatpush1.bf16.msra.mxu0 %v5912
    %6042 = vmatprep.subr.bf16.mxu0 %v5915
    %6043 = vmatpush1.bf16.msra.mxu0 %v5914
    %6044 = vmatprep.subr.bf16.mxu0 %v5917
    %6045 = vmatpush1.bf16.msra.mxu0 %v5916
    %6046 = vmatprep.subr.bf16.mxu0 %v5919
    %6047 = vmatpush1.bf16.msra.mxu0 %v5918
    %6048 = vmatprep.subr.bf16.mxu0 %v5921
    %6049 = vmatpush1.bf16.msra.mxu0 %v5920
    %6050 = vmatprep.mubr.bf16.mxu0 %v5619
    %6051 = vmatmul.mubr.bf16.gmra.mrb[0].mxu0 %v5618
    %v6052 = vpop.f32.mrb[0].mxu0
    %v6053 = vadd.f32 %v5691, %v6052
    %v6054 = vpop.f32.mrb[0].mxu0
    %v6055 = vadd.f32 %v5695, %v6054
    %v6056 = vpop.f32.mrb[0].mxu0
    %v6057 = vpop.f32.mrb[0].mxu0
    %6058 = vdwg.mxu0
    %6059 = vmatprep.subr.bf16.mxu0 %v5923
    %6060 = vmatpush1.bf16.msra.mxu0 %v5922
    %6061 = vmatprep.subr.bf16.mxu0 %v5925
    %6062 = vmatpush1.bf16.msra.mxu0 %v5924
    %6063 = vmatprep.subr.bf16.mxu0 %v5927
    %6064 = vmatpush1.bf16.msra.mxu0 %v5926
    %6065 = vmatprep.subr.bf16.mxu0 %v5929
    %6066 = vmatpush1.bf16.msra.mxu0 %v5928
    %6067 = vmatprep.subr.bf16.mxu0 %v5931
    %6068 = vmatpush1.bf16.msra.mxu0 %v5930
    %6069 = vmatprep.subr.bf16.mxu0 %v5933
    %6070 = vmatpush1.bf16.msra.mxu0 %v5932
    %6071 = vmatprep.subr.bf16.mxu0 %v5935
    %6072 = vmatpush1.bf16.msra.mxu0 %v5934
    %6073 = vmatprep.subr.bf16.mxu0 %v5937
    %6074 = vmatpush1.bf16.msra.mxu0 %v5936
    %6075 = vmatprep.subr.bf16.mxu0 %v5939
    %6076 = vmatpush1.bf16.msra.mxu0 %v5938
    %6077 = vmatprep.subr.bf16.mxu0 %v5941
    %6078 = vmatpush1.bf16.msra.mxu0 %v5940
    %6079 = vmatprep.subr.bf16.mxu0 %v5943
    %6080 = vmatpush1.bf16.msra.mxu0 %v5942
    %6081 = vmatprep.subr.bf16.mxu0 %v5945
    %6082 = vmatpush1.bf16.msra.mxu0 %v5944
    %6083 = vmatprep.subr.bf16.mxu0 %v5947
    %6084 = vmatpush1.bf16.msra.mxu0 %v5946
    %6085 = vmatprep.subr.bf16.mxu0 %v5949
    %6086 = vmatpush1.bf16.msra.mxu0 %v5948
    %6087 = vmatprep.subr.bf16.mxu0 %v5951
    %6088 = vmatpush1.bf16.msra.mxu0 %v5950
    %6089 = vmatprep.subr.bf16.mxu0 %v5953
    %6090 = vmatpush1.bf16.msra.mxu0 %v5952
    %6091 = vmatprep.mubr.bf16.mxu0 %v5621
    %6092 = vmatmul.mubr.bf16.gmra.mrb[0].mxu0 %v5620
    %v6093 = vpop.f32.mrb[0].mxu0
    %v6094 = vadd.f32 %v6053, %v6093
    %v6095 = vpop.f32.mrb[0].mxu0
    %v6096 = vadd.f32 %v6055, %v6095
    %v6097 = vpop.f32.mrb[0].mxu0
    %v6098 = vpop.f32.mrb[0].mxu0
    %6099 = vdwg.mxu0
    %vm6100 = vcmp.gt.f32.partialorder %v6094, 0.0
    %vm6101 = vcmp.gt.f32.partialorder %v6096, 0.0
    %v6102 = vmul.f32 %v6094, 0.2
    %v6103 = vmul.f32 %v6096, 0.2
    %v6104 = vsel %vm6100, %v6094, %v6102
    %v6105 = vsel %vm6101, %v6096, %v6103
    %v6106 = vld [vmem:[#allocation18] sm:$0x3]
    %v6108 = vlaneseq
    %v6109 = vshrl.u32 %v6108, 7
    %v6110 = vsub.s32 0, %v6109
    %v6111 = vrot.slane %v6106, %v6110
    %v6112 = vlaneseq
    %v6113 = vshrl.u32 %v6112, 7
    %v6114 = vsub.s32 1, %v6113
    %v6115 = vrot.slane %v6106, %v6114
    %v6118 = vmul.f32 %v6104, %v6111
    %v6119 = vmul.f32 %v6105, %v6115
    %v6120 = vadd.f32 %v6118, %v6119
    %6121 = vadd.xlane.f32.xlu0 %v6120
    %v6122 = vpop.xlane.xlu0 %6121
    %v6123 = vld [vmem:[#allocation7] sm:$0x1]
    %v6125 = vlaneseq
    %v6126 = vshrl.u32 %v6125, 7
    %v6127 = vsub.s32 0, %v6126
    %v6128 = vrot.slane %v6123, %v6127
    %v6130 = vadd.f32 %v6122, %v6128
    %v6131 = vsub.f32 0.0, %v6130
    %v6132 = vmul.f32 %v6131, 1.442695
    %v6133 = vpow.pop %v6132
    %v6134 = vadd.f32 %v6133, 1.0
    %v6135 = vrcp.pop %v6134
    %v6136 = vmul.f32 1.0, %v6135
    %6138 = vset.pattern.permute.xlu0 0
    %6139 = vperm.xlu0 %6138, %v6136
    %v6140 = vpop.permute.xlu0 %6139
    %6142 = vst [vmem:[%s10] sm:$0xff] %v6140
    // Predicated region
    $region66: #{discriminator_forward.2} parent=1 // pred_check
      _
    $region67: #{discriminator_forward.2} parent=1 // pred_check_branch
      %6144 = sbr.rel (0) target = $region69
    $region68: #{discriminator_forward.2} parent=1 // pred_region
      _
    $region69: #{discriminator_forward.2} parent=1 // pred_fallthru
      _
    // Predicated region
    $region70: #{discriminator_forward.2} parent=1 // pred_check
      _
    $region71: #{discriminator_forward.2} parent=1 // pred_check_branch
      %6146 = sbr.rel (0) target = $region73
    $region72: #{discriminator_forward.2} parent=1 // pred_region
      _
    $region73: #{discriminator_forward.2} parent=1 // pred_fallthru
      _
    %6147 = vsyncpa [#allocation9], 1
    %6148 = vsyncpa [#allocation11], 1
    %6149 = vsyncpa [#allocation14], 1
    %6150 = vsyncpa [#allocation17], 1

</llo_original>
